<compile_context>
chip_gen: v6e
topology: v6e:2x2x1
jax: 0.10.0
libtpu: 0.0.40
codegen_flags: <defaults>
</compile_context>

<pallas_src>
import functools
import math

import jax
import jax.numpy as jnp
from jax.experimental import pallas as pl
from jax.experimental.pallas import tpu as pltpu


def _lstm_rnn_kernel(x_ref, w1_ref, w2_ref, b_ref, out_ref, p_ref, *,
                     n_steps, future, hidden, feat, batch):
    B, H, F = batch, hidden, feat

    # ---- hot, loop-invariant loads (off the recurrence chain) ----
    whh1 = w1_ref[0:H, :]                                   # (H, 4H) used every step
    wih2 = w2_ref[0:H, :]                                   # (H, 4F) used every step
    whh2 = w2_ref[H:H + F, :]                               # (F, 4F) used every step
    b2b = jnp.broadcast_to(b_ref[1:2, 0:4 * F], (B, 4 * F))  # (B, 4F)
    if future > 0:
        b1b = jnp.broadcast_to(b_ref[0:1, 0:4 * H], (B, 4 * H))  # (B, 4H)

    # ---- one-time layer-1 input projection for all observed steps ----
    # wih1 (rows H:H+F of w1) is COLD: read from the ref at point of use, never
    # held in vregs.  Bias b1 (g-scaled) folded in.  Result parked in VMEM
    # scratch; the per-step slice reload is off the dependence chain.
    p_ref[...] = (
        jnp.dot(x_ref[...], w1_ref[H:H + F, :], preferred_element_type=jnp.float32)
        + b_ref[0:1, 0:4 * H])                              # (T*B, 4H)

    def gates(g, c_prev, n):
        # PyTorch gate order i, f, g, o.  The wrapper pre-scaled the g-block
        # columns of W/b by 2, so tanh(g_orig) == 2*sigmoid(g)-1 here: a single
        # full-vector sigmoid (EUP) + a VPU mul-add replaces sigmoid+tanh.
        s = jax.nn.sigmoid(g)
        i = s[:, 0 * n:1 * n]
        f = s[:, 1 * n:2 * n]
        gg = 2.0 * s[:, 2 * n:3 * n] - 1.0
        o = s[:, 3 * n:4 * n]
        c_new = f * c_prev + i * gg
        h_new = o * jnp.tanh(c_new)                         # short second EUP pass
        return h_new, c_new

    # zero-init recurrent state (matches torch.zeros in forward())
    h1 = jnp.zeros((B, H), jnp.float32)
    c1 = jnp.zeros((B, H), jnp.float32)
    h2 = jnp.zeros((B, F), jnp.float32)
    c2 = jnp.zeros((B, F), jnp.float32)

    # Fully-unrolled scan (static trip count; straight-line code so the LLO
    # scheduler can overlap layer-1(t+1) with layer-2(t)).
    for t in range(n_steps + future):
        if t < n_steps:
            # observed step: layer-1 input projection already precomputed
            g1 = p_ref[t * B:(t + 1) * B, :] + jnp.dot(
                h1, whh1, preferred_element_type=jnp.float32)
        else:
            # autoregressive step: two un-fused dots (no lane concat);
            # wih1 read from the ref at point of use (cold).
            g1 = (jnp.dot(c2, w1_ref[H:H + F, :], preferred_element_type=jnp.float32)
                  + jnp.dot(h1, whh1, preferred_element_type=jnp.float32)
                  + b1b)
        h1, c1 = gates(g1, c1, H)

        # layer 2, fed with layer-1 CELL state (as in the PyTorch module);
        # un-fused dots avoid the lane-axis concat on the critical chain.
        g2 = (jnp.dot(c1, wih2, preferred_element_type=jnp.float32)
              + jnp.dot(h2, whh2, preferred_element_type=jnp.float32)
              + b2b)
        h2, c2 = gates(g2, c2, F)

        # "output" of the PyTorch module is lstm2's cell state; lane-dense
        # store: one masked vst into a single (8,128) tile per step.
        out_ref[:, t * F:(t + 1) * F] = c2


def _prep_params(params, n_features, hidden_dims):
    """Transpose / fuse / g-scale the LSTMCell parameters for the kernel."""
    F, H = n_features, hidden_dims

    def scale_g(w, n):
        # Scale the "g" gate block (columns 2n:3n) by 2 so the kernel can use
        # tanh(x) = 2*sigmoid(2x) - 1.  MUST stay in lockstep with gates().
        return w.at[..., 2 * n:3 * n].multiply(2.0)

    wih1 = scale_g(params["w_ih1"].T.astype(jnp.float32), H)            # (F, 4H)
    whh1 = scale_g(params["w_hh1"].T.astype(jnp.float32), H)            # (H, 4H)
    b1 = scale_g((params["b_ih1"] + params["b_hh1"]).astype(jnp.float32), H)
    wih2 = scale_g(params["w_ih2"].T.astype(jnp.float32), F)            # (H, 4F)
    whh2 = scale_g(params["w_hh2"].T.astype(jnp.float32), F)            # (F, 4F)
    b2 = scale_g((params["b_ih2"] + params["b_hh2"]).astype(jnp.float32), F)

    # Pack: hot whh1 first (rows 0:H), cold wih1 after (rows H:H+F).
    w1 = jnp.concatenate([whh1, wih1], axis=0)                          # (H+F, 4H)
    w2 = jnp.concatenate([wih2, whh2], axis=0)                          # (H+F, 4F)
    width = max(4 * H, 4 * F)
    b = jnp.zeros((2, width), jnp.float32)
    b = b.at[0, :4 * H].set(b1)
    b = b.at[1, :4 * F].set(b2)
    return w1, w2, b


def lstm_rnn_forward(data, params, *, n_features, hidden_dims, future=0):
    """Pallas implementation of LSTMRNN.forward(data, future)."""
    B = data.shape[0]
    T = data.shape[1] // n_features
    F, H = n_features, hidden_dims

    # (B, T*F) -> (T*B, F): time-major rows so the precomputed projection can
    # be sliced per step with a static, sublane-aligned slice.
    x = (data.reshape(B, T, F)
             .transpose(1, 0, 2)
             .reshape(T * B, F)
             .astype(jnp.float32))

    w1, w2, b = _prep_params(params, F, H)

    kernel = functools.partial(_lstm_rnn_kernel, n_steps=T, future=future,
                               hidden=H, feat=F, batch=B)
    vmem = pl.BlockSpec(memory_space=pltpu.MemorySpace.VMEM)

    # NOTE: bf16 MXU operands would shorten the per-step MXU latency further,
    # but error compounds through c1/c2 over T+future steps, so f32 is kept.
    out = pl.pallas_call(
        kernel,
        out_shape=jax.ShapeDtypeStruct((B, (T + future) * F), jnp.float32),
        in_specs=[vmem] * 4,
        out_specs=vmem,
        scratch_shapes=[pltpu.VMEM((T * B, 4 * H), jnp.float32)],
    )(x, w1, w2, b)

    out = out.reshape(B, T + future, F)      # free (row-major) reshape
    if F == 1:                               # .squeeze(2) only bites when F == 1
        out = out[:, :, 0]
    return out


def _reference_forward(data, params, *, n_features, hidden_dims, future=0):
    """Pure-JAX reference mirroring the PyTorch forward (PyTorch LSTMCell math)."""
    B = data.shape[0]
    T = data.shape[1] // n_features
    xs = data.reshape(B, T, n_features)

    def cell(x, h, c, w_ih, w_hh, b_ih, b_hh, H):
        g = x @ w_ih.T + b_ih + h @ w_hh.T + b_hh
        i = jax.nn.sigmoid(g[:, :H])
        f = jax.nn.sigmoid(g[:, H:2 * H])
        gg = jnp.tanh(g[:, 2 * H:3 * H])
        o = jax.nn.sigmoid(g[:, 3 * H:])
        c_new = f * c + i * gg
        return o * jnp.tanh(c_new), c_new

    h1 = jnp.zeros((B, hidden_dims), jnp.float32)
    c1 = jnp.zeros((B, hidden_dims), jnp.float32)
    h2 = jnp.zeros((B, n_features), jnp.float32)
    c2 = jnp.zeros((B, n_features), jnp.float32)
    outs = []
    for t in range(T):
        h1, c1 = cell(xs[:, t], h1, c1, params["w_ih1"], params["w_hh1"],
                      params["b_ih1"], params["b_hh1"], hidden_dims)
        h2, c2 = cell(c1, h2, c2, params["w_ih2"], params["w_hh2"],
                      params["b_ih2"], params["b_hh2"], n_features)
        outs.append(c2)
    for _ in range(future):
        h1, c1 = cell(c2, h1, c1, params["w_ih1"], params["w_hh1"],
                      params["b_ih1"], params["b_hh1"], hidden_dims)
        h2, c2 = cell(c1, h2, c2, params["w_ih2"], params["w_hh2"],
                      params["b_ih2"], params["b_hh2"], n_features)
        outs.append(c2)
    out = jnp.stack(outs, axis=1)
    if n_features == 1:
        out = out[:, :, 0]
    return out


def init_params(key, n_features, hidden_dims):
    """Deterministic init matching nn.LSTMCell parameter shapes (uniform +/- 1/sqrt(H))."""
    ks = jax.random.split(key, 8)
    s1 = 1.0 / math.sqrt(hidden_dims)
    s2 = 1.0 / math.sqrt(n_features)
    u = lambda k, shape, s: jax.random.uniform(k, shape, jnp.float32, -s, s)
    return {
        "w_ih1": u(ks[0], (4 * hidden_dims, n_features), s1),
        "w_hh1": u(ks[1], (4 * hidden_dims, hidden_dims), s1),
        "b_ih1": u(ks[2], (4 * hidden_dims,), s1),
        "b_hh1": u(ks[3], (4 * hidden_dims,), s1),
        "w_ih2": u(ks[4], (4 * n_features, hidden_dims), s2),
        "w_hh2": u(ks[5], (4 * n_features, n_features), s2),
        "b_ih2": u(ks[6], (4 * n_features,), s2),
        "b_hh2": u(ks[7], (4 * n_features,), s2),
    }


if __name__ == "__main__":
    n_features = 4
    hidden_dims = 32
    batch = 8
    time_samples = 8
    future = 2

    key = jax.random.PRNGKey(0)
    k_data, k_params = jax.random.split(key)
    data = jax.random.normal(k_data, (batch, time_samples * n_features), jnp.float32)
    params = init_params(k_params, n_features, hidden_dims)

    out = lstm_rnn_forward(data, params, n_features=n_features,
                           hidden_dims=hidden_dims, future=future)
    out = jax.block_until_ready(out)

    ref = _reference_forward(data, params, n_features=n_features,
                             hidden_dims=hidden_dims, future=future)
    assert out.shape == (batch, time_samples + future, n_features), out.shape
    assert jnp.allclose(out, ref, atol=1e-2, rtol=1e-2), "mismatch vs reference"

    print("KERNEL_OK")
</pallas_src>

<mosaic_0001>
module attributes {stable_mosaic.version = 11 : i64} {
  func.func @_lstm_rnn_kernel(%arg0: memref<64x4xf32, #tpu.memory_space<vmem>>, %arg1: memref<36x128xf32, #tpu.memory_space<vmem>>, %arg2: memref<36x16xf32, #tpu.memory_space<vmem>>, %arg3: memref<2x128xf32, #tpu.memory_space<vmem>>, %arg4: memref<8x40xf32, #tpu.memory_space<vmem>>, %arg5: memref<64x128xf32, #tpu.memory_space<vmem>>) attributes {dimension_semantics = [], scalar_prefetch = 0 : i64, scratch_operands = 1 : i64, tpu.core_type = #tpu.core_type<tc>} {
    %c0 = arith.constant 0 : index
    %c0_0 = arith.constant 0 : index
    %0 = vector.load %arg1[%c0, %c0_0] : memref<36x128xf32, #tpu.memory_space<vmem>>, vector<32x128xf32>
    %c0_1 = arith.constant 0 : index
    %c0_2 = arith.constant 0 : index
    %1 = vector.load %arg2[%c0_1, %c0_2] : memref<36x16xf32, #tpu.memory_space<vmem>>, vector<32x16xf32>
    %c32 = arith.constant 32 : index
    %c0_3 = arith.constant 0 : index
    %2 = vector.load %arg2[%c32, %c0_3] : memref<36x16xf32, #tpu.memory_space<vmem>>, vector<4x16xf32>
    %c1 = arith.constant 1 : index
    %c0_4 = arith.constant 0 : index
    %3 = vector.load %arg3[%c1, %c0_4] : memref<2x128xf32, #tpu.memory_space<vmem>>, vector<1x16xf32>
    %4 = vector.shape_cast %3 : vector<1x16xf32> to vector<1x16xf32>
    %5 = vector.broadcast %4 : vector<1x16xf32> to vector<8x16xf32>
    %c0_5 = arith.constant 0 : index
    %c0_6 = arith.constant 0 : index
    %6 = vector.load %arg3[%c0_5, %c0_6] : memref<2x128xf32, #tpu.memory_space<vmem>>, vector<1x128xf32>
    %7 = vector.shape_cast %6 : vector<1x128xf32> to vector<1x128xf32>
    %8 = vector.broadcast %7 : vector<1x128xf32> to vector<8x128xf32>
    %c0_7 = arith.constant 0 : index
    %c0_8 = arith.constant 0 : index
    %9 = vector.load %arg0[%c0_7, %c0_8] : memref<64x4xf32, #tpu.memory_space<vmem>>, vector<64x4xf32>
    %c32_9 = arith.constant 32 : index
    %c0_10 = arith.constant 0 : index
    %10 = vector.load %arg1[%c32_9, %c0_10] : memref<36x128xf32, #tpu.memory_space<vmem>>, vector<4x128xf32>
    %cst = arith.constant dense<0.000000e+00> : vector<64x128xf32>
    %11 = tpu.matmul %9, %10, %cst {dimension_numbers = #tpu.dot_dimension_numbers<[1], [0], [0], [1], [0, 0, 1, 1], [], []>} : vector<64x4xf32>, vector<4x128xf32>, vector<64x128xf32> -> vector<64x128xf32>
    %c0_11 = arith.constant 0 : index
    %c0_12 = arith.constant 0 : index
    %12 = vector.load %arg3[%c0_11, %c0_12] : memref<2x128xf32, #tpu.memory_space<vmem>>, vector<1x128xf32>
    %13 = vector.broadcast %12 : vector<1x128xf32> to vector<64x128xf32>
    %14 = arith.addf %11, %13 : vector<64x128xf32>
    %c0_13 = arith.constant 0 : index
    %c0_14 = arith.constant 0 : index
    %15 = vector.load %arg5[%c0_13, %c0_14] : memref<64x128xf32, #tpu.memory_space<vmem>>, vector<64x128xf32>
    tpu.vector_store %arg5[%c0_13, %c0_14], %14 {strides = array<i32>} : memref<64x128xf32, #tpu.memory_space<vmem>>, vector<64x128xf32>,
    %cst_15 = arith.constant 0.000000e+00 : f32
    %16 = vector.broadcast %cst_15 : f32 to vector<8x32xf32>
    %cst_16 = arith.constant 0.000000e+00 : f32
    %17 = vector.broadcast %cst_16 : f32 to vector<8x32xf32>
    %cst_17 = arith.constant 0.000000e+00 : f32
    %18 = vector.broadcast %cst_17 : f32 to vector<8x4xf32>
    %cst_18 = arith.constant 0.000000e+00 : f32
    %19 = vector.broadcast %cst_18 : f32 to vector<8x4xf32>
    %c0_19 = arith.constant 0 : index
    %c0_20 = arith.constant 0 : index
    %20 = vector.load %arg5[%c0_19, %c0_20] : memref<64x128xf32, #tpu.memory_space<vmem>>, vector<8x128xf32>
    %cst_21 = arith.constant dense<0.000000e+00> : vector<8x128xf32>
    %21 = tpu.matmul %16, %0, %cst_21 {dimension_numbers = #tpu.dot_dimension_numbers<[1], [0], [0], [1], [0, 0, 1, 1], [], []>} : vector<8x32xf32>, vector<32x128xf32>, vector<8x128xf32> -> vector<8x128xf32>
    %22 = arith.addf %20, %21 : vector<8x128xf32>
    %23 = arith.negf %22 : vector<8x128xf32>
    %24 = math.exp %23 : vector<8x128xf32>
    %cst_22 = arith.constant 1.000000e+00 : f32
    %25 = vector.broadcast %cst_22 : f32 to vector<8x128xf32>
    %26 = arith.addf %25, %24 : vector<8x128xf32>
    %27 = arith.divf %25, %26 : vector<8x128xf32>
    %28 = vector.extract_strided_slice %27 {offsets = [0, 0], sizes = [8, 32], strides = [1, 1]} : vector<8x128xf32> to vector<8x32xf32>
    %29 = vector.extract_strided_slice %27 {offsets = [0, 32], sizes = [8, 32], strides = [1, 1]} : vector<8x128xf32> to vector<8x32xf32>
    %30 = vector.extract_strided_slice %27 {offsets = [0, 64], sizes = [8, 32], strides = [1, 1]} : vector<8x128xf32> to vector<8x32xf32>
    %cst_23 = arith.constant 2.000000e+00 : f32
    %31 = vector.broadcast %cst_23 : f32 to vector<8x32xf32>
    %32 = arith.mulf %31, %30 : vector<8x32xf32>
    %cst_24 = arith.constant 1.000000e+00 : f32
    %33 = vector.broadcast %cst_24 : f32 to vector<8x32xf32>
    %34 = arith.subf %32, %33 : vector<8x32xf32>
    %35 = vector.extract_strided_slice %27 {offsets = [0, 96], sizes = [8, 32], strides = [1, 1]} : vector<8x128xf32> to vector<8x32xf32>
    %36 = arith.mulf %29, %17 : vector<8x32xf32>
    %37 = arith.mulf %28, %34 : vector<8x32xf32>
    %38 = arith.addf %36, %37 : vector<8x32xf32>
    %39 = math.tanh %38 : vector<8x32xf32>
    %40 = arith.mulf %35, %39 : vector<8x32xf32>
    %cst_25 = arith.constant dense<0.000000e+00> : vector<8x16xf32>
    %41 = tpu.matmul %38, %1, %cst_25 {dimension_numbers = #tpu.dot_dimension_numbers<[1], [0], [0], [1], [0, 0, 1, 1], [], []>} : vector<8x32xf32>, vector<32x16xf32>, vector<8x16xf32> -> vector<8x16xf32>
    %cst_26 = arith.constant dense<0.000000e+00> : vector<8x16xf32>
    %42 = tpu.matmul %18, %2, %cst_26 {dimension_numbers = #tpu.dot_dimension_numbers<[1], [0], [0], [1], [0, 0, 1, 1], [], []>} : vector<8x4xf32>, vector<4x16xf32>, vector<8x16xf32> -> vector<8x16xf32>
    %43 = arith.addf %41, %42 : vector<8x16xf32>
    %44 = arith.addf %43, %5 : vector<8x16xf32>
    %45 = arith.negf %44 : vector<8x16xf32>
    %46 = math.exp %45 : vector<8x16xf32>
    %cst_27 = arith.constant 1.000000e+00 : f32
    %47 = vector.broadcast %cst_27 : f32 to vector<8x16xf32>
    %48 = arith.addf %47, %46 : vector<8x16xf32>
    %49 = arith.divf %47, %48 : vector<8x16xf32>
    %50 = vector.extract_strided_slice %49 {offsets = [0, 0], sizes = [8, 4], strides = [1, 1]} : vector<8x16xf32> to vector<8x4xf32>
    %51 = vector.extract_strided_slice %49 {offsets = [0, 4], sizes = [8, 4], strides = [1, 1]} : vector<8x16xf32> to vector<8x4xf32>
    %52 = vector.extract_strided_slice %49 {offsets = [0, 8], sizes = [8, 4], strides = [1, 1]} : vector<8x16xf32> to vector<8x4xf32>
    %cst_28 = arith.constant 2.000000e+00 : f32
    %53 = vector.broadcast %cst_28 : f32 to vector<8x4xf32>
    %54 = arith.mulf %53, %52 : vector<8x4xf32>
    %cst_29 = arith.constant 1.000000e+00 : f32
    %55 = vector.broadcast %cst_29 : f32 to vector<8x4xf32>
    %56 = arith.subf %54, %55 : vector<8x4xf32>
    %57 = vector.extract_strided_slice %49 {offsets = [0, 12], sizes = [8, 4], strides = [1, 1]} : vector<8x16xf32> to vector<8x4xf32>
    %58 = arith.mulf %51, %19 : vector<8x4xf32>
    %59 = arith.mulf %50, %56 : vector<8x4xf32>
    %60 = arith.addf %58, %59 : vector<8x4xf32>
    %61 = math.tanh %60 : vector<8x4xf32>
    %62 = arith.mulf %57, %61 : vector<8x4xf32>
    %c0_30 = arith.constant 0 : index
    %c0_31 = arith.constant 0 : index
    %63 = vector.load %arg4[%c0_30, %c0_31] : memref<8x40xf32, #tpu.memory_space<vmem>>, vector<8x4xf32>
    tpu.vector_store %arg4[%c0_30, %c0_31], %60 {strides = array<i32>} : memref<8x40xf32, #tpu.memory_space<vmem>>, vector<8x4xf32>,
    %c8 = arith.constant 8 : index
    %c0_32 = arith.constant 0 : index
    %64 = vector.load %arg5[%c8, %c0_32] : memref<64x128xf32, #tpu.memory_space<vmem>>, vector<8x128xf32>
    %cst_33 = arith.constant dense<0.000000e+00> : vector<8x128xf32>
    %65 = tpu.matmul %40, %0, %cst_33 {dimension_numbers = #tpu.dot_dimension_numbers<[1], [0], [0], [1], [0, 0, 1, 1], [], []>} : vector<8x32xf32>, vector<32x128xf32>, vector<8x128xf32> -> vector<8x128xf32>
    %66 = arith.addf %64, %65 : vector<8x128xf32>
    %67 = arith.negf %66 : vector<8x128xf32>
    %68 = math.exp %67 : vector<8x128xf32>
    %cst_34 = arith.constant 1.000000e+00 : f32
    %69 = vector.broadcast %cst_34 : f32 to vector<8x128xf32>
    %70 = arith.addf %69, %68 : vector<8x128xf32>
    %71 = arith.divf %69, %70 : vector<8x128xf32>
    %72 = vector.extract_strided_slice %71 {offsets = [0, 0], sizes = [8, 32], strides = [1, 1]} : vector<8x128xf32> to vector<8x32xf32>
    %73 = vector.extract_strided_slice %71 {offsets = [0, 32], sizes = [8, 32], strides = [1, 1]} : vector<8x128xf32> to vector<8x32xf32>
    %74 = vector.extract_strided_slice %71 {offsets = [0, 64], sizes = [8, 32], strides = [1, 1]} : vector<8x128xf32> to vector<8x32xf32>
    %cst_35 = arith.constant 2.000000e+00 : f32
    %75 = vector.broadcast %cst_35 : f32 to vector<8x32xf32>
    %76 = arith.mulf %75, %74 : vector<8x32xf32>
    %cst_36 = arith.constant 1.000000e+00 : f32
    %77 = vector.broadcast %cst_36 : f32 to vector<8x32xf32>
    %78 = arith.subf %76, %77 : vector<8x32xf32>
    %79 = vector.extract_strided_slice %71 {offsets = [0, 96], sizes = [8, 32], strides = [1, 1]} : vector<8x128xf32> to vector<8x32xf32>
    %80 = arith.mulf %73, %38 : vector<8x32xf32>
    %81 = arith.mulf %72, %78 : vector<8x32xf32>
    %82 = arith.addf %80, %81 : vector<8x32xf32>
    %83 = math.tanh %82 : vector<8x32xf32>
    %84 = arith.mulf %79, %83 : vector<8x32xf32>
    %cst_37 = arith.constant dense<0.000000e+00> : vector<8x16xf32>
    %85 = tpu.matmul %82, %1, %cst_37 {dimension_numbers = #tpu.dot_dimension_numbers<[1], [0], [0], [1], [0, 0, 1, 1], [], []>} : vector<8x32xf32>, vector<32x16xf32>, vector<8x16xf32> -> vector<8x16xf32>
    %cst_38 = arith.constant dense<0.000000e+00> : vector<8x16xf32>
    %86 = tpu.matmul %62, %2, %cst_38 {dimension_numbers = #tpu.dot_dimension_numbers<[1], [0], [0], [1], [0, 0, 1, 1], [], []>} : vector<8x4xf32>, vector<4x16xf32>, vector<8x16xf32> -> vector<8x16xf32>
    %87 = arith.addf %85, %86 : vector<8x16xf32>
    %88 = arith.addf %87, %5 : vector<8x16xf32>
    %89 = arith.negf %88 : vector<8x16xf32>
    %90 = math.exp %89 : vector<8x16xf32>
    %cst_39 = arith.constant 1.000000e+00 : f32
    %91 = vector.broadcast %cst_39 : f32 to vector<8x16xf32>
    %92 = arith.addf %91, %90 : vector<8x16xf32>
    %93 = arith.divf %91, %92 : vector<8x16xf32>
    %94 = vector.extract_strided_slice %93 {offsets = [0, 0], sizes = [8, 4], strides = [1, 1]} : vector<8x16xf32> to vector<8x4xf32>
    %95 = vector.extract_strided_slice %93 {offsets = [0, 4], sizes = [8, 4], strides = [1, 1]} : vector<8x16xf32> to vector<8x4xf32>
    %96 = vector.extract_strided_slice %93 {offsets = [0, 8], sizes = [8, 4], strides = [1, 1]} : vector<8x16xf32> to vector<8x4xf32>
    %cst_40 = arith.constant 2.000000e+00 : f32
    %97 = vector.broadcast %cst_40 : f32 to vector<8x4xf32>
    %98 = arith.mulf %97, %96 : vector<8x4xf32>
    %cst_41 = arith.constant 1.000000e+00 : f32
    %99 = vector.broadcast %cst_41 : f32 to vector<8x4xf32>
    %100 = arith.subf %98, %99 : vector<8x4xf32>
    %101 = vector.extract_strided_slice %93 {offsets = [0, 12], sizes = [8, 4], strides = [1, 1]} : vector<8x16xf32> to vector<8x4xf32>
    %102 = arith.mulf %95, %60 : vector<8x4xf32>
    %103 = arith.mulf %94, %100 : vector<8x4xf32>
    %104 = arith.addf %102, %103 : vector<8x4xf32>
    %105 = math.tanh %104 : vector<8x4xf32>
    %106 = arith.mulf %101, %105 : vector<8x4xf32>
    %c0_42 = arith.constant 0 : index
    %c4 = arith.constant 4 : index
    %107 = vector.load %arg4[%c0_42, %c4] : memref<8x40xf32, #tpu.memory_space<vmem>>, vector<8x4xf32>
    tpu.vector_store %arg4[%c0_42, %c4], %104 {strides = array<i32>} : memref<8x40xf32, #tpu.memory_space<vmem>>, vector<8x4xf32>,
    %c16 = arith.constant 16 : index
    %c0_43 = arith.constant 0 : index
    %108 = vector.load %arg5[%c16, %c0_43] : memref<64x128xf32, #tpu.memory_space<vmem>>, vector<8x128xf32>
    %cst_44 = arith.constant dense<0.000000e+00> : vector<8x128xf32>
    %109 = tpu.matmul %84, %0, %cst_44 {dimension_numbers = #tpu.dot_dimension_numbers<[1], [0], [0], [1], [0, 0, 1, 1], [], []>} : vector<8x32xf32>, vector<32x128xf32>, vector<8x128xf32> -> vector<8x128xf32>
    %110 = arith.addf %108, %109 : vector<8x128xf32>
    %111 = arith.negf %110 : vector<8x128xf32>
    %112 = math.exp %111 : vector<8x128xf32>
    %cst_45 = arith.constant 1.000000e+00 : f32
    %113 = vector.broadcast %cst_45 : f32 to vector<8x128xf32>
    %114 = arith.addf %113, %112 : vector<8x128xf32>
    %115 = arith.divf %113, %114 : vector<8x128xf32>
    %116 = vector.extract_strided_slice %115 {offsets = [0, 0], sizes = [8, 32], strides = [1, 1]} : vector<8x128xf32> to vector<8x32xf32>
    %117 = vector.extract_strided_slice %115 {offsets = [0, 32], sizes = [8, 32], strides = [1, 1]} : vector<8x128xf32> to vector<8x32xf32>
    %118 = vector.extract_strided_slice %115 {offsets = [0, 64], sizes = [8, 32], strides = [1, 1]} : vector<8x128xf32> to vector<8x32xf32>
    %cst_46 = arith.constant 2.000000e+00 : f32
    %119 = vector.broadcast %cst_46 : f32 to vector<8x32xf32>
    %120 = arith.mulf %119, %118 : vector<8x32xf32>
    %cst_47 = arith.constant 1.000000e+00 : f32
    %121 = vector.broadcast %cst_47 : f32 to vector<8x32xf32>
    %122 = arith.subf %120, %121 : vector<8x32xf32>
    %123 = vector.extract_strided_slice %115 {offsets = [0, 96], sizes = [8, 32], strides = [1, 1]} : vector<8x128xf32> to vector<8x32xf32>
    %124 = arith.mulf %117, %82 : vector<8x32xf32>
    %125 = arith.mulf %116, %122 : vector<8x32xf32>
    %126 = arith.addf %124, %125 : vector<8x32xf32>
    %127 = math.tanh %126 : vector<8x32xf32>
    %128 = arith.mulf %123, %127 : vector<8x32xf32>
    %cst_48 = arith.constant dense<0.000000e+00> : vector<8x16xf32>
    %129 = tpu.matmul %126, %1, %cst_48 {dimension_numbers = #tpu.dot_dimension_numbers<[1], [0], [0], [1], [0, 0, 1, 1], [], []>} : vector<8x32xf32>, vector<32x16xf32>, vector<8x16xf32> -> vector<8x16xf32>
    %cst_49 = arith.constant dense<0.000000e+00> : vector<8x16xf32>
    %130 = tpu.matmul %106, %2, %cst_49 {dimension_numbers = #tpu.dot_dimension_numbers<[1], [0], [0], [1], [0, 0, 1, 1], [], []>} : vector<8x4xf32>, vector<4x16xf32>, vector<8x16xf32> -> vector<8x16xf32>
    %131 = arith.addf %129, %130 : vector<8x16xf32>
    %132 = arith.addf %131, %5 : vector<8x16xf32>
    %133 = arith.negf %132 : vector<8x16xf32>
    %134 = math.exp %133 : vector<8x16xf32>
    %cst_50 = arith.constant 1.000000e+00 : f32
    %135 = vector.broadcast %cst_50 : f32 to vector<8x16xf32>
    %136 = arith.addf %135, %134 : vector<8x16xf32>
    %137 = arith.divf %135, %136 : vector<8x16xf32>
    %138 = vector.extract_strided_slice %137 {offsets = [0, 0], sizes = [8, 4], strides = [1, 1]} : vector<8x16xf32> to vector<8x4xf32>
    %139 = vector.extract_strided_slice %137 {offsets = [0, 4], sizes = [8, 4], strides = [1, 1]} : vector<8x16xf32> to vector<8x4xf32>
    %140 = vector.extract_strided_slice %137 {offsets = [0, 8], sizes = [8, 4], strides = [1, 1]} : vector<8x16xf32> to vector<8x4xf32>
    %cst_51 = arith.constant 2.000000e+00 : f32
    %141 = vector.broadcast %cst_51 : f32 to vector<8x4xf32>
    %142 = arith.mulf %141, %140 : vector<8x4xf32>
    %cst_52 = arith.constant 1.000000e+00 : f32
    %143 = vector.broadcast %cst_52 : f32 to vector<8x4xf32>
    %144 = arith.subf %142, %143 : vector<8x4xf32>
    %145 = vector.extract_strided_slice %137 {offsets = [0, 12], sizes = [8, 4], strides = [1, 1]} : vector<8x16xf32> to vector<8x4xf32>
    %146 = arith.mulf %139, %104 : vector<8x4xf32>
    %147 = arith.mulf %138, %144 : vector<8x4xf32>
    %148 = arith.addf %146, %147 : vector<8x4xf32>
    %149 = math.tanh %148 : vector<8x4xf32>
    %150 = arith.mulf %145, %149 : vector<8x4xf32>
    %c0_53 = arith.constant 0 : index
    %c8_54 = arith.constant 8 : index
    %151 = vector.load %arg4[%c0_53, %c8_54] : memref<8x40xf32, #tpu.memory_space<vmem>>, vector<8x4xf32>
    tpu.vector_store %arg4[%c0_53, %c8_54], %148 {strides = array<i32>} : memref<8x40xf32, #tpu.memory_space<vmem>>, vector<8x4xf32>,
    %c24 = arith.constant 24 : index
    %c0_55 = arith.constant 0 : index
    %152 = vector.load %arg5[%c24, %c0_55] : memref<64x128xf32, #tpu.memory_space<vmem>>, vector<8x128xf32>
    %cst_56 = arith.constant dense<0.000000e+00> : vector<8x128xf32>
    %153 = tpu.matmul %128, %0, %cst_56 {dimension_numbers = #tpu.dot_dimension_numbers<[1], [0], [0], [1], [0, 0, 1, 1], [], []>} : vector<8x32xf32>, vector<32x128xf32>, vector<8x128xf32> -> vector<8x128xf32>
    %154 = arith.addf %152, %153 : vector<8x128xf32>
    %155 = arith.negf %154 : vector<8x128xf32>
    %156 = math.exp %155 : vector<8x128xf32>
    %cst_57 = arith.constant 1.000000e+00 : f32
    %157 = vector.broadcast %cst_57 : f32 to vector<8x128xf32>
    %158 = arith.addf %157, %156 : vector<8x128xf32>
    %159 = arith.divf %157, %158 : vector<8x128xf32>
    %160 = vector.extract_strided_slice %159 {offsets = [0, 0], sizes = [8, 32], strides = [1, 1]} : vector<8x128xf32> to vector<8x32xf32>
    %161 = vector.extract_strided_slice %159 {offsets = [0, 32], sizes = [8, 32], strides = [1, 1]} : vector<8x128xf32> to vector<8x32xf32>
    %162 = vector.extract_strided_slice %159 {offsets = [0, 64], sizes = [8, 32], strides = [1, 1]} : vector<8x128xf32> to vector<8x32xf32>
    %cst_58 = arith.constant 2.000000e+00 : f32
    %163 = vector.broadcast %cst_58 : f32 to vector<8x32xf32>
    %164 = arith.mulf %163, %162 : vector<8x32xf32>
    %cst_59 = arith.constant 1.000000e+00 : f32
    %165 = vector.broadcast %cst_59 : f32 to vector<8x32xf32>
    %166 = arith.subf %164, %165 : vector<8x32xf32>
    %167 = vector.extract_strided_slice %159 {offsets = [0, 96], sizes = [8, 32], strides = [1, 1]} : vector<8x128xf32> to vector<8x32xf32>
    %168 = arith.mulf %161, %126 : vector<8x32xf32>
    %169 = arith.mulf %160, %166 : vector<8x32xf32>
    %170 = arith.addf %168, %169 : vector<8x32xf32>
    %171 = math.tanh %170 : vector<8x32xf32>
    %172 = arith.mulf %167, %171 : vector<8x32xf32>
    %cst_60 = arith.constant dense<0.000000e+00> : vector<8x16xf32>
    %173 = tpu.matmul %170, %1, %cst_60 {dimension_numbers = #tpu.dot_dimension_numbers<[1], [0], [0], [1], [0, 0, 1, 1], [], []>} : vector<8x32xf32>, vector<32x16xf32>, vector<8x16xf32> -> vector<8x16xf32>
    %cst_61 = arith.constant dense<0.000000e+00> : vector<8x16xf32>
    %174 = tpu.matmul %150, %2, %cst_61 {dimension_numbers = #tpu.dot_dimension_numbers<[1], [0], [0], [1], [0, 0, 1, 1], [], []>} : vector<8x4xf32>, vector<4x16xf32>, vector<8x16xf32> -> vector<8x16xf32>
    %175 = arith.addf %173, %174 : vector<8x16xf32>
    %176 = arith.addf %175, %5 : vector<8x16xf32>
    %177 = arith.negf %176 : vector<8x16xf32>
    %178 = math.exp %177 : vector<8x16xf32>
    %cst_62 = arith.constant 1.000000e+00 : f32
    %179 = vector.broadcast %cst_62 : f32 to vector<8x16xf32>
    %180 = arith.addf %179, %178 : vector<8x16xf32>
    %181 = arith.divf %179, %180 : vector<8x16xf32>
    %182 = vector.extract_strided_slice %181 {offsets = [0, 0], sizes = [8, 4], strides = [1, 1]} : vector<8x16xf32> to vector<8x4xf32>
    %183 = vector.extract_strided_slice %181 {offsets = [0, 4], sizes = [8, 4], strides = [1, 1]} : vector<8x16xf32> to vector<8x4xf32>
    %184 = vector.extract_strided_slice %181 {offsets = [0, 8], sizes = [8, 4], strides = [1, 1]} : vector<8x16xf32> to vector<8x4xf32>
    %cst_63 = arith.constant 2.000000e+00 : f32
    %185 = vector.broadcast %cst_63 : f32 to vector<8x4xf32>
    %186 = arith.mulf %185, %184 : vector<8x4xf32>
    %cst_64 = arith.constant 1.000000e+00 : f32
    %187 = vector.broadcast %cst_64 : f32 to vector<8x4xf32>
    %188 = arith.subf %186, %187 : vector<8x4xf32>
    %189 = vector.extract_strided_slice %181 {offsets = [0, 12], sizes = [8, 4], strides = [1, 1]} : vector<8x16xf32> to vector<8x4xf32>
    %190 = arith.mulf %183, %148 : vector<8x4xf32>
    %191 = arith.mulf %182, %188 : vector<8x4xf32>
    %192 = arith.addf %190, %191 : vector<8x4xf32>
    %193 = math.tanh %192 : vector<8x4xf32>
    %194 = arith.mulf %189, %193 : vector<8x4xf32>
    %c0_65 = arith.constant 0 : index
    %c12 = arith.constant 12 : index
    %195 = vector.load %arg4[%c0_65, %c12] : memref<8x40xf32, #tpu.memory_space<vmem>>, vector<8x4xf32>
    tpu.vector_store %arg4[%c0_65, %c12], %192 {strides = array<i32>} : memref<8x40xf32, #tpu.memory_space<vmem>>, vector<8x4xf32>,
    %c32_66 = arith.constant 32 : index
    %c0_67 = arith.constant 0 : index
    %196 = vector.load %arg5[%c32_66, %c0_67] : memref<64x128xf32, #tpu.memory_space<vmem>>, vector<8x128xf32>
    %cst_68 = arith.constant dense<0.000000e+00> : vector<8x128xf32>
    %197 = tpu.matmul %172, %0, %cst_68 {dimension_numbers = #tpu.dot_dimension_numbers<[1], [0], [0], [1], [0, 0, 1, 1], [], []>} : vector<8x32xf32>, vector<32x128xf32>, vector<8x128xf32> -> vector<8x128xf32>
    %198 = arith.addf %196, %197 : vector<8x128xf32>
    %199 = arith.negf %198 : vector<8x128xf32>
    %200 = math.exp %199 : vector<8x128xf32>
    %cst_69 = arith.constant 1.000000e+00 : f32
    %201 = vector.broadcast %cst_69 : f32 to vector<8x128xf32>
    %202 = arith.addf %201, %200 : vector<8x128xf32>
    %203 = arith.divf %201, %202 : vector<8x128xf32>
    %204 = vector.extract_strided_slice %203 {offsets = [0, 0], sizes = [8, 32], strides = [1, 1]} : vector<8x128xf32> to vector<8x32xf32>
    %205 = vector.extract_strided_slice %203 {offsets = [0, 32], sizes = [8, 32], strides = [1, 1]} : vector<8x128xf32> to vector<8x32xf32>
    %206 = vector.extract_strided_slice %203 {offsets = [0, 64], sizes = [8, 32], strides = [1, 1]} : vector<8x128xf32> to vector<8x32xf32>
    %cst_70 = arith.constant 2.000000e+00 : f32
    %207 = vector.broadcast %cst_70 : f32 to vector<8x32xf32>
    %208 = arith.mulf %207, %206 : vector<8x32xf32>
    %cst_71 = arith.constant 1.000000e+00 : f32
    %209 = vector.broadcast %cst_71 : f32 to vector<8x32xf32>
    %210 = arith.subf %208, %209 : vector<8x32xf32>
    %211 = vector.extract_strided_slice %203 {offsets = [0, 96], sizes = [8, 32], strides = [1, 1]} : vector<8x128xf32> to vector<8x32xf32>
    %212 = arith.mulf %205, %170 : vector<8x32xf32>
    %213 = arith.mulf %204, %210 : vector<8x32xf32>
    %214 = arith.addf %212, %213 : vector<8x32xf32>
    %215 = math.tanh %214 : vector<8x32xf32>
    %216 = arith.mulf %211, %215 : vector<8x32xf32>
    %cst_72 = arith.constant dense<0.000000e+00> : vector<8x16xf32>
    %217 = tpu.matmul %214, %1, %cst_72 {dimension_numbers = #tpu.dot_dimension_numbers<[1], [0], [0], [1], [0, 0, 1, 1], [], []>} : vector<8x32xf32>, vector<32x16xf32>, vector<8x16xf32> -> vector<8x16xf32>
    %cst_73 = arith.constant dense<0.000000e+00> : vector<8x16xf32>
    %218 = tpu.matmul %194, %2, %cst_73 {dimension_numbers = #tpu.dot_dimension_numbers<[1], [0], [0], [1], [0, 0, 1, 1], [], []>} : vector<8x4xf32>, vector<4x16xf32>, vector<8x16xf32> -> vector<8x16xf32>
    %219 = arith.addf %217, %218 : vector<8x16xf32>
    %220 = arith.addf %219, %5 : vector<8x16xf32>
    %221 = arith.negf %220 : vector<8x16xf32>
    %222 = math.exp %221 : vector<8x16xf32>
    %cst_74 = arith.constant 1.000000e+00 : f32
    %223 = vector.broadcast %cst_74 : f32 to vector<8x16xf32>
    %224 = arith.addf %223, %222 : vector<8x16xf32>
    %225 = arith.divf %223, %224 : vector<8x16xf32>
    %226 = vector.extract_strided_slice %225 {offsets = [0, 0], sizes = [8, 4], strides = [1, 1]} : vector<8x16xf32> to vector<8x4xf32>
    %227 = vector.extract_strided_slice %225 {offsets = [0, 4], sizes = [8, 4], strides = [1, 1]} : vector<8x16xf32> to vector<8x4xf32>
    %228 = vector.extract_strided_slice %225 {offsets = [0, 8], sizes = [8, 4], strides = [1, 1]} : vector<8x16xf32> to vector<8x4xf32>
    %cst_75 = arith.constant 2.000000e+00 : f32
    %229 = vector.broadcast %cst_75 : f32 to vector<8x4xf32>
    %230 = arith.mulf %229, %228 : vector<8x4xf32>
    %cst_76 = arith.constant 1.000000e+00 : f32
    %231 = vector.broadcast %cst_76 : f32 to vector<8x4xf32>
    %232 = arith.subf %230, %231 : vector<8x4xf32>
    %233 = vector.extract_strided_slice %225 {offsets = [0, 12], sizes = [8, 4], strides = [1, 1]} : vector<8x16xf32> to vector<8x4xf32>
    %234 = arith.mulf %227, %192 : vector<8x4xf32>
    %235 = arith.mulf %226, %232 : vector<8x4xf32>
    %236 = arith.addf %234, %235 : vector<8x4xf32>
    %237 = math.tanh %236 : vector<8x4xf32>
    %238 = arith.mulf %233, %237 : vector<8x4xf32>
    %c0_77 = arith.constant 0 : index
    %c16_78 = arith.constant 16 : index
    %239 = vector.load %arg4[%c0_77, %c16_78] : memref<8x40xf32, #tpu.memory_space<vmem>>, vector<8x4xf32>
    tpu.vector_store %arg4[%c0_77, %c16_78], %236 {strides = array<i32>} : memref<8x40xf32, #tpu.memory_space<vmem>>, vector<8x4xf32>,
    %c40 = arith.constant 40 : index
    %c0_79 = arith.constant 0 : index
    %240 = vector.load %arg5[%c40, %c0_79] : memref<64x128xf32, #tpu.memory_space<vmem>>, vector<8x128xf32>
    %cst_80 = arith.constant dense<0.000000e+00> : vector<8x128xf32>
    %241 = tpu.matmul %216, %0, %cst_80 {dimension_numbers = #tpu.dot_dimension_numbers<[1], [0], [0], [1], [0, 0, 1, 1], [], []>} : vector<8x32xf32>, vector<32x128xf32>, vector<8x128xf32> -> vector<8x128xf32>
    %242 = arith.addf %240, %241 : vector<8x128xf32>
    %243 = arith.negf %242 : vector<8x128xf32>
    %244 = math.exp %243 : vector<8x128xf32>
    %cst_81 = arith.constant 1.000000e+00 : f32
    %245 = vector.broadcast %cst_81 : f32 to vector<8x128xf32>
    %246 = arith.addf %245, %244 : vector<8x128xf32>
    %247 = arith.divf %245, %246 : vector<8x128xf32>
    %248 = vector.extract_strided_slice %247 {offsets = [0, 0], sizes = [8, 32], strides = [1, 1]} : vector<8x128xf32> to vector<8x32xf32>
    %249 = vector.extract_strided_slice %247 {offsets = [0, 32], sizes = [8, 32], strides = [1, 1]} : vector<8x128xf32> to vector<8x32xf32>
    %250 = vector.extract_strided_slice %247 {offsets = [0, 64], sizes = [8, 32], strides = [1, 1]} : vector<8x128xf32> to vector<8x32xf32>
    %cst_82 = arith.constant 2.000000e+00 : f32
    %251 = vector.broadcast %cst_82 : f32 to vector<8x32xf32>
    %252 = arith.mulf %251, %250 : vector<8x32xf32>
    %cst_83 = arith.constant 1.000000e+00 : f32
    %253 = vector.broadcast %cst_83 : f32 to vector<8x32xf32>
    %254 = arith.subf %252, %253 : vector<8x32xf32>
    %255 = vector.extract_strided_slice %247 {offsets = [0, 96], sizes = [8, 32], strides = [1, 1]} : vector<8x128xf32> to vector<8x32xf32>
    %256 = arith.mulf %249, %214 : vector<8x32xf32>
    %257 = arith.mulf %248, %254 : vector<8x32xf32>
    %258 = arith.addf %256, %257 : vector<8x32xf32>
    %259 = math.tanh %258 : vector<8x32xf32>
    %260 = arith.mulf %255, %259 : vector<8x32xf32>
    %cst_84 = arith.constant dense<0.000000e+00> : vector<8x16xf32>
    %261 = tpu.matmul %258, %1, %cst_84 {dimension_numbers = #tpu.dot_dimension_numbers<[1], [0], [0], [1], [0, 0, 1, 1], [], []>} : vector<8x32xf32>, vector<32x16xf32>, vector<8x16xf32> -> vector<8x16xf32>
    %cst_85 = arith.constant dense<0.000000e+00> : vector<8x16xf32>
    %262 = tpu.matmul %238, %2, %cst_85 {dimension_numbers = #tpu.dot_dimension_numbers<[1], [0], [0], [1], [0, 0, 1, 1], [], []>} : vector<8x4xf32>, vector<4x16xf32>, vector<8x16xf32> -> vector<8x16xf32>
    %263 = arith.addf %261, %262 : vector<8x16xf32>
    %264 = arith.addf %263, %5 : vector<8x16xf32>
    %265 = arith.negf %264 : vector<8x16xf32>
    %266 = math.exp %265 : vector<8x16xf32>
    %cst_86 = arith.constant 1.000000e+00 : f32
    %267 = vector.broadcast %cst_86 : f32 to vector<8x16xf32>
    %268 = arith.addf %267, %266 : vector<8x16xf32>
    %269 = arith.divf %267, %268 : vector<8x16xf32>
    %270 = vector.extract_strided_slice %269 {offsets = [0, 0], sizes = [8, 4], strides = [1, 1]} : vector<8x16xf32> to vector<8x4xf32>
    %271 = vector.extract_strided_slice %269 {offsets = [0, 4], sizes = [8, 4], strides = [1, 1]} : vector<8x16xf32> to vector<8x4xf32>
    %272 = vector.extract_strided_slice %269 {offsets = [0, 8], sizes = [8, 4], strides = [1, 1]} : vector<8x16xf32> to vector<8x4xf32>
    %cst_87 = arith.constant 2.000000e+00 : f32
    %273 = vector.broadcast %cst_87 : f32 to vector<8x4xf32>
    %274 = arith.mulf %273, %272 : vector<8x4xf32>
    %cst_88 = arith.constant 1.000000e+00 : f32
    %275 = vector.broadcast %cst_88 : f32 to vector<8x4xf32>
    %276 = arith.subf %274, %275 : vector<8x4xf32>
    %277 = vector.extract_strided_slice %269 {offsets = [0, 12], sizes = [8, 4], strides = [1, 1]} : vector<8x16xf32> to vector<8x4xf32>
    %278 = arith.mulf %271, %236 : vector<8x4xf32>
    %279 = arith.mulf %270, %276 : vector<8x4xf32>
    %280 = arith.addf %278, %279 : vector<8x4xf32>
    %281 = math.tanh %280 : vector<8x4xf32>
    %282 = arith.mulf %277, %281 : vector<8x4xf32>
    %c0_89 = arith.constant 0 : index
    %c20 = arith.constant 20 : index
    %283 = vector.load %arg4[%c0_89, %c20] : memref<8x40xf32, #tpu.memory_space<vmem>>, vector<8x4xf32>
    tpu.vector_store %arg4[%c0_89, %c20], %280 {strides = array<i32>} : memref<8x40xf32, #tpu.memory_space<vmem>>, vector<8x4xf32>,
    %c48 = arith.constant 48 : index
    %c0_90 = arith.constant 0 : index
    %284 = vector.load %arg5[%c48, %c0_90] : memref<64x128xf32, #tpu.memory_space<vmem>>, vector<8x128xf32>
    %cst_91 = arith.constant dense<0.000000e+00> : vector<8x128xf32>
    %285 = tpu.matmul %260, %0, %cst_91 {dimension_numbers = #tpu.dot_dimension_numbers<[1], [0], [0], [1], [0, 0, 1, 1], [], []>} : vector<8x32xf32>, vector<32x128xf32>, vector<8x128xf32> -> vector<8x128xf32>
    %286 = arith.addf %284, %285 : vector<8x128xf32>
    %287 = arith.negf %286 : vector<8x128xf32>
    %288 = math.exp %287 : vector<8x128xf32>
    %cst_92 = arith.constant 1.000000e+00 : f32
    %289 = vector.broadcast %cst_92 : f32 to vector<8x128xf32>
    %290 = arith.addf %289, %288 : vector<8x128xf32>
    %291 = arith.divf %289, %290 : vector<8x128xf32>
    %292 = vector.extract_strided_slice %291 {offsets = [0, 0], sizes = [8, 32], strides = [1, 1]} : vector<8x128xf32> to vector<8x32xf32>
    %293 = vector.extract_strided_slice %291 {offsets = [0, 32], sizes = [8, 32], strides = [1, 1]} : vector<8x128xf32> to vector<8x32xf32>
    %294 = vector.extract_strided_slice %291 {offsets = [0, 64], sizes = [8, 32], strides = [1, 1]} : vector<8x128xf32> to vector<8x32xf32>
    %cst_93 = arith.constant 2.000000e+00 : f32
    %295 = vector.broadcast %cst_93 : f32 to vector<8x32xf32>
    %296 = arith.mulf %295, %294 : vector<8x32xf32>
    %cst_94 = arith.constant 1.000000e+00 : f32
    %297 = vector.broadcast %cst_94 : f32 to vector<8x32xf32>
    %298 = arith.subf %296, %297 : vector<8x32xf32>
    %299 = vector.extract_strided_slice %291 {offsets = [0, 96], sizes = [8, 32], strides = [1, 1]} : vector<8x128xf32> to vector<8x32xf32>
    %300 = arith.mulf %293, %258 : vector<8x32xf32>
    %301 = arith.mulf %292, %298 : vector<8x32xf32>
    %302 = arith.addf %300, %301 : vector<8x32xf32>
    %303 = math.tanh %302 : vector<8x32xf32>
    %304 = arith.mulf %299, %303 : vector<8x32xf32>
    %cst_95 = arith.constant dense<0.000000e+00> : vector<8x16xf32>
    %305 = tpu.matmul %302, %1, %cst_95 {dimension_numbers = #tpu.dot_dimension_numbers<[1], [0], [0], [1], [0, 0, 1, 1], [], []>} : vector<8x32xf32>, vector<32x16xf32>, vector<8x16xf32> -> vector<8x16xf32>
    %cst_96 = arith.constant dense<0.000000e+00> : vector<8x16xf32>
    %306 = tpu.matmul %282, %2, %cst_96 {dimension_numbers = #tpu.dot_dimension_numbers<[1], [0], [0], [1], [0, 0, 1, 1], [], []>} : vector<8x4xf32>, vector<4x16xf32>, vector<8x16xf32> -> vector<8x16xf32>
    %307 = arith.addf %305, %306 : vector<8x16xf32>
    %308 = arith.addf %307, %5 : vector<8x16xf32>
    %309 = arith.negf %308 : vector<8x16xf32>
    %310 = math.exp %309 : vector<8x16xf32>
    %cst_97 = arith.constant 1.000000e+00 : f32
    %311 = vector.broadcast %cst_97 : f32 to vector<8x16xf32>
    %312 = arith.addf %311, %310 : vector<8x16xf32>
    %313 = arith.divf %311, %312 : vector<8x16xf32>
    %314 = vector.extract_strided_slice %313 {offsets = [0, 0], sizes = [8, 4], strides = [1, 1]} : vector<8x16xf32> to vector<8x4xf32>
    %315 = vector.extract_strided_slice %313 {offsets = [0, 4], sizes = [8, 4], strides = [1, 1]} : vector<8x16xf32> to vector<8x4xf32>
    %316 = vector.extract_strided_slice %313 {offsets = [0, 8], sizes = [8, 4], strides = [1, 1]} : vector<8x16xf32> to vector<8x4xf32>
    %cst_98 = arith.constant 2.000000e+00 : f32
    %317 = vector.broadcast %cst_98 : f32 to vector<8x4xf32>
    %318 = arith.mulf %317, %316 : vector<8x4xf32>
    %cst_99 = arith.constant 1.000000e+00 : f32
    %319 = vector.broadcast %cst_99 : f32 to vector<8x4xf32>
    %320 = arith.subf %318, %319 : vector<8x4xf32>
    %321 = vector.extract_strided_slice %313 {offsets = [0, 12], sizes = [8, 4], strides = [1, 1]} : vector<8x16xf32> to vector<8x4xf32>
    %322 = arith.mulf %315, %280 : vector<8x4xf32>
    %323 = arith.mulf %314, %320 : vector<8x4xf32>
    %324 = arith.addf %322, %323 : vector<8x4xf32>
    %325 = math.tanh %324 : vector<8x4xf32>
    %326 = arith.mulf %321, %325 : vector<8x4xf32>
    %c0_100 = arith.constant 0 : index
    %c24_101 = arith.constant 24 : index
    %327 = vector.load %arg4[%c0_100, %c24_101] : memref<8x40xf32, #tpu.memory_space<vmem>>, vector<8x4xf32>
    tpu.vector_store %arg4[%c0_100, %c24_101], %324 {strides = array<i32>} : memref<8x40xf32, #tpu.memory_space<vmem>>, vector<8x4xf32>,
    %c56 = arith.constant 56 : index
    %c0_102 = arith.constant 0 : index
    %328 = vector.load %arg5[%c56, %c0_102] : memref<64x128xf32, #tpu.memory_space<vmem>>, vector<8x128xf32>
    %cst_103 = arith.constant dense<0.000000e+00> : vector<8x128xf32>
    %329 = tpu.matmul %304, %0, %cst_103 {dimension_numbers = #tpu.dot_dimension_numbers<[1], [0], [0], [1], [0, 0, 1, 1], [], []>} : vector<8x32xf32>, vector<32x128xf32>, vector<8x128xf32> -> vector<8x128xf32>
    %330 = arith.addf %328, %329 : vector<8x128xf32>
    %331 = arith.negf %330 : vector<8x128xf32>
    %332 = math.exp %331 : vector<8x128xf32>
    %cst_104 = arith.constant 1.000000e+00 : f32
    %333 = vector.broadcast %cst_104 : f32 to vector<8x128xf32>
    %334 = arith.addf %333, %332 : vector<8x128xf32>
    %335 = arith.divf %333, %334 : vector<8x128xf32>
    %336 = vector.extract_strided_slice %335 {offsets = [0, 0], sizes = [8, 32], strides = [1, 1]} : vector<8x128xf32> to vector<8x32xf32>
    %337 = vector.extract_strided_slice %335 {offsets = [0, 32], sizes = [8, 32], strides = [1, 1]} : vector<8x128xf32> to vector<8x32xf32>
    %338 = vector.extract_strided_slice %335 {offsets = [0, 64], sizes = [8, 32], strides = [1, 1]} : vector<8x128xf32> to vector<8x32xf32>
    %cst_105 = arith.constant 2.000000e+00 : f32
    %339 = vector.broadcast %cst_105 : f32 to vector<8x32xf32>
    %340 = arith.mulf %339, %338 : vector<8x32xf32>
    %cst_106 = arith.constant 1.000000e+00 : f32
    %341 = vector.broadcast %cst_106 : f32 to vector<8x32xf32>
    %342 = arith.subf %340, %341 : vector<8x32xf32>
    %343 = vector.extract_strided_slice %335 {offsets = [0, 96], sizes = [8, 32], strides = [1, 1]} : vector<8x128xf32> to vector<8x32xf32>
    %344 = arith.mulf %337, %302 : vector<8x32xf32>
    %345 = arith.mulf %336, %342 : vector<8x32xf32>
    %346 = arith.addf %344, %345 : vector<8x32xf32>
    %347 = math.tanh %346 : vector<8x32xf32>
    %348 = arith.mulf %343, %347 : vector<8x32xf32>
    %cst_107 = arith.constant dense<0.000000e+00> : vector<8x16xf32>
    %349 = tpu.matmul %346, %1, %cst_107 {dimension_numbers = #tpu.dot_dimension_numbers<[1], [0], [0], [1], [0, 0, 1, 1], [], []>} : vector<8x32xf32>, vector<32x16xf32>, vector<8x16xf32> -> vector<8x16xf32>
    %cst_108 = arith.constant dense<0.000000e+00> : vector<8x16xf32>
    %350 = tpu.matmul %326, %2, %cst_108 {dimension_numbers = #tpu.dot_dimension_numbers<[1], [0], [0], [1], [0, 0, 1, 1], [], []>} : vector<8x4xf32>, vector<4x16xf32>, vector<8x16xf32> -> vector<8x16xf32>
    %351 = arith.addf %349, %350 : vector<8x16xf32>
    %352 = arith.addf %351, %5 : vector<8x16xf32>
    %353 = arith.negf %352 : vector<8x16xf32>
    %354 = math.exp %353 : vector<8x16xf32>
    %cst_109 = arith.constant 1.000000e+00 : f32
    %355 = vector.broadcast %cst_109 : f32 to vector<8x16xf32>
    %356 = arith.addf %355, %354 : vector<8x16xf32>
    %357 = arith.divf %355, %356 : vector<8x16xf32>
    %358 = vector.extract_strided_slice %357 {offsets = [0, 0], sizes = [8, 4], strides = [1, 1]} : vector<8x16xf32> to vector<8x4xf32>
    %359 = vector.extract_strided_slice %357 {offsets = [0, 4], sizes = [8, 4], strides = [1, 1]} : vector<8x16xf32> to vector<8x4xf32>
    %360 = vector.extract_strided_slice %357 {offsets = [0, 8], sizes = [8, 4], strides = [1, 1]} : vector<8x16xf32> to vector<8x4xf32>
    %cst_110 = arith.constant 2.000000e+00 : f32
    %361 = vector.broadcast %cst_110 : f32 to vector<8x4xf32>
    %362 = arith.mulf %361, %360 : vector<8x4xf32>
    %cst_111 = arith.constant 1.000000e+00 : f32
    %363 = vector.broadcast %cst_111 : f32 to vector<8x4xf32>
    %364 = arith.subf %362, %363 : vector<8x4xf32>
    %365 = vector.extract_strided_slice %357 {offsets = [0, 12], sizes = [8, 4], strides = [1, 1]} : vector<8x16xf32> to vector<8x4xf32>
    %366 = arith.mulf %359, %324 : vector<8x4xf32>
    %367 = arith.mulf %358, %364 : vector<8x4xf32>
    %368 = arith.addf %366, %367 : vector<8x4xf32>
    %369 = math.tanh %368 : vector<8x4xf32>
    %370 = arith.mulf %365, %369 : vector<8x4xf32>
    %c0_112 = arith.constant 0 : index
    %c28 = arith.constant 28 : index
    %371 = vector.load %arg4[%c0_112, %c28] : memref<8x40xf32, #tpu.memory_space<vmem>>, vector<8x4xf32>
    tpu.vector_store %arg4[%c0_112, %c28], %368 {strides = array<i32>} : memref<8x40xf32, #tpu.memory_space<vmem>>, vector<8x4xf32>,
    %c32_113 = arith.constant 32 : index
    %c0_114 = arith.constant 0 : index
    %372 = vector.load %arg1[%c32_113, %c0_114] : memref<36x128xf32, #tpu.memory_space<vmem>>, vector<4x128xf32>
    %cst_115 = arith.constant dense<0.000000e+00> : vector<8x128xf32>
    %373 = tpu.matmul %368, %372, %cst_115 {dimension_numbers = #tpu.dot_dimension_numbers<[1], [0], [0], [1], [0, 0, 1, 1], [], []>} : vector<8x4xf32>, vector<4x128xf32>, vector<8x128xf32> -> vector<8x128xf32>
    %cst_116 = arith.constant dense<0.000000e+00> : vector<8x128xf32>
    %374 = tpu.matmul %348, %0, %cst_116 {dimension_numbers = #tpu.dot_dimension_numbers<[1], [0], [0], [1], [0, 0, 1, 1], [], []>} : vector<8x32xf32>, vector<32x128xf32>, vector<8x128xf32> -> vector<8x128xf32>
    %375 = arith.addf %373, %374 : vector<8x128xf32>
    %376 = arith.addf %375, %8 : vector<8x128xf32>
    %377 = arith.negf %376 : vector<8x128xf32>
    %378 = math.exp %377 : vector<8x128xf32>
    %cst_117 = arith.constant 1.000000e+00 : f32
    %379 = vector.broadcast %cst_117 : f32 to vector<8x128xf32>
    %380 = arith.addf %379, %378 : vector<8x128xf32>
    %381 = arith.divf %379, %380 : vector<8x128xf32>
    %382 = vector.extract_strided_slice %381 {offsets = [0, 0], sizes = [8, 32], strides = [1, 1]} : vector<8x128xf32> to vector<8x32xf32>
    %383 = vector.extract_strided_slice %381 {offsets = [0, 32], sizes = [8, 32], strides = [1, 1]} : vector<8x128xf32> to vector<8x32xf32>
    %384 = vector.extract_strided_slice %381 {offsets = [0, 64], sizes = [8, 32], strides = [1, 1]} : vector<8x128xf32> to vector<8x32xf32>
    %cst_118 = arith.constant 2.000000e+00 : f32
    %385 = vector.broadcast %cst_118 : f32 to vector<8x32xf32>
    %386 = arith.mulf %385, %384 : vector<8x32xf32>
    %cst_119 = arith.constant 1.000000e+00 : f32
    %387 = vector.broadcast %cst_119 : f32 to vector<8x32xf32>
    %388 = arith.subf %386, %387 : vector<8x32xf32>
    %389 = vector.extract_strided_slice %381 {offsets = [0, 96], sizes = [8, 32], strides = [1, 1]} : vector<8x128xf32> to vector<8x32xf32>
    %390 = arith.mulf %383, %346 : vector<8x32xf32>
    %391 = arith.mulf %382, %388 : vector<8x32xf32>
    %392 = arith.addf %390, %391 : vector<8x32xf32>
    %393 = math.tanh %392 : vector<8x32xf32>
    %394 = arith.mulf %389, %393 : vector<8x32xf32>
    %cst_120 = arith.constant dense<0.000000e+00> : vector<8x16xf32>
    %395 = tpu.matmul %392, %1, %cst_120 {dimension_numbers = #tpu.dot_dimension_numbers<[1], [0], [0], [1], [0, 0, 1, 1], [], []>} : vector<8x32xf32>, vector<32x16xf32>, vector<8x16xf32> -> vector<8x16xf32>
    %cst_121 = arith.constant dense<0.000000e+00> : vector<8x16xf32>
    %396 = tpu.matmul %370, %2, %cst_121 {dimension_numbers = #tpu.dot_dimension_numbers<[1], [0], [0], [1], [0, 0, 1, 1], [], []>} : vector<8x4xf32>, vector<4x16xf32>, vector<8x16xf32> -> vector<8x16xf32>
    %397 = arith.addf %395, %396 : vector<8x16xf32>
    %398 = arith.addf %397, %5 : vector<8x16xf32>
    %399 = arith.negf %398 : vector<8x16xf32>
    %400 = math.exp %399 : vector<8x16xf32>
    %cst_122 = arith.constant 1.000000e+00 : f32
    %401 = vector.broadcast %cst_122 : f32 to vector<8x16xf32>
    %402 = arith.addf %401, %400 : vector<8x16xf32>
    %403 = arith.divf %401, %402 : vector<8x16xf32>
    %404 = vector.extract_strided_slice %403 {offsets = [0, 0], sizes = [8, 4], strides = [1, 1]} : vector<8x16xf32> to vector<8x4xf32>
    %405 = vector.extract_strided_slice %403 {offsets = [0, 4], sizes = [8, 4], strides = [1, 1]} : vector<8x16xf32> to vector<8x4xf32>
    %406 = vector.extract_strided_slice %403 {offsets = [0, 8], sizes = [8, 4], strides = [1, 1]} : vector<8x16xf32> to vector<8x4xf32>
    %cst_123 = arith.constant 2.000000e+00 : f32
    %407 = vector.broadcast %cst_123 : f32 to vector<8x4xf32>
    %408 = arith.mulf %407, %406 : vector<8x4xf32>
    %cst_124 = arith.constant 1.000000e+00 : f32
    %409 = vector.broadcast %cst_124 : f32 to vector<8x4xf32>
    %410 = arith.subf %408, %409 : vector<8x4xf32>
    %411 = vector.extract_strided_slice %403 {offsets = [0, 12], sizes = [8, 4], strides = [1, 1]} : vector<8x16xf32> to vector<8x4xf32>
    %412 = arith.mulf %405, %368 : vector<8x4xf32>
    %413 = arith.mulf %404, %410 : vector<8x4xf32>
    %414 = arith.addf %412, %413 : vector<8x4xf32>
    %415 = math.tanh %414 : vector<8x4xf32>
    %416 = arith.mulf %411, %415 : vector<8x4xf32>
    %c0_125 = arith.constant 0 : index
    %c32_126 = arith.constant 32 : index
    %417 = vector.load %arg4[%c0_125, %c32_126] : memref<8x40xf32, #tpu.memory_space<vmem>>, vector<8x4xf32>
    tpu.vector_store %arg4[%c0_125, %c32_126], %414 {strides = array<i32>} : memref<8x40xf32, #tpu.memory_space<vmem>>, vector<8x4xf32>,
    %c32_127 = arith.constant 32 : index
    %c0_128 = arith.constant 0 : index
    %418 = vector.load %arg1[%c32_127, %c0_128] : memref<36x128xf32, #tpu.memory_space<vmem>>, vector<4x128xf32>
    %cst_129 = arith.constant dense<0.000000e+00> : vector<8x128xf32>
    %419 = tpu.matmul %414, %418, %cst_129 {dimension_numbers = #tpu.dot_dimension_numbers<[1], [0], [0], [1], [0, 0, 1, 1], [], []>} : vector<8x4xf32>, vector<4x128xf32>, vector<8x128xf32> -> vector<8x128xf32>
    %cst_130 = arith.constant dense<0.000000e+00> : vector<8x128xf32>
    %420 = tpu.matmul %394, %0, %cst_130 {dimension_numbers = #tpu.dot_dimension_numbers<[1], [0], [0], [1], [0, 0, 1, 1], [], []>} : vector<8x32xf32>, vector<32x128xf32>, vector<8x128xf32> -> vector<8x128xf32>
    %421 = arith.addf %419, %420 : vector<8x128xf32>
    %422 = arith.addf %421, %8 : vector<8x128xf32>
    %423 = arith.negf %422 : vector<8x128xf32>
    %424 = math.exp %423 : vector<8x128xf32>
    %cst_131 = arith.constant 1.000000e+00 : f32
    %425 = vector.broadcast %cst_131 : f32 to vector<8x128xf32>
    %426 = arith.addf %425, %424 : vector<8x128xf32>
    %427 = arith.divf %425, %426 : vector<8x128xf32>
    %428 = vector.extract_strided_slice %427 {offsets = [0, 0], sizes = [8, 32], strides = [1, 1]} : vector<8x128xf32> to vector<8x32xf32>
    %429 = vector.extract_strided_slice %427 {offsets = [0, 32], sizes = [8, 32], strides = [1, 1]} : vector<8x128xf32> to vector<8x32xf32>
    %430 = vector.extract_strided_slice %427 {offsets = [0, 64], sizes = [8, 32], strides = [1, 1]} : vector<8x128xf32> to vector<8x32xf32>
    %cst_132 = arith.constant 2.000000e+00 : f32
    %431 = vector.broadcast %cst_132 : f32 to vector<8x32xf32>
    %432 = arith.mulf %431, %430 : vector<8x32xf32>
    %cst_133 = arith.constant 1.000000e+00 : f32
    %433 = vector.broadcast %cst_133 : f32 to vector<8x32xf32>
    %434 = arith.subf %432, %433 : vector<8x32xf32>
    %435 = arith.mulf %429, %392 : vector<8x32xf32>
    %436 = arith.mulf %428, %434 : vector<8x32xf32>
    %437 = arith.addf %435, %436 : vector<8x32xf32>
    %cst_134 = arith.constant dense<0.000000e+00> : vector<8x16xf32>
    %438 = tpu.matmul %437, %1, %cst_134 {dimension_numbers = #tpu.dot_dimension_numbers<[1], [0], [0], [1], [0, 0, 1, 1], [], []>} : vector<8x32xf32>, vector<32x16xf32>, vector<8x16xf32> -> vector<8x16xf32>
    %cst_135 = arith.constant dense<0.000000e+00> : vector<8x16xf32>
    %439 = tpu.matmul %416, %2, %cst_135 {dimension_numbers = #tpu.dot_dimension_numbers<[1], [0], [0], [1], [0, 0, 1, 1], [], []>} : vector<8x4xf32>, vector<4x16xf32>, vector<8x16xf32> -> vector<8x16xf32>
    %440 = arith.addf %438, %439 : vector<8x16xf32>
    %441 = arith.addf %440, %5 : vector<8x16xf32>
    %442 = arith.negf %441 : vector<8x16xf32>
    %443 = math.exp %442 : vector<8x16xf32>
    %cst_136 = arith.constant 1.000000e+00 : f32
    %444 = vector.broadcast %cst_136 : f32 to vector<8x16xf32>
    %445 = arith.addf %444, %443 : vector<8x16xf32>
    %446 = arith.divf %444, %445 : vector<8x16xf32>
    %447 = vector.extract_strided_slice %446 {offsets = [0, 0], sizes = [8, 4], strides = [1, 1]} : vector<8x16xf32> to vector<8x4xf32>
    %448 = vector.extract_strided_slice %446 {offsets = [0, 4], sizes = [8, 4], strides = [1, 1]} : vector<8x16xf32> to vector<8x4xf32>
    %449 = vector.extract_strided_slice %446 {offsets = [0, 8], sizes = [8, 4], strides = [1, 1]} : vector<8x16xf32> to vector<8x4xf32>
    %cst_137 = arith.constant 2.000000e+00 : f32
    %450 = vector.broadcast %cst_137 : f32 to vector<8x4xf32>
    %451 = arith.mulf %450, %449 : vector<8x4xf32>
    %cst_138 = arith.constant 1.000000e+00 : f32
    %452 = vector.broadcast %cst_138 : f32 to vector<8x4xf32>
    %453 = arith.subf %451, %452 : vector<8x4xf32>
    %454 = arith.mulf %448, %414 : vector<8x4xf32>
    %455 = arith.mulf %447, %453 : vector<8x4xf32>
    %456 = arith.addf %454, %455 : vector<8x4xf32>
    %c0_139 = arith.constant 0 : index
    %c36 = arith.constant 36 : index
    %457 = vector.load %arg4[%c0_139, %c36] : memref<8x40xf32, #tpu.memory_space<vmem>>, vector<8x4xf32>
    tpu.vector_store %arg4[%c0_139, %c36], %456 {strides = array<i32>} : memref<8x40xf32, #tpu.memory_space<vmem>>, vector<8x4xf32>,
    return
  }
}

</mosaic_0001>

<llo_original>
// kernel: tpu_custom_call.1
$region0: #{tpu_custom_call.1}
  #allocation0 [shape = 'u32[]', space=smem, size = 0x4, offset = 0x4, fixed_abs, tag = 'smem constant byte address 0x4 - core index']
  #allocation1 [shape = 'u32[144,128]{1,0:T(1,128)}', space=vmem, size = 0x12000, scoped, tag = 'internal scratch']
  #allocation2 [shape = 'f32[64,128]{1,0:T(8,128)}', space=vmem, size = 0x8000, scoped, tag = 'scratch operand']
  %s0 = inlined_call_operand.vmem [shape: f32[64,4], index: 0, kind: input, shape index: {}]
  %s1 = inlined_call_operand.vmem [shape: f32[36,128], index: 1, kind: input, shape index: {}]
  %s2 = inlined_call_operand.vmem [shape: f32[36,16], index: 2, kind: input, shape index: {}]
  %s3 = inlined_call_operand.vmem [shape: f32[2,128], index: 3, kind: input, shape index: {}]
  %s4 = inlined_call_operand.hbm [shape: f32[8,40], index: 4, kind: output, shape index: {}]
  %s5 = sld [smem:[#allocation0]]
  $region26: #{tpu_custom_call.1} parent=0
    _
  %s7 = ssub.s32 1, %s5
  %s8 = scalar_select 0, %s7, %s5
  $region1: #{tpu_custom_call.1} parent=0
    #allocation3 [shape = 'u8[4096]{0}', space=vmem, size = 0x1000, scoped, tag = 'output window, operand 0, single buffered']
    #allocation4 [shape = 's32[1]{0}', space=sflag, size = 0x4, scoped, tag = 'scoped memory for tpu_custom_call.1']
    %9 = vsyncpa [#allocation4], 0
    // Predicated region
    $region2: #{tpu_custom_call.1} parent=1 // pred_check
      _
    $region3: #{tpu_custom_call.1} parent=1 // pred_check_branch
      %11 = sbr.rel (0) target = $region5
    $region4: #{tpu_custom_call.1} parent=1 // pred_region
      _
    $region5: #{tpu_custom_call.1} parent=1 // pred_fallthru
      _
    // Predicated region
    $region6: #{tpu_custom_call.1} parent=1 // pred_check
      _
    $region7: #{tpu_custom_call.1} parent=1 // pred_check_branch
      %13 = sbr.rel (0) target = $region9
    $region8: #{tpu_custom_call.1} parent=1 // pred_region
      _
    $region9: #{tpu_custom_call.1} parent=1 // pred_fallthru
      _
    // Predicated region
    $region10: #{tpu_custom_call.1} parent=1 // pred_check
      _
    $region11: #{tpu_custom_call.1} parent=1 // pred_check_branch
      %15 = sbr.rel (0) target = $region13
    $region12: #{tpu_custom_call.1} parent=1 // pred_region
      _
    $region13: #{tpu_custom_call.1} parent=1 // pred_fallthru
      _
    // Predicated region
    $region14: #{tpu_custom_call.1} parent=1 // pred_check
      _
    $region15: #{tpu_custom_call.1} parent=1 // pred_check_branch
      %17 = sbr.rel (0) target = $region17
    $region16: #{tpu_custom_call.1} parent=1 // pred_region
      _
    $region17: #{tpu_custom_call.1} parent=1 // pred_fallthru
      _
    %v18 = vld [vmem:[%s1] sm:$0xff]
    %v19 = vld [vmem:[%s1 + $0x8] sm:$0xff]
    %v20 = vld [vmem:[%s1 + $0x10] sm:$0xff]
    %v21 = vld [vmem:[%s1 + $0x18] sm:$0xff]
    %v22 = vld [vmem:[%s2] sm:$0xff]
    %v23 = vld [vmem:[%s2 + $0x8] sm:$0xff]
    %v24 = vld [vmem:[%s2 + $0x10] sm:$0xff]
    %v25 = vld [vmem:[%s2 + $0x18] sm:$0xff]
    %v26 = vld [vmem:[%s2 + $0x20] sm:$0xf]
    %v27 = vld [vmem:[%s3 + $0x1] sm:$0x1]
    %v28 = vlaneseq
    %v29 = vshrl.u32 %v28, 7
    %v30 = vsub.s32 0, %v29
    %v31 = vrot.slane %v27, %v30
    %v32 = vld [vmem:[%s3] sm:$0x1]
    %v33 = vlaneseq
    %v34 = vshrl.u32 %v33, 7
    %v35 = vsub.s32 0, %v34
    %v36 = vrot.slane %v32, %v35
    %v37 = vld [vmem:[%s0] sm:$0xff]
    %v38 = vld [vmem:[%s0 + $0x8] sm:$0xff]
    %v39 = vld [vmem:[%s0 + $0x10] sm:$0xff]
    %v40 = vld [vmem:[%s0 + $0x18] sm:$0xff]
    %v41 = vld [vmem:[%s0 + $0x20] sm:$0xff]
    %v42 = vld [vmem:[%s0 + $0x28] sm:$0xff]
    %v43 = vld [vmem:[%s0 + $0x30] sm:$0xff]
    %v44 = vld [vmem:[%s0 + $0x38] sm:$0xff]
    %v45 = vld [vmem:[%s1 + $0x20] sm:$0xf]
    %vm46 = vcmask 31744
    %v48 = vsel %vm46, %v37, 0
    %v51 = vsel %vm46, %v38, 0
    %v54 = vsel %vm46, %v39, 0
    %v57 = vsel %vm46, %v40, 0
    %v60 = vsel %vm46, %v41, 0
    %v63 = vsel %vm46, %v42, 0
    %v66 = vsel %vm46, %v43, 0
    %v69 = vsel %vm46, %v44, 0
    %vm71 = vcmask 1043456
    %v73 = vsel %vm71, %v45, 0
    %75 = vmatprep.subr.mxu0 0.0
    %76 = vmatpush1.msra.mxu0 0.0
    %77 = vmatprep.subr.mxu0 0.0
    %78 = vmatpush1.msra.mxu0 0.0
    %79 = vmatprep.subr.mxu0 0.0
    %80 = vmatpush1.msra.mxu0 0.0
    %81 = vmatprep.subr.mxu0 0.0
    %82 = vmatpush1.msra.mxu0 0.0
    %83 = vmatprep.subr.mxu0 0.0
    %84 = vmatpush1.msra.mxu0 0.0
    %85 = vmatprep.subr.mxu0 0.0
    %86 = vmatpush1.msra.mxu0 0.0
    %87 = vmatprep.subr.mxu0 0.0
    %88 = vmatpush1.msra.mxu0 0.0
    %89 = vmatprep.subr.mxu0 0.0
    %90 = vmatpush1.msra.mxu0 0.0
    %91 = vmatprep.subr.mxu0 0.0
    %92 = vmatpush1.msra.mxu0 0.0
    %93 = vmatprep.subr.mxu0 0.0
    %94 = vmatpush1.msra.mxu0 0.0
    %95 = vmatprep.subr.mxu0 0.0
    %96 = vmatpush1.msra.mxu0 0.0
    %97 = vmatprep.subr.mxu0 0.0
    %98 = vmatpush1.msra.mxu0 0.0
    %99 = vmatprep.subr.mxu0 0.0
    %100 = vmatpush1.msra.mxu0 0.0
    %101 = vmatprep.subr.mxu0 0.0
    %102 = vmatpush1.msra.mxu0 0.0
    %103 = vmatprep.subr.mxu0 0.0
    %104 = vmatpush1.msra.mxu0 0.0
    %105 = vmatprep.subr.mxu0 0.0
    %106 = vmatpush1.msra.mxu0 %v73
    %107 = vmatprep.subr.mxu0 0.0
    %108 = vmatpush2.msra.mxu0 0.0
    %109 = vmatprep.subr.mxu0 0.0
    %110 = vmatpush2.msra.mxu0 0.0
    %111 = vmatprep.subr.mxu0 0.0
    %112 = vmatpush2.msra.mxu0 0.0
    %113 = vmatprep.subr.mxu0 0.0
    %114 = vmatpush2.msra.mxu0 0.0
    %115 = vmatprep.subr.mxu0 0.0
    %116 = vmatpush2.msra.mxu0 0.0
    %117 = vmatprep.subr.mxu0 0.0
    %118 = vmatpush2.msra.mxu0 0.0
    %119 = vmatprep.subr.mxu0 0.0
    %120 = vmatpush2.msra.mxu0 0.0
    %121 = vmatprep.subr.mxu0 0.0
    %122 = vmatpush2.msra.mxu0 0.0
    %123 = vmatprep.subr.mxu0 0.0
    %124 = vmatpush2.msra.mxu0 0.0
    %125 = vmatprep.subr.mxu0 0.0
    %126 = vmatpush2.msra.mxu0 0.0
    %127 = vmatprep.subr.mxu0 0.0
    %128 = vmatpush2.msra.mxu0 0.0
    %129 = vmatprep.subr.mxu0 0.0
    %130 = vmatpush2.msra.mxu0 0.0
    %131 = vmatprep.subr.mxu0 0.0
    %132 = vmatpush2.msra.mxu0 0.0
    %133 = vmatprep.subr.mxu0 0.0
    %134 = vmatpush2.msra.mxu0 0.0
    %135 = vmatprep.subr.mxu0 0.0
    %136 = vmatpush2.msra.mxu0 0.0
    %137 = vmatprep.subr.mxu0 0.0
    %138 = vmatpush2.msra.mxu0 0.0
    %139 = vmatprep.mubr.f32.mxu0 0.0
    %140 = vmatmul.mubr.f32.gmra.mxu0 %v48
    %v141 = vpop.f32.mrf.mxu0
    %v142 = vadd.f32 %v36, %v141
    %v143 = vpop.f32.mrf.mxu0
    %144 = vmatprep.mubr.f32.mxu0 0.0
    %145 = vmatmul.mubr.f32.gmra.mxu0 %v51
    %v146 = vpop.f32.mrf.mxu0
    %v147 = vadd.f32 %v36, %v146
    %v148 = vpop.f32.mrf.mxu0
    %149 = vmatprep.mubr.f32.mxu0 0.0
    %150 = vmatmul.mubr.f32.gmra.mxu0 %v54
    %v151 = vpop.f32.mrf.mxu0
    %v152 = vadd.f32 %v36, %v151
    %v153 = vpop.f32.mrf.mxu0
    %154 = vmatprep.mubr.f32.mxu0 0.0
    %155 = vmatmul.mubr.f32.gmra.mxu0 %v57
    %v156 = vpop.f32.mrf.mxu0
    %v157 = vadd.f32 %v36, %v156
    %v158 = vpop.f32.mrf.mxu0
    %159 = vmatprep.mubr.f32.mxu0 0.0
    %160 = vmatmul.mubr.f32.gmra.mxu0 %v60
    %v161 = vpop.f32.mrf.mxu0
    %v162 = vadd.f32 %v36, %v161
    %v163 = vpop.f32.mrf.mxu0
    %164 = vmatprep.mubr.f32.mxu0 0.0
    %165 = vmatmul.mubr.f32.gmra.mxu0 %v63
    %v166 = vpop.f32.mrf.mxu0
    %v167 = vadd.f32 %v36, %v166
    %v168 = vpop.f32.mrf.mxu0
    %169 = vmatprep.mubr.f32.mxu0 0.0
    %170 = vmatmul.mubr.f32.gmra.mxu0 %v66
    %v171 = vpop.f32.mrf.mxu0
    %v172 = vadd.f32 %v36, %v171
    %v173 = vpop.f32.mrf.mxu0
    %174 = vmatprep.mubr.f32.mxu0 0.0
    %175 = vmatmul.mubr.f32.gmra.mxu0 %v69
    %v176 = vpop.f32.mrf.mxu0
    %v177 = vadd.f32 %v36, %v176
    %v178 = vpop.f32.mrf.mxu0
    %179 = vdwg.mxu0
    %180 = vst [vmem:[#allocation2] sm:$0xff] %v142
    %181 = vst [vmem:[#allocation2 + $0x8] sm:$0xff] %v147
    %182 = vst [vmem:[#allocation2 + $0x10] sm:$0xff] %v152
    %183 = vst [vmem:[#allocation2 + $0x18] sm:$0xff] %v157
    %184 = vst [vmem:[#allocation2 + $0x20] sm:$0xff] %v162
    %185 = vst [vmem:[#allocation2 + $0x28] sm:$0xff] %v167
    %186 = vst [vmem:[#allocation2 + $0x30] sm:$0xff] %v172
    %187 = vst [vmem:[#allocation2 + $0x38] sm:$0xff] %v177
    %v188 = vld [vmem:[#allocation2] sm:$0xff]
    %vm189 = vcmask 261120
    %v191 = vsel %vm189, 0.0, 0
    %193 = vmatprep.subr.mxu0 0.0
    %194 = vmatpush1.msra.mxu0 0.0
    %195 = vmatprep.subr.mxu0 0.0
    %196 = vmatpush1.msra.mxu0 0.0
    %197 = vmatprep.subr.mxu0 0.0
    %198 = vmatpush1.msra.mxu0 0.0
    %199 = vmatprep.subr.mxu0 0.0
    %200 = vmatpush1.msra.mxu0 0.0
    %201 = vmatprep.subr.mxu0 0.0
    %202 = vmatpush1.msra.mxu0 0.0
    %203 = vmatprep.subr.mxu0 0.0
    %204 = vmatpush1.msra.mxu0 0.0
    %205 = vmatprep.subr.mxu0 0.0
    %206 = vmatpush1.msra.mxu0 0.0
    %207 = vmatprep.subr.mxu0 0.0
    %208 = vmatpush1.msra.mxu0 0.0
    %209 = vmatprep.subr.mxu0 0.0
    %210 = vmatpush1.msra.mxu0 0.0
    %211 = vmatprep.subr.mxu0 0.0
    %212 = vmatpush1.msra.mxu0 0.0
    %213 = vmatprep.subr.mxu0 0.0
    %214 = vmatpush1.msra.mxu0 0.0
    %215 = vmatprep.subr.mxu0 0.0
    %216 = vmatpush1.msra.mxu0 0.0
    %217 = vmatprep.subr.mxu0 0.0
    %218 = vmatpush1.msra.mxu0 %v21
    %219 = vmatprep.subr.mxu0 0.0
    %220 = vmatpush1.msra.mxu0 %v20
    %221 = vmatprep.subr.mxu0 0.0
    %222 = vmatpush1.msra.mxu0 %v19
    %223 = vmatprep.subr.mxu0 0.0
    %224 = vmatpush1.msra.mxu0 %v18
    %225 = vmatprep.subr.mxu0 0.0
    %226 = vmatpush2.msra.mxu0 0.0
    %227 = vmatprep.subr.mxu0 0.0
    %228 = vmatpush2.msra.mxu0 0.0
    %229 = vmatprep.subr.mxu0 0.0
    %230 = vmatpush2.msra.mxu0 0.0
    %231 = vmatprep.subr.mxu0 0.0
    %232 = vmatpush2.msra.mxu0 0.0
    %233 = vmatprep.subr.mxu0 0.0
    %234 = vmatpush2.msra.mxu0 0.0
    %235 = vmatprep.subr.mxu0 0.0
    %236 = vmatpush2.msra.mxu0 0.0
    %237 = vmatprep.subr.mxu0 0.0
    %238 = vmatpush2.msra.mxu0 0.0
    %239 = vmatprep.subr.mxu0 0.0
    %240 = vmatpush2.msra.mxu0 0.0
    %241 = vmatprep.subr.mxu0 0.0
    %242 = vmatpush2.msra.mxu0 0.0
    %243 = vmatprep.subr.mxu0 0.0
    %244 = vmatpush2.msra.mxu0 0.0
    %245 = vmatprep.subr.mxu0 0.0
    %246 = vmatpush2.msra.mxu0 0.0
    %247 = vmatprep.subr.mxu0 0.0
    %248 = vmatpush2.msra.mxu0 0.0
    %249 = vmatprep.subr.mxu0 0.0
    %250 = vmatpush2.msra.mxu0 0.0
    %251 = vmatprep.subr.mxu0 0.0
    %252 = vmatpush2.msra.mxu0 0.0
    %253 = vmatprep.subr.mxu0 0.0
    %254 = vmatpush2.msra.mxu0 0.0
    %255 = vmatprep.subr.mxu0 0.0
    %256 = vmatpush2.msra.mxu0 0.0
    %257 = vmatprep.mubr.f32.mxu0 0.0
    %258 = vmatmul.mubr.f32.gmra.mxu0 %v191
    %v259 = vpop.f32.mrf.mxu0
    %v260 = vadd.f32 0.0, %v259
    %v261 = vpop.f32.mrf.mxu0
    %262 = vdwg.mxu0
    %v263 = vadd.f32 %v188, %v260
    %v264 = vxor.u32 %v263, 2147483648
    %v265 = vmul.f32 %v264, 1.442695
    %v266 = vpow.pop %v265
    %v267 = vadd.f32 %v266, 1.0
    %v268 = vrcp.pop %v267
    %v269 = vmul.f32 1.0, %v268
    %v270 = vmul.f32 %v269, 2.0
    %v271 = vsub.f32 %v270, 1.0
    %v272 = vmul.f32 %v269, 0.0
    %274 = vrot.lane.b32.xlu0 %v271, 64
    %v275 = vpop.permute.xlu0 %274
    %v277 = vmul.f32 %v269, %v275
    %279 = vrot.lane.b32.xlu0 %v277, 32
    %v280 = vpop.permute.xlu0 %279
    %v282 = vadd.f32 %v272, %v280
    %v283 = vtanh.pop %v282
    %285 = vrot.lane.b32.xlu0 %v283, 64
    %v286 = vpop.permute.xlu0 %285
    %v288 = vmul.f32 %v269, %v286
    %v289 = vsel %vm46, 0.0, 0
    %v292 = vsel %vm71, %v26, 0
    %294 = vmatprep.subr.mxu0 0.0
    %295 = vmatpush1.msra.mxu0 0.0
    %296 = vmatprep.subr.mxu0 0.0
    %297 = vmatpush1.msra.mxu0 0.0
    %298 = vmatprep.subr.mxu0 0.0
    %299 = vmatpush1.msra.mxu0 0.0
    %300 = vmatprep.subr.mxu0 0.0
    %301 = vmatpush1.msra.mxu0 0.0
    %302 = vmatprep.subr.mxu0 0.0
    %303 = vmatpush1.msra.mxu0 0.0
    %304 = vmatprep.subr.mxu0 0.0
    %305 = vmatpush1.msra.mxu0 0.0
    %306 = vmatprep.subr.mxu0 0.0
    %307 = vmatpush1.msra.mxu0 0.0
    %308 = vmatprep.subr.mxu0 0.0
    %309 = vmatpush1.msra.mxu0 0.0
    %310 = vmatprep.subr.mxu0 0.0
    %311 = vmatpush1.msra.mxu0 0.0
    %312 = vmatprep.subr.mxu0 0.0
    %313 = vmatpush1.msra.mxu0 0.0
    %314 = vmatprep.subr.mxu0 0.0
    %315 = vmatpush1.msra.mxu0 0.0
    %316 = vmatprep.subr.mxu0 0.0
    %317 = vmatpush1.msra.mxu0 0.0
    %318 = vmatprep.subr.mxu0 0.0
    %319 = vmatpush1.msra.mxu0 0.0
    %320 = vmatprep.subr.mxu0 0.0
    %321 = vmatpush1.msra.mxu0 0.0
    %322 = vmatprep.subr.mxu0 0.0
    %323 = vmatpush1.msra.mxu0 0.0
    %324 = vmatprep.subr.mxu0 0.0
    %325 = vmatpush1.msra.mxu0 %v292
    %326 = vmatprep.subr.mxu0 0.0
    %327 = vmatpush2.msra.mxu0 0.0
    %328 = vmatprep.subr.mxu0 0.0
    %329 = vmatpush2.msra.mxu0 0.0
    %330 = vmatprep.subr.mxu0 0.0
    %331 = vmatpush2.msra.mxu0 0.0
    %332 = vmatprep.subr.mxu0 0.0
    %333 = vmatpush2.msra.mxu0 0.0
    %334 = vmatprep.subr.mxu0 0.0
    %335 = vmatpush2.msra.mxu0 0.0
    %336 = vmatprep.subr.mxu0 0.0
    %337 = vmatpush2.msra.mxu0 0.0
    %338 = vmatprep.subr.mxu0 0.0
    %339 = vmatpush2.msra.mxu0 0.0
    %340 = vmatprep.subr.mxu0 0.0
    %341 = vmatpush2.msra.mxu0 0.0
    %342 = vmatprep.subr.mxu0 0.0
    %343 = vmatpush2.msra.mxu0 0.0
    %344 = vmatprep.subr.mxu0 0.0
    %345 = vmatpush2.msra.mxu0 0.0
    %346 = vmatprep.subr.mxu0 0.0
    %347 = vmatpush2.msra.mxu0 0.0
    %348 = vmatprep.subr.mxu0 0.0
    %349 = vmatpush2.msra.mxu0 0.0
    %350 = vmatprep.subr.mxu0 0.0
    %351 = vmatpush2.msra.mxu0 0.0
    %352 = vmatprep.subr.mxu0 0.0
    %353 = vmatpush2.msra.mxu0 0.0
    %354 = vmatprep.subr.mxu0 0.0
    %355 = vmatpush2.msra.mxu0 0.0
    %356 = vmatprep.subr.mxu0 0.0
    %357 = vmatpush2.msra.mxu0 0.0
    %358 = vmatprep.mubr.f32.mxu0 0.0
    %359 = vmatmul.mubr.f32.gmra.mxu0 %v289
    %v360 = vpop.f32.mrf.mxu0
    %v361 = vadd.f32 0.0, %v360
    %v362 = vpop.f32.mrf.mxu0
    %363 = vdwg.mxu0
    %365 = vrot.lane.b32.xlu0 %v282, 96
    %v366 = vpop.permute.xlu0 %365
    %v367 = vsel %vm189, %v366, 0
    %369 = vmatprep.subr.mxu0 0.0
    %370 = vmatpush1.msra.mxu0 0.0
    %371 = vmatprep.subr.mxu0 0.0
    %372 = vmatpush1.msra.mxu0 0.0
    %373 = vmatprep.subr.mxu0 0.0
    %374 = vmatpush1.msra.mxu0 0.0
    %375 = vmatprep.subr.mxu0 0.0
    %376 = vmatpush1.msra.mxu0 0.0
    %377 = vmatprep.subr.mxu0 0.0
    %378 = vmatpush1.msra.mxu0 0.0
    %379 = vmatprep.subr.mxu0 0.0
    %380 = vmatpush1.msra.mxu0 0.0
    %381 = vmatprep.subr.mxu0 0.0
    %382 = vmatpush1.msra.mxu0 0.0
    %383 = vmatprep.subr.mxu0 0.0
    %384 = vmatpush1.msra.mxu0 0.0
    %385 = vmatprep.subr.mxu0 0.0
    %386 = vmatpush1.msra.mxu0 0.0
    %387 = vmatprep.subr.mxu0 0.0
    %388 = vmatpush1.msra.mxu0 0.0
    %389 = vmatprep.subr.mxu0 0.0
    %390 = vmatpush1.msra.mxu0 0.0
    %391 = vmatprep.subr.mxu0 0.0
    %392 = vmatpush1.msra.mxu0 0.0
    %393 = vmatprep.subr.mxu0 0.0
    %394 = vmatpush1.msra.mxu0 %v25
    %395 = vmatprep.subr.mxu0 0.0
    %396 = vmatpush1.msra.mxu0 %v24
    %397 = vmatprep.subr.mxu0 0.0
    %398 = vmatpush1.msra.mxu0 %v23
    %399 = vmatprep.subr.mxu0 0.0
    %400 = vmatpush1.msra.mxu0 %v22
    %401 = vmatprep.subr.mxu0 0.0
    %402 = vmatpush2.msra.mxu0 0.0
    %403 = vmatprep.subr.mxu0 0.0
    %404 = vmatpush2.msra.mxu0 0.0
    %405 = vmatprep.subr.mxu0 0.0
    %406 = vmatpush2.msra.mxu0 0.0
    %407 = vmatprep.subr.mxu0 0.0
    %408 = vmatpush2.msra.mxu0 0.0
    %409 = vmatprep.subr.mxu0 0.0
    %410 = vmatpush2.msra.mxu0 0.0
    %411 = vmatprep.subr.mxu0 0.0
    %412 = vmatpush2.msra.mxu0 0.0
    %413 = vmatprep.subr.mxu0 0.0
    %414 = vmatpush2.msra.mxu0 0.0
    %415 = vmatprep.subr.mxu0 0.0
    %416 = vmatpush2.msra.mxu0 0.0
    %417 = vmatprep.subr.mxu0 0.0
    %418 = vmatpush2.msra.mxu0 0.0
    %419 = vmatprep.subr.mxu0 0.0
    %420 = vmatpush2.msra.mxu0 0.0
    %421 = vmatprep.subr.mxu0 0.0
    %422 = vmatpush2.msra.mxu0 0.0
    %423 = vmatprep.subr.mxu0 0.0
    %424 = vmatpush2.msra.mxu0 0.0
    %425 = vmatprep.subr.mxu0 0.0
    %426 = vmatpush2.msra.mxu0 0.0
    %427 = vmatprep.subr.mxu0 0.0
    %428 = vmatpush2.msra.mxu0 0.0
    %429 = vmatprep.subr.mxu0 0.0
    %430 = vmatpush2.msra.mxu0 0.0
    %431 = vmatprep.subr.mxu0 0.0
    %432 = vmatpush2.msra.mxu0 0.0
    %433 = vmatprep.mubr.f32.mxu0 0.0
    %434 = vmatmul.mubr.f32.gmra.mxu0 %v367
    %v435 = vpop.f32.mrf.mxu0
    %v436 = vadd.f32 %v361, %v435
    %v437 = vpop.f32.mrf.mxu0
    %438 = vdwg.mxu0
    %v439 = vadd.f32 %v436, %v31
    %v440 = vxor.u32 %v439, 2147483648
    %v441 = vmul.f32 %v440, 1.442695
    %v442 = vpow.pop %v441
    %v443 = vadd.f32 %v442, 1.0
    %v444 = vrcp.pop %v443
    %v445 = vmul.f32 1.0, %v444
    %v446 = vmul.f32 %v445, 2.0
    %v447 = vsub.f32 %v446, 1.0
    %v448 = vmul.f32 %v445, 0.0
    %450 = vrot.lane.b32.xlu0 %v447, 120
    %v451 = vpop.permute.xlu0 %450
    %v453 = vmul.f32 %v445, %v451
    %455 = vrot.lane.b32.xlu0 %v453, 4
    %v456 = vpop.permute.xlu0 %455
    %v458 = vadd.f32 %v448, %v456
    %v459 = vtanh.pop %v458
    %461 = vrot.lane.b32.xlu0 %v459, 8
    %v462 = vpop.permute.xlu0 %461
    %v464 = vmul.f32 %v445, %v462
    %466 = vrot.lane.b32.xlu0 %v458, 124
    %v467 = vpop.permute.xlu0 %466
    %469 = vst.msk [vmem:[#allocation3] sm:$0xff] %vm46, %v467
    %v470 = vld [vmem:[#allocation2 + $0x8] sm:$0xff]
    %472 = vrot.lane.b32.xlu0 %v288, 32
    %v473 = vpop.permute.xlu0 %472
    %v474 = vsel %vm189, %v473, 0
    %476 = vmatprep.subr.mxu0 0.0
    %477 = vmatpush1.msra.mxu0 0.0
    %478 = vmatprep.subr.mxu0 0.0
    %479 = vmatpush1.msra.mxu0 0.0
    %480 = vmatprep.subr.mxu0 0.0
    %481 = vmatpush1.msra.mxu0 0.0
    %482 = vmatprep.subr.mxu0 0.0
    %483 = vmatpush1.msra.mxu0 0.0
    %484 = vmatprep.subr.mxu0 0.0
    %485 = vmatpush1.msra.mxu0 0.0
    %486 = vmatprep.subr.mxu0 0.0
    %487 = vmatpush1.msra.mxu0 0.0
    %488 = vmatprep.subr.mxu0 0.0
    %489 = vmatpush1.msra.mxu0 0.0
    %490 = vmatprep.subr.mxu0 0.0
    %491 = vmatpush1.msra.mxu0 0.0
    %492 = vmatprep.subr.mxu0 0.0
    %493 = vmatpush1.msra.mxu0 0.0
    %494 = vmatprep.subr.mxu0 0.0
    %495 = vmatpush1.msra.mxu0 0.0
    %496 = vmatprep.subr.mxu0 0.0
    %497 = vmatpush1.msra.mxu0 0.0
    %498 = vmatprep.subr.mxu0 0.0
    %499 = vmatpush1.msra.mxu0 0.0
    %500 = vmatprep.subr.mxu0 0.0
    %501 = vmatpush1.msra.mxu0 %v21
    %502 = vmatprep.subr.mxu0 0.0
    %503 = vmatpush1.msra.mxu0 %v20
    %504 = vmatprep.subr.mxu0 0.0
    %505 = vmatpush1.msra.mxu0 %v19
    %506 = vmatprep.subr.mxu0 0.0
    %507 = vmatpush1.msra.mxu0 %v18
    %508 = vmatprep.subr.mxu0 0.0
    %509 = vmatpush2.msra.mxu0 0.0
    %510 = vmatprep.subr.mxu0 0.0
    %511 = vmatpush2.msra.mxu0 0.0
    %512 = vmatprep.subr.mxu0 0.0
    %513 = vmatpush2.msra.mxu0 0.0
    %514 = vmatprep.subr.mxu0 0.0
    %515 = vmatpush2.msra.mxu0 0.0
    %516 = vmatprep.subr.mxu0 0.0
    %517 = vmatpush2.msra.mxu0 0.0
    %518 = vmatprep.subr.mxu0 0.0
    %519 = vmatpush2.msra.mxu0 0.0
    %520 = vmatprep.subr.mxu0 0.0
    %521 = vmatpush2.msra.mxu0 0.0
    %522 = vmatprep.subr.mxu0 0.0
    %523 = vmatpush2.msra.mxu0 0.0
    %524 = vmatprep.subr.mxu0 0.0
    %525 = vmatpush2.msra.mxu0 0.0
    %526 = vmatprep.subr.mxu0 0.0
    %527 = vmatpush2.msra.mxu0 0.0
    %528 = vmatprep.subr.mxu0 0.0
    %529 = vmatpush2.msra.mxu0 0.0
    %530 = vmatprep.subr.mxu0 0.0
    %531 = vmatpush2.msra.mxu0 0.0
    %532 = vmatprep.subr.mxu0 0.0
    %533 = vmatpush2.msra.mxu0 0.0
    %534 = vmatprep.subr.mxu0 0.0
    %535 = vmatpush2.msra.mxu0 0.0
    %536 = vmatprep.subr.mxu0 0.0
    %537 = vmatpush2.msra.mxu0 0.0
    %538 = vmatprep.subr.mxu0 0.0
    %539 = vmatpush2.msra.mxu0 0.0
    %540 = vmatprep.mubr.f32.mxu0 0.0
    %541 = vmatmul.mubr.f32.gmra.mxu0 %v474
    %v542 = vpop.f32.mrf.mxu0
    %v543 = vadd.f32 0.0, %v542
    %v544 = vpop.f32.mrf.mxu0
    %545 = vdwg.mxu0
    %v546 = vadd.f32 %v470, %v543
    %v547 = vxor.u32 %v546, 2147483648
    %v548 = vmul.f32 %v547, 1.442695
    %v549 = vpow.pop %v548
    %v550 = vadd.f32 %v549, 1.0
    %v551 = vrcp.pop %v550
    %v552 = vmul.f32 1.0, %v551
    %v553 = vmul.f32 %v552, 2.0
    %v554 = vsub.f32 %v553, 1.0
    %v555 = vmul.f32 %v552, %v282
    %557 = vrot.lane.b32.xlu0 %v554, 64
    %v558 = vpop.permute.xlu0 %557
    %v560 = vmul.f32 %v552, %v558
    %562 = vrot.lane.b32.xlu0 %v560, 32
    %v563 = vpop.permute.xlu0 %562
    %v565 = vadd.f32 %v555, %v563
    %v566 = vtanh.pop %v565
    %568 = vrot.lane.b32.xlu0 %v566, 64
    %v569 = vpop.permute.xlu0 %568
    %v571 = vmul.f32 %v552, %v569
    %573 = vrot.lane.b32.xlu0 %v464, 116
    %v574 = vpop.permute.xlu0 %573
    %v575 = vsel %vm46, %v574, 0
    %577 = vmatprep.subr.mxu0 0.0
    %578 = vmatpush1.msra.mxu0 0.0
    %579 = vmatprep.subr.mxu0 0.0
    %580 = vmatpush1.msra.mxu0 0.0
    %581 = vmatprep.subr.mxu0 0.0
    %582 = vmatpush1.msra.mxu0 0.0
    %583 = vmatprep.subr.mxu0 0.0
    %584 = vmatpush1.msra.mxu0 0.0
    %585 = vmatprep.subr.mxu0 0.0
    %586 = vmatpush1.msra.mxu0 0.0
    %587 = vmatprep.subr.mxu0 0.0
    %588 = vmatpush1.msra.mxu0 0.0
    %589 = vmatprep.subr.mxu0 0.0
    %590 = vmatpush1.msra.mxu0 0.0
    %591 = vmatprep.subr.mxu0 0.0
    %592 = vmatpush1.msra.mxu0 0.0
    %593 = vmatprep.subr.mxu0 0.0
    %594 = vmatpush1.msra.mxu0 0.0
    %595 = vmatprep.subr.mxu0 0.0
    %596 = vmatpush1.msra.mxu0 0.0
    %597 = vmatprep.subr.mxu0 0.0
    %598 = vmatpush1.msra.mxu0 0.0
    %599 = vmatprep.subr.mxu0 0.0
    %600 = vmatpush1.msra.mxu0 0.0
    %601 = vmatprep.subr.mxu0 0.0
    %602 = vmatpush1.msra.mxu0 0.0
    %603 = vmatprep.subr.mxu0 0.0
    %604 = vmatpush1.msra.mxu0 0.0
    %605 = vmatprep.subr.mxu0 0.0
    %606 = vmatpush1.msra.mxu0 0.0
    %607 = vmatprep.subr.mxu0 0.0
    %608 = vmatpush1.msra.mxu0 %v292
    %609 = vmatprep.subr.mxu0 0.0
    %610 = vmatpush2.msra.mxu0 0.0
    %611 = vmatprep.subr.mxu0 0.0
    %612 = vmatpush2.msra.mxu0 0.0
    %613 = vmatprep.subr.mxu0 0.0
    %614 = vmatpush2.msra.mxu0 0.0
    %615 = vmatprep.subr.mxu0 0.0
    %616 = vmatpush2.msra.mxu0 0.0
    %617 = vmatprep.subr.mxu0 0.0
    %618 = vmatpush2.msra.mxu0 0.0
    %619 = vmatprep.subr.mxu0 0.0
    %620 = vmatpush2.msra.mxu0 0.0
    %621 = vmatprep.subr.mxu0 0.0
    %622 = vmatpush2.msra.mxu0 0.0
    %623 = vmatprep.subr.mxu0 0.0
    %624 = vmatpush2.msra.mxu0 0.0
    %625 = vmatprep.subr.mxu0 0.0
    %626 = vmatpush2.msra.mxu0 0.0
    %627 = vmatprep.subr.mxu0 0.0
    %628 = vmatpush2.msra.mxu0 0.0
    %629 = vmatprep.subr.mxu0 0.0
    %630 = vmatpush2.msra.mxu0 0.0
    %631 = vmatprep.subr.mxu0 0.0
    %632 = vmatpush2.msra.mxu0 0.0
    %633 = vmatprep.subr.mxu0 0.0
    %634 = vmatpush2.msra.mxu0 0.0
    %635 = vmatprep.subr.mxu0 0.0
    %636 = vmatpush2.msra.mxu0 0.0
    %637 = vmatprep.subr.mxu0 0.0
    %638 = vmatpush2.msra.mxu0 0.0
    %639 = vmatprep.subr.mxu0 0.0
    %640 = vmatpush2.msra.mxu0 0.0
    %641 = vmatprep.mubr.f32.mxu0 0.0
    %642 = vmatmul.mubr.f32.gmra.mxu0 %v575
    %v643 = vpop.f32.mrf.mxu0
    %v644 = vadd.f32 0.0, %v643
    %v645 = vpop.f32.mrf.mxu0
    %646 = vdwg.mxu0
    %648 = vrot.lane.b32.xlu0 %v565, 96
    %v649 = vpop.permute.xlu0 %648
    %v650 = vsel %vm189, %v649, 0
    %652 = vmatprep.subr.mxu0 0.0
    %653 = vmatpush1.msra.mxu0 0.0
    %654 = vmatprep.subr.mxu0 0.0
    %655 = vmatpush1.msra.mxu0 0.0
    %656 = vmatprep.subr.mxu0 0.0
    %657 = vmatpush1.msra.mxu0 0.0
    %658 = vmatprep.subr.mxu0 0.0
    %659 = vmatpush1.msra.mxu0 0.0
    %660 = vmatprep.subr.mxu0 0.0
    %661 = vmatpush1.msra.mxu0 0.0
    %662 = vmatprep.subr.mxu0 0.0
    %663 = vmatpush1.msra.mxu0 0.0
    %664 = vmatprep.subr.mxu0 0.0
    %665 = vmatpush1.msra.mxu0 0.0
    %666 = vmatprep.subr.mxu0 0.0
    %667 = vmatpush1.msra.mxu0 0.0
    %668 = vmatprep.subr.mxu0 0.0
    %669 = vmatpush1.msra.mxu0 0.0
    %670 = vmatprep.subr.mxu0 0.0
    %671 = vmatpush1.msra.mxu0 0.0
    %672 = vmatprep.subr.mxu0 0.0
    %673 = vmatpush1.msra.mxu0 0.0
    %674 = vmatprep.subr.mxu0 0.0
    %675 = vmatpush1.msra.mxu0 0.0
    %676 = vmatprep.subr.mxu0 0.0
    %677 = vmatpush1.msra.mxu0 %v25
    %678 = vmatprep.subr.mxu0 0.0
    %679 = vmatpush1.msra.mxu0 %v24
    %680 = vmatprep.subr.mxu0 0.0
    %681 = vmatpush1.msra.mxu0 %v23
    %682 = vmatprep.subr.mxu0 0.0
    %683 = vmatpush1.msra.mxu0 %v22
    %684 = vmatprep.subr.mxu0 0.0
    %685 = vmatpush2.msra.mxu0 0.0
    %686 = vmatprep.subr.mxu0 0.0
    %687 = vmatpush2.msra.mxu0 0.0
    %688 = vmatprep.subr.mxu0 0.0
    %689 = vmatpush2.msra.mxu0 0.0
    %690 = vmatprep.subr.mxu0 0.0
    %691 = vmatpush2.msra.mxu0 0.0
    %692 = vmatprep.subr.mxu0 0.0
    %693 = vmatpush2.msra.mxu0 0.0
    %694 = vmatprep.subr.mxu0 0.0
    %695 = vmatpush2.msra.mxu0 0.0
    %696 = vmatprep.subr.mxu0 0.0
    %697 = vmatpush2.msra.mxu0 0.0
    %698 = vmatprep.subr.mxu0 0.0
    %699 = vmatpush2.msra.mxu0 0.0
    %700 = vmatprep.subr.mxu0 0.0
    %701 = vmatpush2.msra.mxu0 0.0
    %702 = vmatprep.subr.mxu0 0.0
    %703 = vmatpush2.msra.mxu0 0.0
    %704 = vmatprep.subr.mxu0 0.0
    %705 = vmatpush2.msra.mxu0 0.0
    %706 = vmatprep.subr.mxu0 0.0
    %707 = vmatpush2.msra.mxu0 0.0
    %708 = vmatprep.subr.mxu0 0.0
    %709 = vmatpush2.msra.mxu0 0.0
    %710 = vmatprep.subr.mxu0 0.0
    %711 = vmatpush2.msra.mxu0 0.0
    %712 = vmatprep.subr.mxu0 0.0
    %713 = vmatpush2.msra.mxu0 0.0
    %714 = vmatprep.subr.mxu0 0.0
    %715 = vmatpush2.msra.mxu0 0.0
    %716 = vmatprep.mubr.f32.mxu0 0.0
    %717 = vmatmul.mubr.f32.gmra.mxu0 %v650
    %v718 = vpop.f32.mrf.mxu0
    %v719 = vadd.f32 %v644, %v718
    %v720 = vpop.f32.mrf.mxu0
    %721 = vdwg.mxu0
    %v722 = vadd.f32 %v719, %v31
    %v723 = vxor.u32 %v722, 2147483648
    %v724 = vmul.f32 %v723, 1.442695
    %v725 = vpow.pop %v724
    %v726 = vadd.f32 %v725, 1.0
    %v727 = vrcp.pop %v726
    %v728 = vmul.f32 1.0, %v727
    %v729 = vmul.f32 %v728, 2.0
    %v730 = vsub.f32 %v729, 1.0
    %v731 = vmul.f32 %v728, %v458
    %733 = vrot.lane.b32.xlu0 %v730, 120
    %v734 = vpop.permute.xlu0 %733
    %v736 = vmul.f32 %v728, %v734
    %738 = vrot.lane.b32.xlu0 %v736, 4
    %v739 = vpop.permute.xlu0 %738
    %v741 = vadd.f32 %v731, %v739
    %v742 = vtanh.pop %v741
    %744 = vrot.lane.b32.xlu0 %v742, 8
    %v745 = vpop.permute.xlu0 %744
    %v747 = vmul.f32 %v728, %v745
    %vm748 = vcmask 64544
    %749 = vst.msk [vmem:[#allocation3] sm:$0xff] %vm748, %v741
    %v750 = vld [vmem:[#allocation2 + $0x10] sm:$0xff]
    %752 = vrot.lane.b32.xlu0 %v571, 32
    %v753 = vpop.permute.xlu0 %752
    %v754 = vsel %vm189, %v753, 0
    %756 = vmatprep.subr.mxu0 0.0
    %757 = vmatpush1.msra.mxu0 0.0
    %758 = vmatprep.subr.mxu0 0.0
    %759 = vmatpush1.msra.mxu0 0.0
    %760 = vmatprep.subr.mxu0 0.0
    %761 = vmatpush1.msra.mxu0 0.0
    %762 = vmatprep.subr.mxu0 0.0
    %763 = vmatpush1.msra.mxu0 0.0
    %764 = vmatprep.subr.mxu0 0.0
    %765 = vmatpush1.msra.mxu0 0.0
    %766 = vmatprep.subr.mxu0 0.0
    %767 = vmatpush1.msra.mxu0 0.0
    %768 = vmatprep.subr.mxu0 0.0
    %769 = vmatpush1.msra.mxu0 0.0
    %770 = vmatprep.subr.mxu0 0.0
    %771 = vmatpush1.msra.mxu0 0.0
    %772 = vmatprep.subr.mxu0 0.0
    %773 = vmatpush1.msra.mxu0 0.0
    %774 = vmatprep.subr.mxu0 0.0
    %775 = vmatpush1.msra.mxu0 0.0
    %776 = vmatprep.subr.mxu0 0.0
    %777 = vmatpush1.msra.mxu0 0.0
    %778 = vmatprep.subr.mxu0 0.0
    %779 = vmatpush1.msra.mxu0 0.0
    %780 = vmatprep.subr.mxu0 0.0
    %781 = vmatpush1.msra.mxu0 %v21
    %782 = vmatprep.subr.mxu0 0.0
    %783 = vmatpush1.msra.mxu0 %v20
    %784 = vmatprep.subr.mxu0 0.0
    %785 = vmatpush1.msra.mxu0 %v19
    %786 = vmatprep.subr.mxu0 0.0
    %787 = vmatpush1.msra.mxu0 %v18
    %788 = vmatprep.subr.mxu0 0.0
    %789 = vmatpush2.msra.mxu0 0.0
    %790 = vmatprep.subr.mxu0 0.0
    %791 = vmatpush2.msra.mxu0 0.0
    %792 = vmatprep.subr.mxu0 0.0
    %793 = vmatpush2.msra.mxu0 0.0
    %794 = vmatprep.subr.mxu0 0.0
    %795 = vmatpush2.msra.mxu0 0.0
    %796 = vmatprep.subr.mxu0 0.0
    %797 = vmatpush2.msra.mxu0 0.0
    %798 = vmatprep.subr.mxu0 0.0
    %799 = vmatpush2.msra.mxu0 0.0
    %800 = vmatprep.subr.mxu0 0.0
    %801 = vmatpush2.msra.mxu0 0.0
    %802 = vmatprep.subr.mxu0 0.0
    %803 = vmatpush2.msra.mxu0 0.0
    %804 = vmatprep.subr.mxu0 0.0
    %805 = vmatpush2.msra.mxu0 0.0
    %806 = vmatprep.subr.mxu0 0.0
    %807 = vmatpush2.msra.mxu0 0.0
    %808 = vmatprep.subr.mxu0 0.0
    %809 = vmatpush2.msra.mxu0 0.0
    %810 = vmatprep.subr.mxu0 0.0
    %811 = vmatpush2.msra.mxu0 0.0
    %812 = vmatprep.subr.mxu0 0.0
    %813 = vmatpush2.msra.mxu0 0.0
    %814 = vmatprep.subr.mxu0 0.0
    %815 = vmatpush2.msra.mxu0 0.0
    %816 = vmatprep.subr.mxu0 0.0
    %817 = vmatpush2.msra.mxu0 0.0
    %818 = vmatprep.subr.mxu0 0.0
    %819 = vmatpush2.msra.mxu0 0.0
    %820 = vmatprep.mubr.f32.mxu0 0.0
    %821 = vmatmul.mubr.f32.gmra.mxu0 %v754
    %v822 = vpop.f32.mrf.mxu0
    %v823 = vadd.f32 0.0, %v822
    %v824 = vpop.f32.mrf.mxu0
    %825 = vdwg.mxu0
    %v826 = vadd.f32 %v750, %v823
    %v827 = vxor.u32 %v826, 2147483648
    %v828 = vmul.f32 %v827, 1.442695
    %v829 = vpow.pop %v828
    %v830 = vadd.f32 %v829, 1.0
    %v831 = vrcp.pop %v830
    %v832 = vmul.f32 1.0, %v831
    %v833 = vmul.f32 %v832, 2.0
    %v834 = vsub.f32 %v833, 1.0
    %v835 = vmul.f32 %v832, %v565
    %837 = vrot.lane.b32.xlu0 %v834, 64
    %v838 = vpop.permute.xlu0 %837
    %v840 = vmul.f32 %v832, %v838
    %842 = vrot.lane.b32.xlu0 %v840, 32
    %v843 = vpop.permute.xlu0 %842
    %v845 = vadd.f32 %v835, %v843
    %v846 = vtanh.pop %v845
    %848 = vrot.lane.b32.xlu0 %v846, 64
    %v849 = vpop.permute.xlu0 %848
    %v851 = vmul.f32 %v832, %v849
    %853 = vrot.lane.b32.xlu0 %v747, 116
    %v854 = vpop.permute.xlu0 %853
    %v855 = vsel %vm46, %v854, 0
    %857 = vmatprep.subr.mxu0 0.0
    %858 = vmatpush1.msra.mxu0 0.0
    %859 = vmatprep.subr.mxu0 0.0
    %860 = vmatpush1.msra.mxu0 0.0
    %861 = vmatprep.subr.mxu0 0.0
    %862 = vmatpush1.msra.mxu0 0.0
    %863 = vmatprep.subr.mxu0 0.0
    %864 = vmatpush1.msra.mxu0 0.0
    %865 = vmatprep.subr.mxu0 0.0
    %866 = vmatpush1.msra.mxu0 0.0
    %867 = vmatprep.subr.mxu0 0.0
    %868 = vmatpush1.msra.mxu0 0.0
    %869 = vmatprep.subr.mxu0 0.0
    %870 = vmatpush1.msra.mxu0 0.0
    %871 = vmatprep.subr.mxu0 0.0
    %872 = vmatpush1.msra.mxu0 0.0
    %873 = vmatprep.subr.mxu0 0.0
    %874 = vmatpush1.msra.mxu0 0.0
    %875 = vmatprep.subr.mxu0 0.0
    %876 = vmatpush1.msra.mxu0 0.0
    %877 = vmatprep.subr.mxu0 0.0
    %878 = vmatpush1.msra.mxu0 0.0
    %879 = vmatprep.subr.mxu0 0.0
    %880 = vmatpush1.msra.mxu0 0.0
    %881 = vmatprep.subr.mxu0 0.0
    %882 = vmatpush1.msra.mxu0 0.0
    %883 = vmatprep.subr.mxu0 0.0
    %884 = vmatpush1.msra.mxu0 0.0
    %885 = vmatprep.subr.mxu0 0.0
    %886 = vmatpush1.msra.mxu0 0.0
    %887 = vmatprep.subr.mxu0 0.0
    %888 = vmatpush1.msra.mxu0 %v292
    %889 = vmatprep.subr.mxu0 0.0
    %890 = vmatpush2.msra.mxu0 0.0
    %891 = vmatprep.subr.mxu0 0.0
    %892 = vmatpush2.msra.mxu0 0.0
    %893 = vmatprep.subr.mxu0 0.0
    %894 = vmatpush2.msra.mxu0 0.0
    %895 = vmatprep.subr.mxu0 0.0
    %896 = vmatpush2.msra.mxu0 0.0
    %897 = vmatprep.subr.mxu0 0.0
    %898 = vmatpush2.msra.mxu0 0.0
    %899 = vmatprep.subr.mxu0 0.0
    %900 = vmatpush2.msra.mxu0 0.0
    %901 = vmatprep.subr.mxu0 0.0
    %902 = vmatpush2.msra.mxu0 0.0
    %903 = vmatprep.subr.mxu0 0.0
    %904 = vmatpush2.msra.mxu0 0.0
    %905 = vmatprep.subr.mxu0 0.0
    %906 = vmatpush2.msra.mxu0 0.0
    %907 = vmatprep.subr.mxu0 0.0
    %908 = vmatpush2.msra.mxu0 0.0
    %909 = vmatprep.subr.mxu0 0.0
    %910 = vmatpush2.msra.mxu0 0.0
    %911 = vmatprep.subr.mxu0 0.0
    %912 = vmatpush2.msra.mxu0 0.0
    %913 = vmatprep.subr.mxu0 0.0
    %914 = vmatpush2.msra.mxu0 0.0
    %915 = vmatprep.subr.mxu0 0.0
    %916 = vmatpush2.msra.mxu0 0.0
    %917 = vmatprep.subr.mxu0 0.0
    %918 = vmatpush2.msra.mxu0 0.0
    %919 = vmatprep.subr.mxu0 0.0
    %920 = vmatpush2.msra.mxu0 0.0
    %921 = vmatprep.mubr.f32.mxu0 0.0
    %922 = vmatmul.mubr.f32.gmra.mxu0 %v855
    %v923 = vpop.f32.mrf.mxu0
    %v924 = vadd.f32 0.0, %v923
    %v925 = vpop.f32.mrf.mxu0
    %926 = vdwg.mxu0
    %928 = vrot.lane.b32.xlu0 %v845, 96
    %v929 = vpop.permute.xlu0 %928
    %v930 = vsel %vm189, %v929, 0
    %932 = vmatprep.subr.mxu0 0.0
    %933 = vmatpush1.msra.mxu0 0.0
    %934 = vmatprep.subr.mxu0 0.0
    %935 = vmatpush1.msra.mxu0 0.0
    %936 = vmatprep.subr.mxu0 0.0
    %937 = vmatpush1.msra.mxu0 0.0
    %938 = vmatprep.subr.mxu0 0.0
    %939 = vmatpush1.msra.mxu0 0.0
    %940 = vmatprep.subr.mxu0 0.0
    %941 = vmatpush1.msra.mxu0 0.0
    %942 = vmatprep.subr.mxu0 0.0
    %943 = vmatpush1.msra.mxu0 0.0
    %944 = vmatprep.subr.mxu0 0.0
    %945 = vmatpush1.msra.mxu0 0.0
    %946 = vmatprep.subr.mxu0 0.0
    %947 = vmatpush1.msra.mxu0 0.0
    %948 = vmatprep.subr.mxu0 0.0
    %949 = vmatpush1.msra.mxu0 0.0
    %950 = vmatprep.subr.mxu0 0.0
    %951 = vmatpush1.msra.mxu0 0.0
    %952 = vmatprep.subr.mxu0 0.0
    %953 = vmatpush1.msra.mxu0 0.0
    %954 = vmatprep.subr.mxu0 0.0
    %955 = vmatpush1.msra.mxu0 0.0
    %956 = vmatprep.subr.mxu0 0.0
    %957 = vmatpush1.msra.mxu0 %v25
    %958 = vmatprep.subr.mxu0 0.0
    %959 = vmatpush1.msra.mxu0 %v24
    %960 = vmatprep.subr.mxu0 0.0
    %961 = vmatpush1.msra.mxu0 %v23
    %962 = vmatprep.subr.mxu0 0.0
    %963 = vmatpush1.msra.mxu0 %v22
    %964 = vmatprep.subr.mxu0 0.0
    %965 = vmatpush2.msra.mxu0 0.0
    %966 = vmatprep.subr.mxu0 0.0
    %967 = vmatpush2.msra.mxu0 0.0
    %968 = vmatprep.subr.mxu0 0.0
    %969 = vmatpush2.msra.mxu0 0.0
    %970 = vmatprep.subr.mxu0 0.0
    %971 = vmatpush2.msra.mxu0 0.0
    %972 = vmatprep.subr.mxu0 0.0
    %973 = vmatpush2.msra.mxu0 0.0
    %974 = vmatprep.subr.mxu0 0.0
    %975 = vmatpush2.msra.mxu0 0.0
    %976 = vmatprep.subr.mxu0 0.0
    %977 = vmatpush2.msra.mxu0 0.0
    %978 = vmatprep.subr.mxu0 0.0
    %979 = vmatpush2.msra.mxu0 0.0
    %980 = vmatprep.subr.mxu0 0.0
    %981 = vmatpush2.msra.mxu0 0.0
    %982 = vmatprep.subr.mxu0 0.0
    %983 = vmatpush2.msra.mxu0 0.0
    %984 = vmatprep.subr.mxu0 0.0
    %985 = vmatpush2.msra.mxu0 0.0
    %986 = vmatprep.subr.mxu0 0.0
    %987 = vmatpush2.msra.mxu0 0.0
    %988 = vmatprep.subr.mxu0 0.0
    %989 = vmatpush2.msra.mxu0 0.0
    %990 = vmatprep.subr.mxu0 0.0
    %991 = vmatpush2.msra.mxu0 0.0
    %992 = vmatprep.subr.mxu0 0.0
    %993 = vmatpush2.msra.mxu0 0.0
    %994 = vmatprep.subr.mxu0 0.0
    %995 = vmatpush2.msra.mxu0 0.0
    %996 = vmatprep.mubr.f32.mxu0 0.0
    %997 = vmatmul.mubr.f32.gmra.mxu0 %v930
    %v998 = vpop.f32.mrf.mxu0
    %v999 = vadd.f32 %v924, %v998
    %v1000 = vpop.f32.mrf.mxu0
    %1001 = vdwg.mxu0
    %v1002 = vadd.f32 %v999, %v31
    %v1003 = vxor.u32 %v1002, 2147483648
    %v1004 = vmul.f32 %v1003, 1.442695
    %v1005 = vpow.pop %v1004
    %v1006 = vadd.f32 %v1005, 1.0
    %v1007 = vrcp.pop %v1006
    %v1008 = vmul.f32 1.0, %v1007
    %v1009 = vmul.f32 %v1008, 2.0
    %v1010 = vsub.f32 %v1009, 1.0
    %v1011 = vmul.f32 %v1008, %v741
    %1013 = vrot.lane.b32.xlu0 %v1010, 120
    %v1014 = vpop.permute.xlu0 %1013
    %v1016 = vmul.f32 %v1008, %v1014
    %1018 = vrot.lane.b32.xlu0 %v1016, 4
    %v1019 = vpop.permute.xlu0 %1018
    %v1021 = vadd.f32 %v1011, %v1019
    %v1022 = vtanh.pop %v1021
    %1024 = vrot.lane.b32.xlu0 %v1022, 8
    %v1025 = vpop.permute.xlu0 %1024
    %v1027 = vmul.f32 %v1008, %v1025
    %1029 = vrot.lane.b32.xlu0 %v1021, 4
    %v1030 = vpop.permute.xlu0 %1029
    %vm1032 = vcmask 97344
    %1033 = vst.msk [vmem:[#allocation3] sm:$0xff] %vm1032, %v1030
    %v1034 = vld [vmem:[#allocation2 + $0x18] sm:$0xff]
    %1036 = vrot.lane.b32.xlu0 %v851, 32
    %v1037 = vpop.permute.xlu0 %1036
    %v1038 = vsel %vm189, %v1037, 0
    %1040 = vmatprep.subr.mxu0 0.0
    %1041 = vmatpush1.msra.mxu0 0.0
    %1042 = vmatprep.subr.mxu0 0.0
    %1043 = vmatpush1.msra.mxu0 0.0
    %1044 = vmatprep.subr.mxu0 0.0
    %1045 = vmatpush1.msra.mxu0 0.0
    %1046 = vmatprep.subr.mxu0 0.0
    %1047 = vmatpush1.msra.mxu0 0.0
    %1048 = vmatprep.subr.mxu0 0.0
    %1049 = vmatpush1.msra.mxu0 0.0
    %1050 = vmatprep.subr.mxu0 0.0
    %1051 = vmatpush1.msra.mxu0 0.0
    %1052 = vmatprep.subr.mxu0 0.0
    %1053 = vmatpush1.msra.mxu0 0.0
    %1054 = vmatprep.subr.mxu0 0.0
    %1055 = vmatpush1.msra.mxu0 0.0
    %1056 = vmatprep.subr.mxu0 0.0
    %1057 = vmatpush1.msra.mxu0 0.0
    %1058 = vmatprep.subr.mxu0 0.0
    %1059 = vmatpush1.msra.mxu0 0.0
    %1060 = vmatprep.subr.mxu0 0.0
    %1061 = vmatpush1.msra.mxu0 0.0
    %1062 = vmatprep.subr.mxu0 0.0
    %1063 = vmatpush1.msra.mxu0 0.0
    %1064 = vmatprep.subr.mxu0 0.0
    %1065 = vmatpush1.msra.mxu0 %v21
    %1066 = vmatprep.subr.mxu0 0.0
    %1067 = vmatpush1.msra.mxu0 %v20
    %1068 = vmatprep.subr.mxu0 0.0
    %1069 = vmatpush1.msra.mxu0 %v19
    %1070 = vmatprep.subr.mxu0 0.0
    %1071 = vmatpush1.msra.mxu0 %v18
    %1072 = vmatprep.subr.mxu0 0.0
    %1073 = vmatpush2.msra.mxu0 0.0
    %1074 = vmatprep.subr.mxu0 0.0
    %1075 = vmatpush2.msra.mxu0 0.0
    %1076 = vmatprep.subr.mxu0 0.0
    %1077 = vmatpush2.msra.mxu0 0.0
    %1078 = vmatprep.subr.mxu0 0.0
    %1079 = vmatpush2.msra.mxu0 0.0
    %1080 = vmatprep.subr.mxu0 0.0
    %1081 = vmatpush2.msra.mxu0 0.0
    %1082 = vmatprep.subr.mxu0 0.0
    %1083 = vmatpush2.msra.mxu0 0.0
    %1084 = vmatprep.subr.mxu0 0.0
    %1085 = vmatpush2.msra.mxu0 0.0
    %1086 = vmatprep.subr.mxu0 0.0
    %1087 = vmatpush2.msra.mxu0 0.0
    %1088 = vmatprep.subr.mxu0 0.0
    %1089 = vmatpush2.msra.mxu0 0.0
    %1090 = vmatprep.subr.mxu0 0.0
    %1091 = vmatpush2.msra.mxu0 0.0
    %1092 = vmatprep.subr.mxu0 0.0
    %1093 = vmatpush2.msra.mxu0 0.0
    %1094 = vmatprep.subr.mxu0 0.0
    %1095 = vmatpush2.msra.mxu0 0.0
    %1096 = vmatprep.subr.mxu0 0.0
    %1097 = vmatpush2.msra.mxu0 0.0
    %1098 = vmatprep.subr.mxu0 0.0
    %1099 = vmatpush2.msra.mxu0 0.0
    %1100 = vmatprep.subr.mxu0 0.0
    %1101 = vmatpush2.msra.mxu0 0.0
    %1102 = vmatprep.subr.mxu0 0.0
    %1103 = vmatpush2.msra.mxu0 0.0
    %1104 = vmatprep.mubr.f32.mxu0 0.0
    %1105 = vmatmul.mubr.f32.gmra.mxu0 %v1038
    %v1106 = vpop.f32.mrf.mxu0
    %v1107 = vadd.f32 0.0, %v1106
    %v1108 = vpop.f32.mrf.mxu0
    %1109 = vdwg.mxu0
    %v1110 = vadd.f32 %v1034, %v1107
    %v1111 = vxor.u32 %v1110, 2147483648
    %v1112 = vmul.f32 %v1111, 1.442695
    %v1113 = vpow.pop %v1112
    %v1114 = vadd.f32 %v1113, 1.0
    %v1115 = vrcp.pop %v1114
    %v1116 = vmul.f32 1.0, %v1115
    %v1117 = vmul.f32 %v1116, 2.0
    %v1118 = vsub.f32 %v1117, 1.0
    %v1119 = vmul.f32 %v1116, %v845
    %1121 = vrot.lane.b32.xlu0 %v1118, 64
    %v1122 = vpop.permute.xlu0 %1121
    %v1124 = vmul.f32 %v1116, %v1122
    %1126 = vrot.lane.b32.xlu0 %v1124, 32
    %v1127 = vpop.permute.xlu0 %1126
    %v1129 = vadd.f32 %v1119, %v1127
    %v1130 = vtanh.pop %v1129
    %1132 = vrot.lane.b32.xlu0 %v1130, 64
    %v1133 = vpop.permute.xlu0 %1132
    %v1135 = vmul.f32 %v1116, %v1133
    %1137 = vrot.lane.b32.xlu0 %v1027, 116
    %v1138 = vpop.permute.xlu0 %1137
    %v1139 = vsel %vm46, %v1138, 0
    %1141 = vmatprep.subr.mxu0 0.0
    %1142 = vmatpush1.msra.mxu0 0.0
    %1143 = vmatprep.subr.mxu0 0.0
    %1144 = vmatpush1.msra.mxu0 0.0
    %1145 = vmatprep.subr.mxu0 0.0
    %1146 = vmatpush1.msra.mxu0 0.0
    %1147 = vmatprep.subr.mxu0 0.0
    %1148 = vmatpush1.msra.mxu0 0.0
    %1149 = vmatprep.subr.mxu0 0.0
    %1150 = vmatpush1.msra.mxu0 0.0
    %1151 = vmatprep.subr.mxu0 0.0
    %1152 = vmatpush1.msra.mxu0 0.0
    %1153 = vmatprep.subr.mxu0 0.0
    %1154 = vmatpush1.msra.mxu0 0.0
    %1155 = vmatprep.subr.mxu0 0.0
    %1156 = vmatpush1.msra.mxu0 0.0
    %1157 = vmatprep.subr.mxu0 0.0
    %1158 = vmatpush1.msra.mxu0 0.0
    %1159 = vmatprep.subr.mxu0 0.0
    %1160 = vmatpush1.msra.mxu0 0.0
    %1161 = vmatprep.subr.mxu0 0.0
    %1162 = vmatpush1.msra.mxu0 0.0
    %1163 = vmatprep.subr.mxu0 0.0
    %1164 = vmatpush1.msra.mxu0 0.0
    %1165 = vmatprep.subr.mxu0 0.0
    %1166 = vmatpush1.msra.mxu0 0.0
    %1167 = vmatprep.subr.mxu0 0.0
    %1168 = vmatpush1.msra.mxu0 0.0
    %1169 = vmatprep.subr.mxu0 0.0
    %1170 = vmatpush1.msra.mxu0 0.0
    %1171 = vmatprep.subr.mxu0 0.0
    %1172 = vmatpush1.msra.mxu0 %v292
    %1173 = vmatprep.subr.mxu0 0.0
    %1174 = vmatpush2.msra.mxu0 0.0
    %1175 = vmatprep.subr.mxu0 0.0
    %1176 = vmatpush2.msra.mxu0 0.0
    %1177 = vmatprep.subr.mxu0 0.0
    %1178 = vmatpush2.msra.mxu0 0.0
    %1179 = vmatprep.subr.mxu0 0.0
    %1180 = vmatpush2.msra.mxu0 0.0
    %1181 = vmatprep.subr.mxu0 0.0
    %1182 = vmatpush2.msra.mxu0 0.0
    %1183 = vmatprep.subr.mxu0 0.0
    %1184 = vmatpush2.msra.mxu0 0.0
    %1185 = vmatprep.subr.mxu0 0.0
    %1186 = vmatpush2.msra.mxu0 0.0
    %1187 = vmatprep.subr.mxu0 0.0
    %1188 = vmatpush2.msra.mxu0 0.0
    %1189 = vmatprep.subr.mxu0 0.0
    %1190 = vmatpush2.msra.mxu0 0.0
    %1191 = vmatprep.subr.mxu0 0.0
    %1192 = vmatpush2.msra.mxu0 0.0
    %1193 = vmatprep.subr.mxu0 0.0
    %1194 = vmatpush2.msra.mxu0 0.0
    %1195 = vmatprep.subr.mxu0 0.0
    %1196 = vmatpush2.msra.mxu0 0.0
    %1197 = vmatprep.subr.mxu0 0.0
    %1198 = vmatpush2.msra.mxu0 0.0
    %1199 = vmatprep.subr.mxu0 0.0
    %1200 = vmatpush2.msra.mxu0 0.0
    %1201 = vmatprep.subr.mxu0 0.0
    %1202 = vmatpush2.msra.mxu0 0.0
    %1203 = vmatprep.subr.mxu0 0.0
    %1204 = vmatpush2.msra.mxu0 0.0
    %1205 = vmatprep.mubr.f32.mxu0 0.0
    %1206 = vmatmul.mubr.f32.gmra.mxu0 %v1139
    %v1207 = vpop.f32.mrf.mxu0
    %v1208 = vadd.f32 0.0, %v1207
    %v1209 = vpop.f32.mrf.mxu0
    %1210 = vdwg.mxu0
    %1212 = vrot.lane.b32.xlu0 %v1129, 96
    %v1213 = vpop.permute.xlu0 %1212
    %v1214 = vsel %vm189, %v1213, 0
    %1216 = vmatprep.subr.mxu0 0.0
    %1217 = vmatpush1.msra.mxu0 0.0
    %1218 = vmatprep.subr.mxu0 0.0
    %1219 = vmatpush1.msra.mxu0 0.0
    %1220 = vmatprep.subr.mxu0 0.0
    %1221 = vmatpush1.msra.mxu0 0.0
    %1222 = vmatprep.subr.mxu0 0.0
    %1223 = vmatpush1.msra.mxu0 0.0
    %1224 = vmatprep.subr.mxu0 0.0
    %1225 = vmatpush1.msra.mxu0 0.0
    %1226 = vmatprep.subr.mxu0 0.0
    %1227 = vmatpush1.msra.mxu0 0.0
    %1228 = vmatprep.subr.mxu0 0.0
    %1229 = vmatpush1.msra.mxu0 0.0
    %1230 = vmatprep.subr.mxu0 0.0
    %1231 = vmatpush1.msra.mxu0 0.0
    %1232 = vmatprep.subr.mxu0 0.0
    %1233 = vmatpush1.msra.mxu0 0.0
    %1234 = vmatprep.subr.mxu0 0.0
    %1235 = vmatpush1.msra.mxu0 0.0
    %1236 = vmatprep.subr.mxu0 0.0
    %1237 = vmatpush1.msra.mxu0 0.0
    %1238 = vmatprep.subr.mxu0 0.0
    %1239 = vmatpush1.msra.mxu0 0.0
    %1240 = vmatprep.subr.mxu0 0.0
    %1241 = vmatpush1.msra.mxu0 %v25
    %1242 = vmatprep.subr.mxu0 0.0
    %1243 = vmatpush1.msra.mxu0 %v24
    %1244 = vmatprep.subr.mxu0 0.0
    %1245 = vmatpush1.msra.mxu0 %v23
    %1246 = vmatprep.subr.mxu0 0.0
    %1247 = vmatpush1.msra.mxu0 %v22
    %1248 = vmatprep.subr.mxu0 0.0
    %1249 = vmatpush2.msra.mxu0 0.0
    %1250 = vmatprep.subr.mxu0 0.0
    %1251 = vmatpush2.msra.mxu0 0.0
    %1252 = vmatprep.subr.mxu0 0.0
    %1253 = vmatpush2.msra.mxu0 0.0
    %1254 = vmatprep.subr.mxu0 0.0
    %1255 = vmatpush2.msra.mxu0 0.0
    %1256 = vmatprep.subr.mxu0 0.0
    %1257 = vmatpush2.msra.mxu0 0.0
    %1258 = vmatprep.subr.mxu0 0.0
    %1259 = vmatpush2.msra.mxu0 0.0
    %1260 = vmatprep.subr.mxu0 0.0
    %1261 = vmatpush2.msra.mxu0 0.0
    %1262 = vmatprep.subr.mxu0 0.0
    %1263 = vmatpush2.msra.mxu0 0.0
    %1264 = vmatprep.subr.mxu0 0.0
    %1265 = vmatpush2.msra.mxu0 0.0
    %1266 = vmatprep.subr.mxu0 0.0
    %1267 = vmatpush2.msra.mxu0 0.0
    %1268 = vmatprep.subr.mxu0 0.0
    %1269 = vmatpush2.msra.mxu0 0.0
    %1270 = vmatprep.subr.mxu0 0.0
    %1271 = vmatpush2.msra.mxu0 0.0
    %1272 = vmatprep.subr.mxu0 0.0
    %1273 = vmatpush2.msra.mxu0 0.0
    %1274 = vmatprep.subr.mxu0 0.0
    %1275 = vmatpush2.msra.mxu0 0.0
    %1276 = vmatprep.subr.mxu0 0.0
    %1277 = vmatpush2.msra.mxu0 0.0
    %1278 = vmatprep.subr.mxu0 0.0
    %1279 = vmatpush2.msra.mxu0 0.0
    %1280 = vmatprep.mubr.f32.mxu0 0.0
    %1281 = vmatmul.mubr.f32.gmra.mxu0 %v1214
    %v1282 = vpop.f32.mrf.mxu0
    %v1283 = vadd.f32 %v1208, %v1282
    %v1284 = vpop.f32.mrf.mxu0
    %1285 = vdwg.mxu0
    %v1286 = vadd.f32 %v1283, %v31
    %v1287 = vxor.u32 %v1286, 2147483648
    %v1288 = vmul.f32 %v1287, 1.442695
    %v1289 = vpow.pop %v1288
    %v1290 = vadd.f32 %v1289, 1.0
    %v1291 = vrcp.pop %v1290
    %v1292 = vmul.f32 1.0, %v1291
    %v1293 = vmul.f32 %v1292, 2.0
    %v1294 = vsub.f32 %v1293, 1.0
    %v1295 = vmul.f32 %v1292, %v1021
    %1297 = vrot.lane.b32.xlu0 %v1294, 120
    %v1298 = vpop.permute.xlu0 %1297
    %v1300 = vmul.f32 %v1292, %v1298
    %1302 = vrot.lane.b32.xlu0 %v1300, 4
    %v1303 = vpop.permute.xlu0 %1302
    %v1305 = vadd.f32 %v1295, %v1303
    %v1306 = vtanh.pop %v1305
    %1308 = vrot.lane.b32.xlu0 %v1306, 8
    %v1309 = vpop.permute.xlu0 %1308
    %v1311 = vmul.f32 %v1292, %v1309
    %1313 = vrot.lane.b32.xlu0 %v1305, 8
    %v1314 = vpop.permute.xlu0 %1313
    %vm1316 = vcmask 130144
    %1317 = vst.msk [vmem:[#allocation3] sm:$0xff] %vm1316, %v1314
    %v1318 = vld [vmem:[#allocation2 + $0x20] sm:$0xff]
    %1320 = vrot.lane.b32.xlu0 %v1135, 32
    %v1321 = vpop.permute.xlu0 %1320
    %v1322 = vsel %vm189, %v1321, 0
    %1324 = vmatprep.subr.mxu0 0.0
    %1325 = vmatpush1.msra.mxu0 0.0
    %1326 = vmatprep.subr.mxu0 0.0
    %1327 = vmatpush1.msra.mxu0 0.0
    %1328 = vmatprep.subr.mxu0 0.0
    %1329 = vmatpush1.msra.mxu0 0.0
    %1330 = vmatprep.subr.mxu0 0.0
    %1331 = vmatpush1.msra.mxu0 0.0
    %1332 = vmatprep.subr.mxu0 0.0
    %1333 = vmatpush1.msra.mxu0 0.0
    %1334 = vmatprep.subr.mxu0 0.0
    %1335 = vmatpush1.msra.mxu0 0.0
    %1336 = vmatprep.subr.mxu0 0.0
    %1337 = vmatpush1.msra.mxu0 0.0
    %1338 = vmatprep.subr.mxu0 0.0
    %1339 = vmatpush1.msra.mxu0 0.0
    %1340 = vmatprep.subr.mxu0 0.0
    %1341 = vmatpush1.msra.mxu0 0.0
    %1342 = vmatprep.subr.mxu0 0.0
    %1343 = vmatpush1.msra.mxu0 0.0
    %1344 = vmatprep.subr.mxu0 0.0
    %1345 = vmatpush1.msra.mxu0 0.0
    %1346 = vmatprep.subr.mxu0 0.0
    %1347 = vmatpush1.msra.mxu0 0.0
    %1348 = vmatprep.subr.mxu0 0.0
    %1349 = vmatpush1.msra.mxu0 %v21
    %1350 = vmatprep.subr.mxu0 0.0
    %1351 = vmatpush1.msra.mxu0 %v20
    %1352 = vmatprep.subr.mxu0 0.0
    %1353 = vmatpush1.msra.mxu0 %v19
    %1354 = vmatprep.subr.mxu0 0.0
    %1355 = vmatpush1.msra.mxu0 %v18
    %1356 = vmatprep.subr.mxu0 0.0
    %1357 = vmatpush2.msra.mxu0 0.0
    %1358 = vmatprep.subr.mxu0 0.0
    %1359 = vmatpush2.msra.mxu0 0.0
    %1360 = vmatprep.subr.mxu0 0.0
    %1361 = vmatpush2.msra.mxu0 0.0
    %1362 = vmatprep.subr.mxu0 0.0
    %1363 = vmatpush2.msra.mxu0 0.0
    %1364 = vmatprep.subr.mxu0 0.0
    %1365 = vmatpush2.msra.mxu0 0.0
    %1366 = vmatprep.subr.mxu0 0.0
    %1367 = vmatpush2.msra.mxu0 0.0
    %1368 = vmatprep.subr.mxu0 0.0
    %1369 = vmatpush2.msra.mxu0 0.0
    %1370 = vmatprep.subr.mxu0 0.0
    %1371 = vmatpush2.msra.mxu0 0.0
    %1372 = vmatprep.subr.mxu0 0.0
    %1373 = vmatpush2.msra.mxu0 0.0
    %1374 = vmatprep.subr.mxu0 0.0
    %1375 = vmatpush2.msra.mxu0 0.0
    %1376 = vmatprep.subr.mxu0 0.0
    %1377 = vmatpush2.msra.mxu0 0.0
    %1378 = vmatprep.subr.mxu0 0.0
    %1379 = vmatpush2.msra.mxu0 0.0
    %1380 = vmatprep.subr.mxu0 0.0
    %1381 = vmatpush2.msra.mxu0 0.0
    %1382 = vmatprep.subr.mxu0 0.0
    %1383 = vmatpush2.msra.mxu0 0.0
    %1384 = vmatprep.subr.mxu0 0.0
    %1385 = vmatpush2.msra.mxu0 0.0
    %1386 = vmatprep.subr.mxu0 0.0
    %1387 = vmatpush2.msra.mxu0 0.0
    %1388 = vmatprep.mubr.f32.mxu0 0.0
    %1389 = vmatmul.mubr.f32.gmra.mxu0 %v1322
    %v1390 = vpop.f32.mrf.mxu0
    %v1391 = vadd.f32 0.0, %v1390
    %v1392 = vpop.f32.mrf.mxu0
    %1393 = vdwg.mxu0
    %v1394 = vadd.f32 %v1318, %v1391
    %v1395 = vxor.u32 %v1394, 2147483648
    %v1396 = vmul.f32 %v1395, 1.442695
    %v1397 = vpow.pop %v1396
    %v1398 = vadd.f32 %v1397, 1.0
    %v1399 = vrcp.pop %v1398
    %v1400 = vmul.f32 1.0, %v1399
    %v1401 = vmul.f32 %v1400, 2.0
    %v1402 = vsub.f32 %v1401, 1.0
    %v1403 = vmul.f32 %v1400, %v1129
    %1405 = vrot.lane.b32.xlu0 %v1402, 64
    %v1406 = vpop.permute.xlu0 %1405
    %v1408 = vmul.f32 %v1400, %v1406
    %1410 = vrot.lane.b32.xlu0 %v1408, 32
    %v1411 = vpop.permute.xlu0 %1410
    %v1413 = vadd.f32 %v1403, %v1411
    %v1414 = vtanh.pop %v1413
    %1416 = vrot.lane.b32.xlu0 %v1414, 64
    %v1417 = vpop.permute.xlu0 %1416
    %v1419 = vmul.f32 %v1400, %v1417
    %1421 = vrot.lane.b32.xlu0 %v1311, 116
    %v1422 = vpop.permute.xlu0 %1421
    %v1423 = vsel %vm46, %v1422, 0
    %1425 = vmatprep.subr.mxu0 0.0
    %1426 = vmatpush1.msra.mxu0 0.0
    %1427 = vmatprep.subr.mxu0 0.0
    %1428 = vmatpush1.msra.mxu0 0.0
    %1429 = vmatprep.subr.mxu0 0.0
    %1430 = vmatpush1.msra.mxu0 0.0
    %1431 = vmatprep.subr.mxu0 0.0
    %1432 = vmatpush1.msra.mxu0 0.0
    %1433 = vmatprep.subr.mxu0 0.0
    %1434 = vmatpush1.msra.mxu0 0.0
    %1435 = vmatprep.subr.mxu0 0.0
    %1436 = vmatpush1.msra.mxu0 0.0
    %1437 = vmatprep.subr.mxu0 0.0
    %1438 = vmatpush1.msra.mxu0 0.0
    %1439 = vmatprep.subr.mxu0 0.0
    %1440 = vmatpush1.msra.mxu0 0.0
    %1441 = vmatprep.subr.mxu0 0.0
    %1442 = vmatpush1.msra.mxu0 0.0
    %1443 = vmatprep.subr.mxu0 0.0
    %1444 = vmatpush1.msra.mxu0 0.0
    %1445 = vmatprep.subr.mxu0 0.0
    %1446 = vmatpush1.msra.mxu0 0.0
    %1447 = vmatprep.subr.mxu0 0.0
    %1448 = vmatpush1.msra.mxu0 0.0
    %1449 = vmatprep.subr.mxu0 0.0
    %1450 = vmatpush1.msra.mxu0 0.0
    %1451 = vmatprep.subr.mxu0 0.0
    %1452 = vmatpush1.msra.mxu0 0.0
    %1453 = vmatprep.subr.mxu0 0.0
    %1454 = vmatpush1.msra.mxu0 0.0
    %1455 = vmatprep.subr.mxu0 0.0
    %1456 = vmatpush1.msra.mxu0 %v292
    %1457 = vmatprep.subr.mxu0 0.0
    %1458 = vmatpush2.msra.mxu0 0.0
    %1459 = vmatprep.subr.mxu0 0.0
    %1460 = vmatpush2.msra.mxu0 0.0
    %1461 = vmatprep.subr.mxu0 0.0
    %1462 = vmatpush2.msra.mxu0 0.0
    %1463 = vmatprep.subr.mxu0 0.0
    %1464 = vmatpush2.msra.mxu0 0.0
    %1465 = vmatprep.subr.mxu0 0.0
    %1466 = vmatpush2.msra.mxu0 0.0
    %1467 = vmatprep.subr.mxu0 0.0
    %1468 = vmatpush2.msra.mxu0 0.0
    %1469 = vmatprep.subr.mxu0 0.0
    %1470 = vmatpush2.msra.mxu0 0.0
    %1471 = vmatprep.subr.mxu0 0.0
    %1472 = vmatpush2.msra.mxu0 0.0
    %1473 = vmatprep.subr.mxu0 0.0
    %1474 = vmatpush2.msra.mxu0 0.0
    %1475 = vmatprep.subr.mxu0 0.0
    %1476 = vmatpush2.msra.mxu0 0.0
    %1477 = vmatprep.subr.mxu0 0.0
    %1478 = vmatpush2.msra.mxu0 0.0
    %1479 = vmatprep.subr.mxu0 0.0
    %1480 = vmatpush2.msra.mxu0 0.0
    %1481 = vmatprep.subr.mxu0 0.0
    %1482 = vmatpush2.msra.mxu0 0.0
    %1483 = vmatprep.subr.mxu0 0.0
    %1484 = vmatpush2.msra.mxu0 0.0
    %1485 = vmatprep.subr.mxu0 0.0
    %1486 = vmatpush2.msra.mxu0 0.0
    %1487 = vmatprep.subr.mxu0 0.0
    %1488 = vmatpush2.msra.mxu0 0.0
    %1489 = vmatprep.mubr.f32.mxu0 0.0
    %1490 = vmatmul.mubr.f32.gmra.mxu0 %v1423
    %v1491 = vpop.f32.mrf.mxu0
    %v1492 = vadd.f32 0.0, %v1491
    %v1493 = vpop.f32.mrf.mxu0
    %1494 = vdwg.mxu0
    %1496 = vrot.lane.b32.xlu0 %v1413, 96
    %v1497 = vpop.permute.xlu0 %1496
    %v1498 = vsel %vm189, %v1497, 0
    %1500 = vmatprep.subr.mxu0 0.0
    %1501 = vmatpush1.msra.mxu0 0.0
    %1502 = vmatprep.subr.mxu0 0.0
    %1503 = vmatpush1.msra.mxu0 0.0
    %1504 = vmatprep.subr.mxu0 0.0
    %1505 = vmatpush1.msra.mxu0 0.0
    %1506 = vmatprep.subr.mxu0 0.0
    %1507 = vmatpush1.msra.mxu0 0.0
    %1508 = vmatprep.subr.mxu0 0.0
    %1509 = vmatpush1.msra.mxu0 0.0
    %1510 = vmatprep.subr.mxu0 0.0
    %1511 = vmatpush1.msra.mxu0 0.0
    %1512 = vmatprep.subr.mxu0 0.0
    %1513 = vmatpush1.msra.mxu0 0.0
    %1514 = vmatprep.subr.mxu0 0.0
    %1515 = vmatpush1.msra.mxu0 0.0
    %1516 = vmatprep.subr.mxu0 0.0
    %1517 = vmatpush1.msra.mxu0 0.0
    %1518 = vmatprep.subr.mxu0 0.0
    %1519 = vmatpush1.msra.mxu0 0.0
    %1520 = vmatprep.subr.mxu0 0.0
    %1521 = vmatpush1.msra.mxu0 0.0
    %1522 = vmatprep.subr.mxu0 0.0
    %1523 = vmatpush1.msra.mxu0 0.0
    %1524 = vmatprep.subr.mxu0 0.0
    %1525 = vmatpush1.msra.mxu0 %v25
    %1526 = vmatprep.subr.mxu0 0.0
    %1527 = vmatpush1.msra.mxu0 %v24
    %1528 = vmatprep.subr.mxu0 0.0
    %1529 = vmatpush1.msra.mxu0 %v23
    %1530 = vmatprep.subr.mxu0 0.0
    %1531 = vmatpush1.msra.mxu0 %v22
    %1532 = vmatprep.subr.mxu0 0.0
    %1533 = vmatpush2.msra.mxu0 0.0
    %1534 = vmatprep.subr.mxu0 0.0
    %1535 = vmatpush2.msra.mxu0 0.0
    %1536 = vmatprep.subr.mxu0 0.0
    %1537 = vmatpush2.msra.mxu0 0.0
    %1538 = vmatprep.subr.mxu0 0.0
    %1539 = vmatpush2.msra.mxu0 0.0
    %1540 = vmatprep.subr.mxu0 0.0
    %1541 = vmatpush2.msra.mxu0 0.0
    %1542 = vmatprep.subr.mxu0 0.0
    %1543 = vmatpush2.msra.mxu0 0.0
    %1544 = vmatprep.subr.mxu0 0.0
    %1545 = vmatpush2.msra.mxu0 0.0
    %1546 = vmatprep.subr.mxu0 0.0
    %1547 = vmatpush2.msra.mxu0 0.0
    %1548 = vmatprep.subr.mxu0 0.0
    %1549 = vmatpush2.msra.mxu0 0.0
    %1550 = vmatprep.subr.mxu0 0.0
    %1551 = vmatpush2.msra.mxu0 0.0
    %1552 = vmatprep.subr.mxu0 0.0
    %1553 = vmatpush2.msra.mxu0 0.0
    %1554 = vmatprep.subr.mxu0 0.0
    %1555 = vmatpush2.msra.mxu0 0.0
    %1556 = vmatprep.subr.mxu0 0.0
    %1557 = vmatpush2.msra.mxu0 0.0
    %1558 = vmatprep.subr.mxu0 0.0
    %1559 = vmatpush2.msra.mxu0 0.0
    %1560 = vmatprep.subr.mxu0 0.0
    %1561 = vmatpush2.msra.mxu0 0.0
    %1562 = vmatprep.subr.mxu0 0.0
    %1563 = vmatpush2.msra.mxu0 0.0
    %1564 = vmatprep.mubr.f32.mxu0 0.0
    %1565 = vmatmul.mubr.f32.gmra.mxu0 %v1498
    %v1566 = vpop.f32.mrf.mxu0
    %v1567 = vadd.f32 %v1492, %v1566
    %v1568 = vpop.f32.mrf.mxu0
    %1569 = vdwg.mxu0
    %v1570 = vadd.f32 %v1567, %v31
    %v1571 = vxor.u32 %v1570, 2147483648
    %v1572 = vmul.f32 %v1571, 1.442695
    %v1573 = vpow.pop %v1572
    %v1574 = vadd.f32 %v1573, 1.0
    %v1575 = vrcp.pop %v1574
    %v1576 = vmul.f32 1.0, %v1575
    %v1577 = vmul.f32 %v1576, 2.0
    %v1578 = vsub.f32 %v1577, 1.0
    %v1579 = vmul.f32 %v1576, %v1305
    %1581 = vrot.lane.b32.xlu0 %v1578, 120
    %v1582 = vpop.permute.xlu0 %1581
    %v1584 = vmul.f32 %v1576, %v1582
    %1586 = vrot.lane.b32.xlu0 %v1584, 4
    %v1587 = vpop.permute.xlu0 %1586
    %v1589 = vadd.f32 %v1579, %v1587
    %v1590 = vtanh.pop %v1589
    %1592 = vrot.lane.b32.xlu0 %v1590, 8
    %v1593 = vpop.permute.xlu0 %1592
    %v1595 = vmul.f32 %v1576, %v1593
    %1597 = vrot.lane.b32.xlu0 %v1589, 12
    %v1598 = vpop.permute.xlu0 %1597
    %vm1600 = vcmask 162944
    %1601 = vst.msk [vmem:[#allocation3] sm:$0xff] %vm1600, %v1598
    %v1602 = vld [vmem:[#allocation2 + $0x28] sm:$0xff]
    %1604 = vrot.lane.b32.xlu0 %v1419, 32
    %v1605 = vpop.permute.xlu0 %1604
    %v1606 = vsel %vm189, %v1605, 0
    %1608 = vmatprep.subr.mxu0 0.0
    %1609 = vmatpush1.msra.mxu0 0.0
    %1610 = vmatprep.subr.mxu0 0.0
    %1611 = vmatpush1.msra.mxu0 0.0
    %1612 = vmatprep.subr.mxu0 0.0
    %1613 = vmatpush1.msra.mxu0 0.0
    %1614 = vmatprep.subr.mxu0 0.0
    %1615 = vmatpush1.msra.mxu0 0.0
    %1616 = vmatprep.subr.mxu0 0.0
    %1617 = vmatpush1.msra.mxu0 0.0
    %1618 = vmatprep.subr.mxu0 0.0
    %1619 = vmatpush1.msra.mxu0 0.0
    %1620 = vmatprep.subr.mxu0 0.0
    %1621 = vmatpush1.msra.mxu0 0.0
    %1622 = vmatprep.subr.mxu0 0.0
    %1623 = vmatpush1.msra.mxu0 0.0
    %1624 = vmatprep.subr.mxu0 0.0
    %1625 = vmatpush1.msra.mxu0 0.0
    %1626 = vmatprep.subr.mxu0 0.0
    %1627 = vmatpush1.msra.mxu0 0.0
    %1628 = vmatprep.subr.mxu0 0.0
    %1629 = vmatpush1.msra.mxu0 0.0
    %1630 = vmatprep.subr.mxu0 0.0
    %1631 = vmatpush1.msra.mxu0 0.0
    %1632 = vmatprep.subr.mxu0 0.0
    %1633 = vmatpush1.msra.mxu0 %v21
    %1634 = vmatprep.subr.mxu0 0.0
    %1635 = vmatpush1.msra.mxu0 %v20
    %1636 = vmatprep.subr.mxu0 0.0
    %1637 = vmatpush1.msra.mxu0 %v19
    %1638 = vmatprep.subr.mxu0 0.0
    %1639 = vmatpush1.msra.mxu0 %v18
    %1640 = vmatprep.subr.mxu0 0.0
    %1641 = vmatpush2.msra.mxu0 0.0
    %1642 = vmatprep.subr.mxu0 0.0
    %1643 = vmatpush2.msra.mxu0 0.0
    %1644 = vmatprep.subr.mxu0 0.0
    %1645 = vmatpush2.msra.mxu0 0.0
    %1646 = vmatprep.subr.mxu0 0.0
    %1647 = vmatpush2.msra.mxu0 0.0
    %1648 = vmatprep.subr.mxu0 0.0
    %1649 = vmatpush2.msra.mxu0 0.0
    %1650 = vmatprep.subr.mxu0 0.0
    %1651 = vmatpush2.msra.mxu0 0.0
    %1652 = vmatprep.subr.mxu0 0.0
    %1653 = vmatpush2.msra.mxu0 0.0
    %1654 = vmatprep.subr.mxu0 0.0
    %1655 = vmatpush2.msra.mxu0 0.0
    %1656 = vmatprep.subr.mxu0 0.0
    %1657 = vmatpush2.msra.mxu0 0.0
    %1658 = vmatprep.subr.mxu0 0.0
    %1659 = vmatpush2.msra.mxu0 0.0
    %1660 = vmatprep.subr.mxu0 0.0
    %1661 = vmatpush2.msra.mxu0 0.0
    %1662 = vmatprep.subr.mxu0 0.0
    %1663 = vmatpush2.msra.mxu0 0.0
    %1664 = vmatprep.subr.mxu0 0.0
    %1665 = vmatpush2.msra.mxu0 0.0
    %1666 = vmatprep.subr.mxu0 0.0
    %1667 = vmatpush2.msra.mxu0 0.0
    %1668 = vmatprep.subr.mxu0 0.0
    %1669 = vmatpush2.msra.mxu0 0.0
    %1670 = vmatprep.subr.mxu0 0.0
    %1671 = vmatpush2.msra.mxu0 0.0
    %1672 = vmatprep.mubr.f32.mxu0 0.0
    %1673 = vmatmul.mubr.f32.gmra.mxu0 %v1606
    %v1674 = vpop.f32.mrf.mxu0
    %v1675 = vadd.f32 0.0, %v1674
    %v1676 = vpop.f32.mrf.mxu0
    %1677 = vdwg.mxu0
    %v1678 = vadd.f32 %v1602, %v1675
    %v1679 = vxor.u32 %v1678, 2147483648
    %v1680 = vmul.f32 %v1679, 1.442695
    %v1681 = vpow.pop %v1680
    %v1682 = vadd.f32 %v1681, 1.0
    %v1683 = vrcp.pop %v1682
    %v1684 = vmul.f32 1.0, %v1683
    %v1685 = vmul.f32 %v1684, 2.0
    %v1686 = vsub.f32 %v1685, 1.0
    %v1687 = vmul.f32 %v1684, %v1413
    %1689 = vrot.lane.b32.xlu0 %v1686, 64
    %v1690 = vpop.permute.xlu0 %1689
    %v1692 = vmul.f32 %v1684, %v1690
    %1694 = vrot.lane.b32.xlu0 %v1692, 32
    %v1695 = vpop.permute.xlu0 %1694
    %v1697 = vadd.f32 %v1687, %v1695
    %v1698 = vtanh.pop %v1697
    %1700 = vrot.lane.b32.xlu0 %v1698, 64
    %v1701 = vpop.permute.xlu0 %1700
    %v1703 = vmul.f32 %v1684, %v1701
    %1705 = vrot.lane.b32.xlu0 %v1595, 116
    %v1706 = vpop.permute.xlu0 %1705
    %v1707 = vsel %vm46, %v1706, 0
    %1709 = vmatprep.subr.mxu0 0.0
    %1710 = vmatpush1.msra.mxu0 0.0
    %1711 = vmatprep.subr.mxu0 0.0
    %1712 = vmatpush1.msra.mxu0 0.0
    %1713 = vmatprep.subr.mxu0 0.0
    %1714 = vmatpush1.msra.mxu0 0.0
    %1715 = vmatprep.subr.mxu0 0.0
    %1716 = vmatpush1.msra.mxu0 0.0
    %1717 = vmatprep.subr.mxu0 0.0
    %1718 = vmatpush1.msra.mxu0 0.0
    %1719 = vmatprep.subr.mxu0 0.0
    %1720 = vmatpush1.msra.mxu0 0.0
    %1721 = vmatprep.subr.mxu0 0.0
    %1722 = vmatpush1.msra.mxu0 0.0
    %1723 = vmatprep.subr.mxu0 0.0
    %1724 = vmatpush1.msra.mxu0 0.0
    %1725 = vmatprep.subr.mxu0 0.0
    %1726 = vmatpush1.msra.mxu0 0.0
    %1727 = vmatprep.subr.mxu0 0.0
    %1728 = vmatpush1.msra.mxu0 0.0
    %1729 = vmatprep.subr.mxu0 0.0
    %1730 = vmatpush1.msra.mxu0 0.0
    %1731 = vmatprep.subr.mxu0 0.0
    %1732 = vmatpush1.msra.mxu0 0.0
    %1733 = vmatprep.subr.mxu0 0.0
    %1734 = vmatpush1.msra.mxu0 0.0
    %1735 = vmatprep.subr.mxu0 0.0
    %1736 = vmatpush1.msra.mxu0 0.0
    %1737 = vmatprep.subr.mxu0 0.0
    %1738 = vmatpush1.msra.mxu0 0.0
    %1739 = vmatprep.subr.mxu0 0.0
    %1740 = vmatpush1.msra.mxu0 %v292
    %1741 = vmatprep.subr.mxu0 0.0
    %1742 = vmatpush2.msra.mxu0 0.0
    %1743 = vmatprep.subr.mxu0 0.0
    %1744 = vmatpush2.msra.mxu0 0.0
    %1745 = vmatprep.subr.mxu0 0.0
    %1746 = vmatpush2.msra.mxu0 0.0
    %1747 = vmatprep.subr.mxu0 0.0
    %1748 = vmatpush2.msra.mxu0 0.0
    %1749 = vmatprep.subr.mxu0 0.0
    %1750 = vmatpush2.msra.mxu0 0.0
    %1751 = vmatprep.subr.mxu0 0.0
    %1752 = vmatpush2.msra.mxu0 0.0
    %1753 = vmatprep.subr.mxu0 0.0
    %1754 = vmatpush2.msra.mxu0 0.0
    %1755 = vmatprep.subr.mxu0 0.0
    %1756 = vmatpush2.msra.mxu0 0.0
    %1757 = vmatprep.subr.mxu0 0.0
    %1758 = vmatpush2.msra.mxu0 0.0
    %1759 = vmatprep.subr.mxu0 0.0
    %1760 = vmatpush2.msra.mxu0 0.0
    %1761 = vmatprep.subr.mxu0 0.0
    %1762 = vmatpush2.msra.mxu0 0.0
    %1763 = vmatprep.subr.mxu0 0.0
    %1764 = vmatpush2.msra.mxu0 0.0
    %1765 = vmatprep.subr.mxu0 0.0
    %1766 = vmatpush2.msra.mxu0 0.0
    %1767 = vmatprep.subr.mxu0 0.0
    %1768 = vmatpush2.msra.mxu0 0.0
    %1769 = vmatprep.subr.mxu0 0.0
    %1770 = vmatpush2.msra.mxu0 0.0
    %1771 = vmatprep.subr.mxu0 0.0
    %1772 = vmatpush2.msra.mxu0 0.0
    %1773 = vmatprep.mubr.f32.mxu0 0.0
    %1774 = vmatmul.mubr.f32.gmra.mxu0 %v1707
    %v1775 = vpop.f32.mrf.mxu0
    %v1776 = vadd.f32 0.0, %v1775
    %v1777 = vpop.f32.mrf.mxu0
    %1778 = vdwg.mxu0
    %1780 = vrot.lane.b32.xlu0 %v1697, 96
    %v1781 = vpop.permute.xlu0 %1780
    %v1782 = vsel %vm189, %v1781, 0
    %1784 = vmatprep.subr.mxu0 0.0
    %1785 = vmatpush1.msra.mxu0 0.0
    %1786 = vmatprep.subr.mxu0 0.0
    %1787 = vmatpush1.msra.mxu0 0.0
    %1788 = vmatprep.subr.mxu0 0.0
    %1789 = vmatpush1.msra.mxu0 0.0
    %1790 = vmatprep.subr.mxu0 0.0
    %1791 = vmatpush1.msra.mxu0 0.0
    %1792 = vmatprep.subr.mxu0 0.0
    %1793 = vmatpush1.msra.mxu0 0.0
    %1794 = vmatprep.subr.mxu0 0.0
    %1795 = vmatpush1.msra.mxu0 0.0
    %1796 = vmatprep.subr.mxu0 0.0
    %1797 = vmatpush1.msra.mxu0 0.0
    %1798 = vmatprep.subr.mxu0 0.0
    %1799 = vmatpush1.msra.mxu0 0.0
    %1800 = vmatprep.subr.mxu0 0.0
    %1801 = vmatpush1.msra.mxu0 0.0
    %1802 = vmatprep.subr.mxu0 0.0
    %1803 = vmatpush1.msra.mxu0 0.0
    %1804 = vmatprep.subr.mxu0 0.0
    %1805 = vmatpush1.msra.mxu0 0.0
    %1806 = vmatprep.subr.mxu0 0.0
    %1807 = vmatpush1.msra.mxu0 0.0
    %1808 = vmatprep.subr.mxu0 0.0
    %1809 = vmatpush1.msra.mxu0 %v25
    %1810 = vmatprep.subr.mxu0 0.0
    %1811 = vmatpush1.msra.mxu0 %v24
    %1812 = vmatprep.subr.mxu0 0.0
    %1813 = vmatpush1.msra.mxu0 %v23
    %1814 = vmatprep.subr.mxu0 0.0
    %1815 = vmatpush1.msra.mxu0 %v22
    %1816 = vmatprep.subr.mxu0 0.0
    %1817 = vmatpush2.msra.mxu0 0.0
    %1818 = vmatprep.subr.mxu0 0.0
    %1819 = vmatpush2.msra.mxu0 0.0
    %1820 = vmatprep.subr.mxu0 0.0
    %1821 = vmatpush2.msra.mxu0 0.0
    %1822 = vmatprep.subr.mxu0 0.0
    %1823 = vmatpush2.msra.mxu0 0.0
    %1824 = vmatprep.subr.mxu0 0.0
    %1825 = vmatpush2.msra.mxu0 0.0
    %1826 = vmatprep.subr.mxu0 0.0
    %1827 = vmatpush2.msra.mxu0 0.0
    %1828 = vmatprep.subr.mxu0 0.0
    %1829 = vmatpush2.msra.mxu0 0.0
    %1830 = vmatprep.subr.mxu0 0.0
    %1831 = vmatpush2.msra.mxu0 0.0
    %1832 = vmatprep.subr.mxu0 0.0
    %1833 = vmatpush2.msra.mxu0 0.0
    %1834 = vmatprep.subr.mxu0 0.0
    %1835 = vmatpush2.msra.mxu0 0.0
    %1836 = vmatprep.subr.mxu0 0.0
    %1837 = vmatpush2.msra.mxu0 0.0
    %1838 = vmatprep.subr.mxu0 0.0
    %1839 = vmatpush2.msra.mxu0 0.0
    %1840 = vmatprep.subr.mxu0 0.0
    %1841 = vmatpush2.msra.mxu0 0.0
    %1842 = vmatprep.subr.mxu0 0.0
    %1843 = vmatpush2.msra.mxu0 0.0
    %1844 = vmatprep.subr.mxu0 0.0
    %1845 = vmatpush2.msra.mxu0 0.0
    %1846 = vmatprep.subr.mxu0 0.0
    %1847 = vmatpush2.msra.mxu0 0.0
    %1848 = vmatprep.mubr.f32.mxu0 0.0
    %1849 = vmatmul.mubr.f32.gmra.mxu0 %v1782
    %v1850 = vpop.f32.mrf.mxu0
    %v1851 = vadd.f32 %v1776, %v1850
    %v1852 = vpop.f32.mrf.mxu0
    %1853 = vdwg.mxu0
    %v1854 = vadd.f32 %v1851, %v31
    %v1855 = vxor.u32 %v1854, 2147483648
    %v1856 = vmul.f32 %v1855, 1.442695
    %v1857 = vpow.pop %v1856
    %v1858 = vadd.f32 %v1857, 1.0
    %v1859 = vrcp.pop %v1858
    %v1860 = vmul.f32 1.0, %v1859
    %v1861 = vmul.f32 %v1860, 2.0
    %v1862 = vsub.f32 %v1861, 1.0
    %v1863 = vmul.f32 %v1860, %v1589
    %1865 = vrot.lane.b32.xlu0 %v1862, 120
    %v1866 = vpop.permute.xlu0 %1865
    %v1868 = vmul.f32 %v1860, %v1866
    %1870 = vrot.lane.b32.xlu0 %v1868, 4
    %v1871 = vpop.permute.xlu0 %1870
    %v1873 = vadd.f32 %v1863, %v1871
    %v1874 = vtanh.pop %v1873
    %1876 = vrot.lane.b32.xlu0 %v1874, 8
    %v1877 = vpop.permute.xlu0 %1876
    %v1879 = vmul.f32 %v1860, %v1877
    %1881 = vrot.lane.b32.xlu0 %v1873, 16
    %v1882 = vpop.permute.xlu0 %1881
    %vm1884 = vcmask 195744
    %1885 = vst.msk [vmem:[#allocation3] sm:$0xff] %vm1884, %v1882
    %v1886 = vld [vmem:[#allocation2 + $0x30] sm:$0xff]
    %1888 = vrot.lane.b32.xlu0 %v1703, 32
    %v1889 = vpop.permute.xlu0 %1888
    %v1890 = vsel %vm189, %v1889, 0
    %1892 = vmatprep.subr.mxu0 0.0
    %1893 = vmatpush1.msra.mxu0 0.0
    %1894 = vmatprep.subr.mxu0 0.0
    %1895 = vmatpush1.msra.mxu0 0.0
    %1896 = vmatprep.subr.mxu0 0.0
    %1897 = vmatpush1.msra.mxu0 0.0
    %1898 = vmatprep.subr.mxu0 0.0
    %1899 = vmatpush1.msra.mxu0 0.0
    %1900 = vmatprep.subr.mxu0 0.0
    %1901 = vmatpush1.msra.mxu0 0.0
    %1902 = vmatprep.subr.mxu0 0.0
    %1903 = vmatpush1.msra.mxu0 0.0
    %1904 = vmatprep.subr.mxu0 0.0
    %1905 = vmatpush1.msra.mxu0 0.0
    %1906 = vmatprep.subr.mxu0 0.0
    %1907 = vmatpush1.msra.mxu0 0.0
    %1908 = vmatprep.subr.mxu0 0.0
    %1909 = vmatpush1.msra.mxu0 0.0
    %1910 = vmatprep.subr.mxu0 0.0
    %1911 = vmatpush1.msra.mxu0 0.0
    %1912 = vmatprep.subr.mxu0 0.0
    %1913 = vmatpush1.msra.mxu0 0.0
    %1914 = vmatprep.subr.mxu0 0.0
    %1915 = vmatpush1.msra.mxu0 0.0
    %1916 = vmatprep.subr.mxu0 0.0
    %1917 = vmatpush1.msra.mxu0 %v21
    %1918 = vmatprep.subr.mxu0 0.0
    %1919 = vmatpush1.msra.mxu0 %v20
    %1920 = vmatprep.subr.mxu0 0.0
    %1921 = vmatpush1.msra.mxu0 %v19
    %1922 = vmatprep.subr.mxu0 0.0
    %1923 = vmatpush1.msra.mxu0 %v18
    %1924 = vmatprep.subr.mxu0 0.0
    %1925 = vmatpush2.msra.mxu0 0.0
    %1926 = vmatprep.subr.mxu0 0.0
    %1927 = vmatpush2.msra.mxu0 0.0
    %1928 = vmatprep.subr.mxu0 0.0
    %1929 = vmatpush2.msra.mxu0 0.0
    %1930 = vmatprep.subr.mxu0 0.0
    %1931 = vmatpush2.msra.mxu0 0.0
    %1932 = vmatprep.subr.mxu0 0.0
    %1933 = vmatpush2.msra.mxu0 0.0
    %1934 = vmatprep.subr.mxu0 0.0
    %1935 = vmatpush2.msra.mxu0 0.0
    %1936 = vmatprep.subr.mxu0 0.0
    %1937 = vmatpush2.msra.mxu0 0.0
    %1938 = vmatprep.subr.mxu0 0.0
    %1939 = vmatpush2.msra.mxu0 0.0
    %1940 = vmatprep.subr.mxu0 0.0
    %1941 = vmatpush2.msra.mxu0 0.0
    %1942 = vmatprep.subr.mxu0 0.0
    %1943 = vmatpush2.msra.mxu0 0.0
    %1944 = vmatprep.subr.mxu0 0.0
    %1945 = vmatpush2.msra.mxu0 0.0
    %1946 = vmatprep.subr.mxu0 0.0
    %1947 = vmatpush2.msra.mxu0 0.0
    %1948 = vmatprep.subr.mxu0 0.0
    %1949 = vmatpush2.msra.mxu0 0.0
    %1950 = vmatprep.subr.mxu0 0.0
    %1951 = vmatpush2.msra.mxu0 0.0
    %1952 = vmatprep.subr.mxu0 0.0
    %1953 = vmatpush2.msra.mxu0 0.0
    %1954 = vmatprep.subr.mxu0 0.0
    %1955 = vmatpush2.msra.mxu0 0.0
    %1956 = vmatprep.mubr.f32.mxu0 0.0
    %1957 = vmatmul.mubr.f32.gmra.mxu0 %v1890
    %v1958 = vpop.f32.mrf.mxu0
    %v1959 = vadd.f32 0.0, %v1958
    %v1960 = vpop.f32.mrf.mxu0
    %1961 = vdwg.mxu0
    %v1962 = vadd.f32 %v1886, %v1959
    %v1963 = vxor.u32 %v1962, 2147483648
    %v1964 = vmul.f32 %v1963, 1.442695
    %v1965 = vpow.pop %v1964
    %v1966 = vadd.f32 %v1965, 1.0
    %v1967 = vrcp.pop %v1966
    %v1968 = vmul.f32 1.0, %v1967
    %v1969 = vmul.f32 %v1968, 2.0
    %v1970 = vsub.f32 %v1969, 1.0
    %v1971 = vmul.f32 %v1968, %v1697
    %1973 = vrot.lane.b32.xlu0 %v1970, 64
    %v1974 = vpop.permute.xlu0 %1973
    %v1976 = vmul.f32 %v1968, %v1974
    %1978 = vrot.lane.b32.xlu0 %v1976, 32
    %v1979 = vpop.permute.xlu0 %1978
    %v1981 = vadd.f32 %v1971, %v1979
    %v1982 = vtanh.pop %v1981
    %1984 = vrot.lane.b32.xlu0 %v1982, 64
    %v1985 = vpop.permute.xlu0 %1984
    %v1987 = vmul.f32 %v1968, %v1985
    %1989 = vrot.lane.b32.xlu0 %v1879, 116
    %v1990 = vpop.permute.xlu0 %1989
    %v1991 = vsel %vm46, %v1990, 0
    %1993 = vmatprep.subr.mxu0 0.0
    %1994 = vmatpush1.msra.mxu0 0.0
    %1995 = vmatprep.subr.mxu0 0.0
    %1996 = vmatpush1.msra.mxu0 0.0
    %1997 = vmatprep.subr.mxu0 0.0
    %1998 = vmatpush1.msra.mxu0 0.0
    %1999 = vmatprep.subr.mxu0 0.0
    %2000 = vmatpush1.msra.mxu0 0.0
    %2001 = vmatprep.subr.mxu0 0.0
    %2002 = vmatpush1.msra.mxu0 0.0
    %2003 = vmatprep.subr.mxu0 0.0
    %2004 = vmatpush1.msra.mxu0 0.0
    %2005 = vmatprep.subr.mxu0 0.0
    %2006 = vmatpush1.msra.mxu0 0.0
    %2007 = vmatprep.subr.mxu0 0.0
    %2008 = vmatpush1.msra.mxu0 0.0
    %2009 = vmatprep.subr.mxu0 0.0
    %2010 = vmatpush1.msra.mxu0 0.0
    %2011 = vmatprep.subr.mxu0 0.0
    %2012 = vmatpush1.msra.mxu0 0.0
    %2013 = vmatprep.subr.mxu0 0.0
    %2014 = vmatpush1.msra.mxu0 0.0
    %2015 = vmatprep.subr.mxu0 0.0
    %2016 = vmatpush1.msra.mxu0 0.0
    %2017 = vmatprep.subr.mxu0 0.0
    %2018 = vmatpush1.msra.mxu0 0.0
    %2019 = vmatprep.subr.mxu0 0.0
    %2020 = vmatpush1.msra.mxu0 0.0
    %2021 = vmatprep.subr.mxu0 0.0
    %2022 = vmatpush1.msra.mxu0 0.0
    %2023 = vmatprep.subr.mxu0 0.0
    %2024 = vmatpush1.msra.mxu0 %v292
    %2025 = vmatprep.subr.mxu0 0.0
    %2026 = vmatpush2.msra.mxu0 0.0
    %2027 = vmatprep.subr.mxu0 0.0
    %2028 = vmatpush2.msra.mxu0 0.0
    %2029 = vmatprep.subr.mxu0 0.0
    %2030 = vmatpush2.msra.mxu0 0.0
    %2031 = vmatprep.subr.mxu0 0.0
    %2032 = vmatpush2.msra.mxu0 0.0
    %2033 = vmatprep.subr.mxu0 0.0
    %2034 = vmatpush2.msra.mxu0 0.0
    %2035 = vmatprep.subr.mxu0 0.0
    %2036 = vmatpush2.msra.mxu0 0.0
    %2037 = vmatprep.subr.mxu0 0.0
    %2038 = vmatpush2.msra.mxu0 0.0
    %2039 = vmatprep.subr.mxu0 0.0
    %2040 = vmatpush2.msra.mxu0 0.0
    %2041 = vmatprep.subr.mxu0 0.0
    %2042 = vmatpush2.msra.mxu0 0.0
    %2043 = vmatprep.subr.mxu0 0.0
    %2044 = vmatpush2.msra.mxu0 0.0
    %2045 = vmatprep.subr.mxu0 0.0
    %2046 = vmatpush2.msra.mxu0 0.0
    %2047 = vmatprep.subr.mxu0 0.0
    %2048 = vmatpush2.msra.mxu0 0.0
    %2049 = vmatprep.subr.mxu0 0.0
    %2050 = vmatpush2.msra.mxu0 0.0
    %2051 = vmatprep.subr.mxu0 0.0
    %2052 = vmatpush2.msra.mxu0 0.0
    %2053 = vmatprep.subr.mxu0 0.0
    %2054 = vmatpush2.msra.mxu0 0.0
    %2055 = vmatprep.subr.mxu0 0.0
    %2056 = vmatpush2.msra.mxu0 0.0
    %2057 = vmatprep.mubr.f32.mxu0 0.0
    %2058 = vmatmul.mubr.f32.gmra.mxu0 %v1991
    %v2059 = vpop.f32.mrf.mxu0
    %v2060 = vadd.f32 0.0, %v2059
    %v2061 = vpop.f32.mrf.mxu0
    %2062 = vdwg.mxu0
    %2064 = vrot.lane.b32.xlu0 %v1981, 96
    %v2065 = vpop.permute.xlu0 %2064
    %v2066 = vsel %vm189, %v2065, 0
    %2068 = vmatprep.subr.mxu0 0.0
    %2069 = vmatpush1.msra.mxu0 0.0
    %2070 = vmatprep.subr.mxu0 0.0
    %2071 = vmatpush1.msra.mxu0 0.0
    %2072 = vmatprep.subr.mxu0 0.0
    %2073 = vmatpush1.msra.mxu0 0.0
    %2074 = vmatprep.subr.mxu0 0.0
    %2075 = vmatpush1.msra.mxu0 0.0
    %2076 = vmatprep.subr.mxu0 0.0
    %2077 = vmatpush1.msra.mxu0 0.0
    %2078 = vmatprep.subr.mxu0 0.0
    %2079 = vmatpush1.msra.mxu0 0.0
    %2080 = vmatprep.subr.mxu0 0.0
    %2081 = vmatpush1.msra.mxu0 0.0
    %2082 = vmatprep.subr.mxu0 0.0
    %2083 = vmatpush1.msra.mxu0 0.0
    %2084 = vmatprep.subr.mxu0 0.0
    %2085 = vmatpush1.msra.mxu0 0.0
    %2086 = vmatprep.subr.mxu0 0.0
    %2087 = vmatpush1.msra.mxu0 0.0
    %2088 = vmatprep.subr.mxu0 0.0
    %2089 = vmatpush1.msra.mxu0 0.0
    %2090 = vmatprep.subr.mxu0 0.0
    %2091 = vmatpush1.msra.mxu0 0.0
    %2092 = vmatprep.subr.mxu0 0.0
    %2093 = vmatpush1.msra.mxu0 %v25
    %2094 = vmatprep.subr.mxu0 0.0
    %2095 = vmatpush1.msra.mxu0 %v24
    %2096 = vmatprep.subr.mxu0 0.0
    %2097 = vmatpush1.msra.mxu0 %v23
    %2098 = vmatprep.subr.mxu0 0.0
    %2099 = vmatpush1.msra.mxu0 %v22
    %2100 = vmatprep.subr.mxu0 0.0
    %2101 = vmatpush2.msra.mxu0 0.0
    %2102 = vmatprep.subr.mxu0 0.0
    %2103 = vmatpush2.msra.mxu0 0.0
    %2104 = vmatprep.subr.mxu0 0.0
    %2105 = vmatpush2.msra.mxu0 0.0
    %2106 = vmatprep.subr.mxu0 0.0
    %2107 = vmatpush2.msra.mxu0 0.0
    %2108 = vmatprep.subr.mxu0 0.0
    %2109 = vmatpush2.msra.mxu0 0.0
    %2110 = vmatprep.subr.mxu0 0.0
    %2111 = vmatpush2.msra.mxu0 0.0
    %2112 = vmatprep.subr.mxu0 0.0
    %2113 = vmatpush2.msra.mxu0 0.0
    %2114 = vmatprep.subr.mxu0 0.0
    %2115 = vmatpush2.msra.mxu0 0.0
    %2116 = vmatprep.subr.mxu0 0.0
    %2117 = vmatpush2.msra.mxu0 0.0
    %2118 = vmatprep.subr.mxu0 0.0
    %2119 = vmatpush2.msra.mxu0 0.0
    %2120 = vmatprep.subr.mxu0 0.0
    %2121 = vmatpush2.msra.mxu0 0.0
    %2122 = vmatprep.subr.mxu0 0.0
    %2123 = vmatpush2.msra.mxu0 0.0
    %2124 = vmatprep.subr.mxu0 0.0
    %2125 = vmatpush2.msra.mxu0 0.0
    %2126 = vmatprep.subr.mxu0 0.0
    %2127 = vmatpush2.msra.mxu0 0.0
    %2128 = vmatprep.subr.mxu0 0.0
    %2129 = vmatpush2.msra.mxu0 0.0
    %2130 = vmatprep.subr.mxu0 0.0
    %2131 = vmatpush2.msra.mxu0 0.0
    %2132 = vmatprep.mubr.f32.mxu0 0.0
    %2133 = vmatmul.mubr.f32.gmra.mxu0 %v2066
    %v2134 = vpop.f32.mrf.mxu0
    %v2135 = vadd.f32 %v2060, %v2134
    %v2136 = vpop.f32.mrf.mxu0
    %2137 = vdwg.mxu0
    %v2138 = vadd.f32 %v2135, %v31
    %v2139 = vxor.u32 %v2138, 2147483648
    %v2140 = vmul.f32 %v2139, 1.442695
    %v2141 = vpow.pop %v2140
    %v2142 = vadd.f32 %v2141, 1.0
    %v2143 = vrcp.pop %v2142
    %v2144 = vmul.f32 1.0, %v2143
    %v2145 = vmul.f32 %v2144, 2.0
    %v2146 = vsub.f32 %v2145, 1.0
    %v2147 = vmul.f32 %v2144, %v1873
    %2149 = vrot.lane.b32.xlu0 %v2146, 120
    %v2150 = vpop.permute.xlu0 %2149
    %v2152 = vmul.f32 %v2144, %v2150
    %2154 = vrot.lane.b32.xlu0 %v2152, 4
    %v2155 = vpop.permute.xlu0 %2154
    %v2157 = vadd.f32 %v2147, %v2155
    %v2158 = vtanh.pop %v2157
    %2160 = vrot.lane.b32.xlu0 %v2158, 8
    %v2161 = vpop.permute.xlu0 %2160
    %v2163 = vmul.f32 %v2144, %v2161
    %2165 = vrot.lane.b32.xlu0 %v2157, 20
    %v2166 = vpop.permute.xlu0 %2165
    %vm2168 = vcmask 228544
    %2169 = vst.msk [vmem:[#allocation3] sm:$0xff] %vm2168, %v2166
    %v2170 = vld [vmem:[#allocation2 + $0x38] sm:$0xff]
    %2172 = vrot.lane.b32.xlu0 %v1987, 32
    %v2173 = vpop.permute.xlu0 %2172
    %v2174 = vsel %vm189, %v2173, 0
    %2176 = vmatprep.subr.mxu0 0.0
    %2177 = vmatpush1.msra.mxu0 0.0
    %2178 = vmatprep.subr.mxu0 0.0
    %2179 = vmatpush1.msra.mxu0 0.0
    %2180 = vmatprep.subr.mxu0 0.0
    %2181 = vmatpush1.msra.mxu0 0.0
    %2182 = vmatprep.subr.mxu0 0.0
    %2183 = vmatpush1.msra.mxu0 0.0
    %2184 = vmatprep.subr.mxu0 0.0
    %2185 = vmatpush1.msra.mxu0 0.0
    %2186 = vmatprep.subr.mxu0 0.0
    %2187 = vmatpush1.msra.mxu0 0.0
    %2188 = vmatprep.subr.mxu0 0.0
    %2189 = vmatpush1.msra.mxu0 0.0
    %2190 = vmatprep.subr.mxu0 0.0
    %2191 = vmatpush1.msra.mxu0 0.0
    %2192 = vmatprep.subr.mxu0 0.0
    %2193 = vmatpush1.msra.mxu0 0.0
    %2194 = vmatprep.subr.mxu0 0.0
    %2195 = vmatpush1.msra.mxu0 0.0
    %2196 = vmatprep.subr.mxu0 0.0
    %2197 = vmatpush1.msra.mxu0 0.0
    %2198 = vmatprep.subr.mxu0 0.0
    %2199 = vmatpush1.msra.mxu0 0.0
    %2200 = vmatprep.subr.mxu0 0.0
    %2201 = vmatpush1.msra.mxu0 %v21
    %2202 = vmatprep.subr.mxu0 0.0
    %2203 = vmatpush1.msra.mxu0 %v20
    %2204 = vmatprep.subr.mxu0 0.0
    %2205 = vmatpush1.msra.mxu0 %v19
    %2206 = vmatprep.subr.mxu0 0.0
    %2207 = vmatpush1.msra.mxu0 %v18
    %2208 = vmatprep.subr.mxu0 0.0
    %2209 = vmatpush2.msra.mxu0 0.0
    %2210 = vmatprep.subr.mxu0 0.0
    %2211 = vmatpush2.msra.mxu0 0.0
    %2212 = vmatprep.subr.mxu0 0.0
    %2213 = vmatpush2.msra.mxu0 0.0
    %2214 = vmatprep.subr.mxu0 0.0
    %2215 = vmatpush2.msra.mxu0 0.0
    %2216 = vmatprep.subr.mxu0 0.0
    %2217 = vmatpush2.msra.mxu0 0.0
    %2218 = vmatprep.subr.mxu0 0.0
    %2219 = vmatpush2.msra.mxu0 0.0
    %2220 = vmatprep.subr.mxu0 0.0
    %2221 = vmatpush2.msra.mxu0 0.0
    %2222 = vmatprep.subr.mxu0 0.0
    %2223 = vmatpush2.msra.mxu0 0.0
    %2224 = vmatprep.subr.mxu0 0.0
    %2225 = vmatpush2.msra.mxu0 0.0
    %2226 = vmatprep.subr.mxu0 0.0
    %2227 = vmatpush2.msra.mxu0 0.0
    %2228 = vmatprep.subr.mxu0 0.0
    %2229 = vmatpush2.msra.mxu0 0.0
    %2230 = vmatprep.subr.mxu0 0.0
    %2231 = vmatpush2.msra.mxu0 0.0
    %2232 = vmatprep.subr.mxu0 0.0
    %2233 = vmatpush2.msra.mxu0 0.0
    %2234 = vmatprep.subr.mxu0 0.0
    %2235 = vmatpush2.msra.mxu0 0.0
    %2236 = vmatprep.subr.mxu0 0.0
    %2237 = vmatpush2.msra.mxu0 0.0
    %2238 = vmatprep.subr.mxu0 0.0
    %2239 = vmatpush2.msra.mxu0 0.0
    %2240 = vmatprep.mubr.f32.mxu0 0.0
    %2241 = vmatmul.mubr.f32.gmra.mxu0 %v2174
    %v2242 = vpop.f32.mrf.mxu0
    %v2243 = vadd.f32 0.0, %v2242
    %v2244 = vpop.f32.mrf.mxu0
    %2245 = vdwg.mxu0
    %v2246 = vadd.f32 %v2170, %v2243
    %v2247 = vxor.u32 %v2246, 2147483648
    %v2248 = vmul.f32 %v2247, 1.442695
    %v2249 = vpow.pop %v2248
    %v2250 = vadd.f32 %v2249, 1.0
    %v2251 = vrcp.pop %v2250
    %v2252 = vmul.f32 1.0, %v2251
    %v2253 = vmul.f32 %v2252, 2.0
    %v2254 = vsub.f32 %v2253, 1.0
    %v2255 = vmul.f32 %v2252, %v1981
    %2257 = vrot.lane.b32.xlu0 %v2254, 64
    %v2258 = vpop.permute.xlu0 %2257
    %v2260 = vmul.f32 %v2252, %v2258
    %2262 = vrot.lane.b32.xlu0 %v2260, 32
    %v2263 = vpop.permute.xlu0 %2262
    %v2265 = vadd.f32 %v2255, %v2263
    %v2266 = vtanh.pop %v2265
    %2268 = vrot.lane.b32.xlu0 %v2266, 64
    %v2269 = vpop.permute.xlu0 %2268
    %v2271 = vmul.f32 %v2252, %v2269
    %2273 = vrot.lane.b32.xlu0 %v2163, 116
    %v2274 = vpop.permute.xlu0 %2273
    %v2275 = vsel %vm46, %v2274, 0
    %2277 = vmatprep.subr.mxu0 0.0
    %2278 = vmatpush1.msra.mxu0 0.0
    %2279 = vmatprep.subr.mxu0 0.0
    %2280 = vmatpush1.msra.mxu0 0.0
    %2281 = vmatprep.subr.mxu0 0.0
    %2282 = vmatpush1.msra.mxu0 0.0
    %2283 = vmatprep.subr.mxu0 0.0
    %2284 = vmatpush1.msra.mxu0 0.0
    %2285 = vmatprep.subr.mxu0 0.0
    %2286 = vmatpush1.msra.mxu0 0.0
    %2287 = vmatprep.subr.mxu0 0.0
    %2288 = vmatpush1.msra.mxu0 0.0
    %2289 = vmatprep.subr.mxu0 0.0
    %2290 = vmatpush1.msra.mxu0 0.0
    %2291 = vmatprep.subr.mxu0 0.0
    %2292 = vmatpush1.msra.mxu0 0.0
    %2293 = vmatprep.subr.mxu0 0.0
    %2294 = vmatpush1.msra.mxu0 0.0
    %2295 = vmatprep.subr.mxu0 0.0
    %2296 = vmatpush1.msra.mxu0 0.0
    %2297 = vmatprep.subr.mxu0 0.0
    %2298 = vmatpush1.msra.mxu0 0.0
    %2299 = vmatprep.subr.mxu0 0.0
    %2300 = vmatpush1.msra.mxu0 0.0
    %2301 = vmatprep.subr.mxu0 0.0
    %2302 = vmatpush1.msra.mxu0 0.0
    %2303 = vmatprep.subr.mxu0 0.0
    %2304 = vmatpush1.msra.mxu0 0.0
    %2305 = vmatprep.subr.mxu0 0.0
    %2306 = vmatpush1.msra.mxu0 0.0
    %2307 = vmatprep.subr.mxu0 0.0
    %2308 = vmatpush1.msra.mxu0 %v292
    %2309 = vmatprep.subr.mxu0 0.0
    %2310 = vmatpush2.msra.mxu0 0.0
    %2311 = vmatprep.subr.mxu0 0.0
    %2312 = vmatpush2.msra.mxu0 0.0
    %2313 = vmatprep.subr.mxu0 0.0
    %2314 = vmatpush2.msra.mxu0 0.0
    %2315 = vmatprep.subr.mxu0 0.0
    %2316 = vmatpush2.msra.mxu0 0.0
    %2317 = vmatprep.subr.mxu0 0.0
    %2318 = vmatpush2.msra.mxu0 0.0
    %2319 = vmatprep.subr.mxu0 0.0
    %2320 = vmatpush2.msra.mxu0 0.0
    %2321 = vmatprep.subr.mxu0 0.0
    %2322 = vmatpush2.msra.mxu0 0.0
    %2323 = vmatprep.subr.mxu0 0.0
    %2324 = vmatpush2.msra.mxu0 0.0
    %2325 = vmatprep.subr.mxu0 0.0
    %2326 = vmatpush2.msra.mxu0 0.0
    %2327 = vmatprep.subr.mxu0 0.0
    %2328 = vmatpush2.msra.mxu0 0.0
    %2329 = vmatprep.subr.mxu0 0.0
    %2330 = vmatpush2.msra.mxu0 0.0
    %2331 = vmatprep.subr.mxu0 0.0
    %2332 = vmatpush2.msra.mxu0 0.0
    %2333 = vmatprep.subr.mxu0 0.0
    %2334 = vmatpush2.msra.mxu0 0.0
    %2335 = vmatprep.subr.mxu0 0.0
    %2336 = vmatpush2.msra.mxu0 0.0
    %2337 = vmatprep.subr.mxu0 0.0
    %2338 = vmatpush2.msra.mxu0 0.0
    %2339 = vmatprep.subr.mxu0 0.0
    %2340 = vmatpush2.msra.mxu0 0.0
    %2341 = vmatprep.mubr.f32.mxu0 0.0
    %2342 = vmatmul.mubr.f32.gmra.mxu0 %v2275
    %v2343 = vpop.f32.mrf.mxu0
    %v2344 = vadd.f32 0.0, %v2343
    %v2345 = vpop.f32.mrf.mxu0
    %2346 = vdwg.mxu0
    %2348 = vrot.lane.b32.xlu0 %v2265, 96
    %v2349 = vpop.permute.xlu0 %2348
    %v2350 = vsel %vm189, %v2349, 0
    %2352 = vmatprep.subr.mxu0 0.0
    %2353 = vmatpush1.msra.mxu0 0.0
    %2354 = vmatprep.subr.mxu0 0.0
    %2355 = vmatpush1.msra.mxu0 0.0
    %2356 = vmatprep.subr.mxu0 0.0
    %2357 = vmatpush1.msra.mxu0 0.0
    %2358 = vmatprep.subr.mxu0 0.0
    %2359 = vmatpush1.msra.mxu0 0.0
    %2360 = vmatprep.subr.mxu0 0.0
    %2361 = vmatpush1.msra.mxu0 0.0
    %2362 = vmatprep.subr.mxu0 0.0
    %2363 = vmatpush1.msra.mxu0 0.0
    %2364 = vmatprep.subr.mxu0 0.0
    %2365 = vmatpush1.msra.mxu0 0.0
    %2366 = vmatprep.subr.mxu0 0.0
    %2367 = vmatpush1.msra.mxu0 0.0
    %2368 = vmatprep.subr.mxu0 0.0
    %2369 = vmatpush1.msra.mxu0 0.0
    %2370 = vmatprep.subr.mxu0 0.0
    %2371 = vmatpush1.msra.mxu0 0.0
    %2372 = vmatprep.subr.mxu0 0.0
    %2373 = vmatpush1.msra.mxu0 0.0
    %2374 = vmatprep.subr.mxu0 0.0
    %2375 = vmatpush1.msra.mxu0 0.0
    %2376 = vmatprep.subr.mxu0 0.0
    %2377 = vmatpush1.msra.mxu0 %v25
    %2378 = vmatprep.subr.mxu0 0.0
    %2379 = vmatpush1.msra.mxu0 %v24
    %2380 = vmatprep.subr.mxu0 0.0
    %2381 = vmatpush1.msra.mxu0 %v23
    %2382 = vmatprep.subr.mxu0 0.0
    %2383 = vmatpush1.msra.mxu0 %v22
    %2384 = vmatprep.subr.mxu0 0.0
    %2385 = vmatpush2.msra.mxu0 0.0
    %2386 = vmatprep.subr.mxu0 0.0
    %2387 = vmatpush2.msra.mxu0 0.0
    %2388 = vmatprep.subr.mxu0 0.0
    %2389 = vmatpush2.msra.mxu0 0.0
    %2390 = vmatprep.subr.mxu0 0.0
    %2391 = vmatpush2.msra.mxu0 0.0
    %2392 = vmatprep.subr.mxu0 0.0
    %2393 = vmatpush2.msra.mxu0 0.0
    %2394 = vmatprep.subr.mxu0 0.0
    %2395 = vmatpush2.msra.mxu0 0.0
    %2396 = vmatprep.subr.mxu0 0.0
    %2397 = vmatpush2.msra.mxu0 0.0
    %2398 = vmatprep.subr.mxu0 0.0
    %2399 = vmatpush2.msra.mxu0 0.0
    %2400 = vmatprep.subr.mxu0 0.0
    %2401 = vmatpush2.msra.mxu0 0.0
    %2402 = vmatprep.subr.mxu0 0.0
    %2403 = vmatpush2.msra.mxu0 0.0
    %2404 = vmatprep.subr.mxu0 0.0
    %2405 = vmatpush2.msra.mxu0 0.0
    %2406 = vmatprep.subr.mxu0 0.0
    %2407 = vmatpush2.msra.mxu0 0.0
    %2408 = vmatprep.subr.mxu0 0.0
    %2409 = vmatpush2.msra.mxu0 0.0
    %2410 = vmatprep.subr.mxu0 0.0
    %2411 = vmatpush2.msra.mxu0 0.0
    %2412 = vmatprep.subr.mxu0 0.0
    %2413 = vmatpush2.msra.mxu0 0.0
    %2414 = vmatprep.subr.mxu0 0.0
    %2415 = vmatpush2.msra.mxu0 0.0
    %2416 = vmatprep.mubr.f32.mxu0 0.0
    %2417 = vmatmul.mubr.f32.gmra.mxu0 %v2350
    %v2418 = vpop.f32.mrf.mxu0
    %v2419 = vadd.f32 %v2344, %v2418
    %v2420 = vpop.f32.mrf.mxu0
    %2421 = vdwg.mxu0
    %v2422 = vadd.f32 %v2419, %v31
    %v2423 = vxor.u32 %v2422, 2147483648
    %v2424 = vmul.f32 %v2423, 1.442695
    %v2425 = vpow.pop %v2424
    %v2426 = vadd.f32 %v2425, 1.0
    %v2427 = vrcp.pop %v2426
    %v2428 = vmul.f32 1.0, %v2427
    %v2429 = vmul.f32 %v2428, 2.0
    %v2430 = vsub.f32 %v2429, 1.0
    %v2431 = vmul.f32 %v2428, %v2157
    %2433 = vrot.lane.b32.xlu0 %v2430, 120
    %v2434 = vpop.permute.xlu0 %2433
    %v2436 = vmul.f32 %v2428, %v2434
    %2438 = vrot.lane.b32.xlu0 %v2436, 4
    %v2439 = vpop.permute.xlu0 %2438
    %v2441 = vadd.f32 %v2431, %v2439
    %v2442 = vtanh.pop %v2441
    %2444 = vrot.lane.b32.xlu0 %v2442, 8
    %v2445 = vpop.permute.xlu0 %2444
    %v2447 = vmul.f32 %v2428, %v2445
    %2449 = vrot.lane.b32.xlu0 %v2441, 24
    %v2450 = vpop.permute.xlu0 %2449
    %vm2452 = vcmask 261344
    %2453 = vst.msk [vmem:[#allocation3] sm:$0xff] %vm2452, %v2450
    %v2454 = vld [vmem:[%s1 + $0x20] sm:$0xf]
    %2456 = vrot.lane.b32.xlu0 %v2271, 32
    %v2457 = vpop.permute.xlu0 %2456
    %v2458 = vsel %vm189, %v2457, 0
    %2460 = vmatprep.subr.mxu0 0.0
    %2461 = vmatpush1.msra.mxu0 0.0
    %2462 = vmatprep.subr.mxu0 0.0
    %2463 = vmatpush1.msra.mxu0 0.0
    %2464 = vmatprep.subr.mxu0 0.0
    %2465 = vmatpush1.msra.mxu0 0.0
    %2466 = vmatprep.subr.mxu0 0.0
    %2467 = vmatpush1.msra.mxu0 0.0
    %2468 = vmatprep.subr.mxu0 0.0
    %2469 = vmatpush1.msra.mxu0 0.0
    %2470 = vmatprep.subr.mxu0 0.0
    %2471 = vmatpush1.msra.mxu0 0.0
    %2472 = vmatprep.subr.mxu0 0.0
    %2473 = vmatpush1.msra.mxu0 0.0
    %2474 = vmatprep.subr.mxu0 0.0
    %2475 = vmatpush1.msra.mxu0 0.0
    %2476 = vmatprep.subr.mxu0 0.0
    %2477 = vmatpush1.msra.mxu0 0.0
    %2478 = vmatprep.subr.mxu0 0.0
    %2479 = vmatpush1.msra.mxu0 0.0
    %2480 = vmatprep.subr.mxu0 0.0
    %2481 = vmatpush1.msra.mxu0 0.0
    %2482 = vmatprep.subr.mxu0 0.0
    %2483 = vmatpush1.msra.mxu0 0.0
    %2484 = vmatprep.subr.mxu0 0.0
    %2485 = vmatpush1.msra.mxu0 %v21
    %2486 = vmatprep.subr.mxu0 0.0
    %2487 = vmatpush1.msra.mxu0 %v20
    %2488 = vmatprep.subr.mxu0 0.0
    %2489 = vmatpush1.msra.mxu0 %v19
    %2490 = vmatprep.subr.mxu0 0.0
    %2491 = vmatpush1.msra.mxu0 %v18
    %2492 = vmatprep.subr.mxu0 0.0
    %2493 = vmatpush2.msra.mxu0 0.0
    %2494 = vmatprep.subr.mxu0 0.0
    %2495 = vmatpush2.msra.mxu0 0.0
    %2496 = vmatprep.subr.mxu0 0.0
    %2497 = vmatpush2.msra.mxu0 0.0
    %2498 = vmatprep.subr.mxu0 0.0
    %2499 = vmatpush2.msra.mxu0 0.0
    %2500 = vmatprep.subr.mxu0 0.0
    %2501 = vmatpush2.msra.mxu0 0.0
    %2502 = vmatprep.subr.mxu0 0.0
    %2503 = vmatpush2.msra.mxu0 0.0
    %2504 = vmatprep.subr.mxu0 0.0
    %2505 = vmatpush2.msra.mxu0 0.0
    %2506 = vmatprep.subr.mxu0 0.0
    %2507 = vmatpush2.msra.mxu0 0.0
    %2508 = vmatprep.subr.mxu0 0.0
    %2509 = vmatpush2.msra.mxu0 0.0
    %2510 = vmatprep.subr.mxu0 0.0
    %2511 = vmatpush2.msra.mxu0 0.0
    %2512 = vmatprep.subr.mxu0 0.0
    %2513 = vmatpush2.msra.mxu0 0.0
    %2514 = vmatprep.subr.mxu0 0.0
    %2515 = vmatpush2.msra.mxu0 0.0
    %2516 = vmatprep.subr.mxu0 0.0
    %2517 = vmatpush2.msra.mxu0 0.0
    %2518 = vmatprep.subr.mxu0 0.0
    %2519 = vmatpush2.msra.mxu0 0.0
    %2520 = vmatprep.subr.mxu0 0.0
    %2521 = vmatpush2.msra.mxu0 0.0
    %2522 = vmatprep.subr.mxu0 0.0
    %2523 = vmatpush2.msra.mxu0 0.0
    %2524 = vmatprep.mubr.f32.mxu0 0.0
    %2525 = vmatmul.mubr.f32.gmra.mxu0 %v2458
    %v2526 = vpop.f32.mrf.mxu0
    %v2527 = vadd.f32 0.0, %v2526
    %v2528 = vpop.f32.mrf.mxu0
    %2529 = vdwg.mxu0
    %2530 = vrot.lane.b32.xlu0 %v2441, 124
    %v2531 = vpop.permute.xlu0 %2530
    %v2532 = vsel %vm46, %v2531, 0
    %v2535 = vsel %vm71, %v2454, 0
    %2537 = vmatprep.subr.mxu0 0.0
    %2538 = vmatpush1.msra.mxu0 0.0
    %2539 = vmatprep.subr.mxu0 0.0
    %2540 = vmatpush1.msra.mxu0 0.0
    %2541 = vmatprep.subr.mxu0 0.0
    %2542 = vmatpush1.msra.mxu0 0.0
    %2543 = vmatprep.subr.mxu0 0.0
    %2544 = vmatpush1.msra.mxu0 0.0
    %2545 = vmatprep.subr.mxu0 0.0
    %2546 = vmatpush1.msra.mxu0 0.0
    %2547 = vmatprep.subr.mxu0 0.0
    %2548 = vmatpush1.msra.mxu0 0.0
    %2549 = vmatprep.subr.mxu0 0.0
    %2550 = vmatpush1.msra.mxu0 0.0
    %2551 = vmatprep.subr.mxu0 0.0
    %2552 = vmatpush1.msra.mxu0 0.0
    %2553 = vmatprep.subr.mxu0 0.0
    %2554 = vmatpush1.msra.mxu0 0.0
    %2555 = vmatprep.subr.mxu0 0.0
    %2556 = vmatpush1.msra.mxu0 0.0
    %2557 = vmatprep.subr.mxu0 0.0
    %2558 = vmatpush1.msra.mxu0 0.0
    %2559 = vmatprep.subr.mxu0 0.0
    %2560 = vmatpush1.msra.mxu0 0.0
    %2561 = vmatprep.subr.mxu0 0.0
    %2562 = vmatpush1.msra.mxu0 0.0
    %2563 = vmatprep.subr.mxu0 0.0
    %2564 = vmatpush1.msra.mxu0 0.0
    %2565 = vmatprep.subr.mxu0 0.0
    %2566 = vmatpush1.msra.mxu0 0.0
    %2567 = vmatprep.subr.mxu0 0.0
    %2568 = vmatpush1.msra.mxu0 %v2535
    %2569 = vmatprep.subr.mxu0 0.0
    %2570 = vmatpush2.msra.mxu0 0.0
    %2571 = vmatprep.subr.mxu0 0.0
    %2572 = vmatpush2.msra.mxu0 0.0
    %2573 = vmatprep.subr.mxu0 0.0
    %2574 = vmatpush2.msra.mxu0 0.0
    %2575 = vmatprep.subr.mxu0 0.0
    %2576 = vmatpush2.msra.mxu0 0.0
    %2577 = vmatprep.subr.mxu0 0.0
    %2578 = vmatpush2.msra.mxu0 0.0
    %2579 = vmatprep.subr.mxu0 0.0
    %2580 = vmatpush2.msra.mxu0 0.0
    %2581 = vmatprep.subr.mxu0 0.0
    %2582 = vmatpush2.msra.mxu0 0.0
    %2583 = vmatprep.subr.mxu0 0.0
    %2584 = vmatpush2.msra.mxu0 0.0
    %2585 = vmatprep.subr.mxu0 0.0
    %2586 = vmatpush2.msra.mxu0 0.0
    %2587 = vmatprep.subr.mxu0 0.0
    %2588 = vmatpush2.msra.mxu0 0.0
    %2589 = vmatprep.subr.mxu0 0.0
    %2590 = vmatpush2.msra.mxu0 0.0
    %2591 = vmatprep.subr.mxu0 0.0
    %2592 = vmatpush2.msra.mxu0 0.0
    %2593 = vmatprep.subr.mxu0 0.0
    %2594 = vmatpush2.msra.mxu0 0.0
    %2595 = vmatprep.subr.mxu0 0.0
    %2596 = vmatpush2.msra.mxu0 0.0
    %2597 = vmatprep.subr.mxu0 0.0
    %2598 = vmatpush2.msra.mxu0 0.0
    %2599 = vmatprep.subr.mxu0 0.0
    %2600 = vmatpush2.msra.mxu0 0.0
    %2601 = vmatprep.mubr.f32.mxu0 0.0
    %2602 = vmatmul.mubr.f32.gmra.mxu0 %v2532
    %v2603 = vpop.f32.mrf.mxu0
    %v2604 = vadd.f32 %v2527, %v2603
    %v2605 = vpop.f32.mrf.mxu0
    %2606 = vdwg.mxu0
    %v2607 = vadd.f32 %v2604, %v36
    %v2608 = vxor.u32 %v2607, 2147483648
    %v2609 = vmul.f32 %v2608, 1.442695
    %v2610 = vpow.pop %v2609
    %v2611 = vadd.f32 %v2610, 1.0
    %v2612 = vrcp.pop %v2611
    %v2613 = vmul.f32 1.0, %v2612
    %v2614 = vmul.f32 %v2613, 2.0
    %v2615 = vsub.f32 %v2614, 1.0
    %v2616 = vmul.f32 %v2613, %v2265
    %2618 = vrot.lane.b32.xlu0 %v2615, 64
    %v2619 = vpop.permute.xlu0 %2618
    %v2621 = vmul.f32 %v2613, %v2619
    %2623 = vrot.lane.b32.xlu0 %v2621, 32
    %v2624 = vpop.permute.xlu0 %2623
    %v2626 = vadd.f32 %v2616, %v2624
    %v2627 = vtanh.pop %v2626
    %2629 = vrot.lane.b32.xlu0 %v2627, 64
    %v2630 = vpop.permute.xlu0 %2629
    %v2632 = vmul.f32 %v2613, %v2630
    %2634 = vrot.lane.b32.xlu0 %v2447, 116
    %v2635 = vpop.permute.xlu0 %2634
    %v2636 = vsel %vm46, %v2635, 0
    %2638 = vmatprep.subr.mxu0 0.0
    %2639 = vmatpush1.msra.mxu0 0.0
    %2640 = vmatprep.subr.mxu0 0.0
    %2641 = vmatpush1.msra.mxu0 0.0
    %2642 = vmatprep.subr.mxu0 0.0
    %2643 = vmatpush1.msra.mxu0 0.0
    %2644 = vmatprep.subr.mxu0 0.0
    %2645 = vmatpush1.msra.mxu0 0.0
    %2646 = vmatprep.subr.mxu0 0.0
    %2647 = vmatpush1.msra.mxu0 0.0
    %2648 = vmatprep.subr.mxu0 0.0
    %2649 = vmatpush1.msra.mxu0 0.0
    %2650 = vmatprep.subr.mxu0 0.0
    %2651 = vmatpush1.msra.mxu0 0.0
    %2652 = vmatprep.subr.mxu0 0.0
    %2653 = vmatpush1.msra.mxu0 0.0
    %2654 = vmatprep.subr.mxu0 0.0
    %2655 = vmatpush1.msra.mxu0 0.0
    %2656 = vmatprep.subr.mxu0 0.0
    %2657 = vmatpush1.msra.mxu0 0.0
    %2658 = vmatprep.subr.mxu0 0.0
    %2659 = vmatpush1.msra.mxu0 0.0
    %2660 = vmatprep.subr.mxu0 0.0
    %2661 = vmatpush1.msra.mxu0 0.0
    %2662 = vmatprep.subr.mxu0 0.0
    %2663 = vmatpush1.msra.mxu0 0.0
    %2664 = vmatprep.subr.mxu0 0.0
    %2665 = vmatpush1.msra.mxu0 0.0
    %2666 = vmatprep.subr.mxu0 0.0
    %2667 = vmatpush1.msra.mxu0 0.0
    %2668 = vmatprep.subr.mxu0 0.0
    %2669 = vmatpush1.msra.mxu0 %v292
    %2670 = vmatprep.subr.mxu0 0.0
    %2671 = vmatpush2.msra.mxu0 0.0
    %2672 = vmatprep.subr.mxu0 0.0
    %2673 = vmatpush2.msra.mxu0 0.0
    %2674 = vmatprep.subr.mxu0 0.0
    %2675 = vmatpush2.msra.mxu0 0.0
    %2676 = vmatprep.subr.mxu0 0.0
    %2677 = vmatpush2.msra.mxu0 0.0
    %2678 = vmatprep.subr.mxu0 0.0
    %2679 = vmatpush2.msra.mxu0 0.0
    %2680 = vmatprep.subr.mxu0 0.0
    %2681 = vmatpush2.msra.mxu0 0.0
    %2682 = vmatprep.subr.mxu0 0.0
    %2683 = vmatpush2.msra.mxu0 0.0
    %2684 = vmatprep.subr.mxu0 0.0
    %2685 = vmatpush2.msra.mxu0 0.0
    %2686 = vmatprep.subr.mxu0 0.0
    %2687 = vmatpush2.msra.mxu0 0.0
    %2688 = vmatprep.subr.mxu0 0.0
    %2689 = vmatpush2.msra.mxu0 0.0
    %2690 = vmatprep.subr.mxu0 0.0
    %2691 = vmatpush2.msra.mxu0 0.0
    %2692 = vmatprep.subr.mxu0 0.0
    %2693 = vmatpush2.msra.mxu0 0.0
    %2694 = vmatprep.subr.mxu0 0.0
    %2695 = vmatpush2.msra.mxu0 0.0
    %2696 = vmatprep.subr.mxu0 0.0
    %2697 = vmatpush2.msra.mxu0 0.0
    %2698 = vmatprep.subr.mxu0 0.0
    %2699 = vmatpush2.msra.mxu0 0.0
    %2700 = vmatprep.subr.mxu0 0.0
    %2701 = vmatpush2.msra.mxu0 0.0
    %2702 = vmatprep.mubr.f32.mxu0 0.0
    %2703 = vmatmul.mubr.f32.gmra.mxu0 %v2636
    %v2704 = vpop.f32.mrf.mxu0
    %v2705 = vadd.f32 0.0, %v2704
    %v2706 = vpop.f32.mrf.mxu0
    %2707 = vdwg.mxu0
    %2709 = vrot.lane.b32.xlu0 %v2626, 96
    %v2710 = vpop.permute.xlu0 %2709
    %v2711 = vsel %vm189, %v2710, 0
    %2713 = vmatprep.subr.mxu0 0.0
    %2714 = vmatpush1.msra.mxu0 0.0
    %2715 = vmatprep.subr.mxu0 0.0
    %2716 = vmatpush1.msra.mxu0 0.0
    %2717 = vmatprep.subr.mxu0 0.0
    %2718 = vmatpush1.msra.mxu0 0.0
    %2719 = vmatprep.subr.mxu0 0.0
    %2720 = vmatpush1.msra.mxu0 0.0
    %2721 = vmatprep.subr.mxu0 0.0
    %2722 = vmatpush1.msra.mxu0 0.0
    %2723 = vmatprep.subr.mxu0 0.0
    %2724 = vmatpush1.msra.mxu0 0.0
    %2725 = vmatprep.subr.mxu0 0.0
    %2726 = vmatpush1.msra.mxu0 0.0
    %2727 = vmatprep.subr.mxu0 0.0
    %2728 = vmatpush1.msra.mxu0 0.0
    %2729 = vmatprep.subr.mxu0 0.0
    %2730 = vmatpush1.msra.mxu0 0.0
    %2731 = vmatprep.subr.mxu0 0.0
    %2732 = vmatpush1.msra.mxu0 0.0
    %2733 = vmatprep.subr.mxu0 0.0
    %2734 = vmatpush1.msra.mxu0 0.0
    %2735 = vmatprep.subr.mxu0 0.0
    %2736 = vmatpush1.msra.mxu0 0.0
    %2737 = vmatprep.subr.mxu0 0.0
    %2738 = vmatpush1.msra.mxu0 %v25
    %2739 = vmatprep.subr.mxu0 0.0
    %2740 = vmatpush1.msra.mxu0 %v24
    %2741 = vmatprep.subr.mxu0 0.0
    %2742 = vmatpush1.msra.mxu0 %v23
    %2743 = vmatprep.subr.mxu0 0.0
    %2744 = vmatpush1.msra.mxu0 %v22
    %2745 = vmatprep.subr.mxu0 0.0
    %2746 = vmatpush2.msra.mxu0 0.0
    %2747 = vmatprep.subr.mxu0 0.0
    %2748 = vmatpush2.msra.mxu0 0.0
    %2749 = vmatprep.subr.mxu0 0.0
    %2750 = vmatpush2.msra.mxu0 0.0
    %2751 = vmatprep.subr.mxu0 0.0
    %2752 = vmatpush2.msra.mxu0 0.0
    %2753 = vmatprep.subr.mxu0 0.0
    %2754 = vmatpush2.msra.mxu0 0.0
    %2755 = vmatprep.subr.mxu0 0.0
    %2756 = vmatpush2.msra.mxu0 0.0
    %2757 = vmatprep.subr.mxu0 0.0
    %2758 = vmatpush2.msra.mxu0 0.0
    %2759 = vmatprep.subr.mxu0 0.0
    %2760 = vmatpush2.msra.mxu0 0.0
    %2761 = vmatprep.subr.mxu0 0.0
    %2762 = vmatpush2.msra.mxu0 0.0
    %2763 = vmatprep.subr.mxu0 0.0
    %2764 = vmatpush2.msra.mxu0 0.0
    %2765 = vmatprep.subr.mxu0 0.0
    %2766 = vmatpush2.msra.mxu0 0.0
    %2767 = vmatprep.subr.mxu0 0.0
    %2768 = vmatpush2.msra.mxu0 0.0
    %2769 = vmatprep.subr.mxu0 0.0
    %2770 = vmatpush2.msra.mxu0 0.0
    %2771 = vmatprep.subr.mxu0 0.0
    %2772 = vmatpush2.msra.mxu0 0.0
    %2773 = vmatprep.subr.mxu0 0.0
    %2774 = vmatpush2.msra.mxu0 0.0
    %2775 = vmatprep.subr.mxu0 0.0
    %2776 = vmatpush2.msra.mxu0 0.0
    %2777 = vmatprep.mubr.f32.mxu0 0.0
    %2778 = vmatmul.mubr.f32.gmra.mxu0 %v2711
    %v2779 = vpop.f32.mrf.mxu0
    %v2780 = vadd.f32 %v2705, %v2779
    %v2781 = vpop.f32.mrf.mxu0
    %2782 = vdwg.mxu0
    %v2783 = vadd.f32 %v2780, %v31
    %v2784 = vxor.u32 %v2783, 2147483648
    %v2785 = vmul.f32 %v2784, 1.442695
    %v2786 = vpow.pop %v2785
    %v2787 = vadd.f32 %v2786, 1.0
    %v2788 = vrcp.pop %v2787
    %v2789 = vmul.f32 1.0, %v2788
    %v2790 = vmul.f32 %v2789, 2.0
    %v2791 = vsub.f32 %v2790, 1.0
    %v2792 = vmul.f32 %v2789, %v2441
    %2794 = vrot.lane.b32.xlu0 %v2791, 120
    %v2795 = vpop.permute.xlu0 %2794
    %v2797 = vmul.f32 %v2789, %v2795
    %2799 = vrot.lane.b32.xlu0 %v2797, 4
    %v2800 = vpop.permute.xlu0 %2799
    %v2802 = vadd.f32 %v2792, %v2800
    %v2803 = vtanh.pop %v2802
    %2805 = vrot.lane.b32.xlu0 %v2803, 8
    %v2806 = vpop.permute.xlu0 %2805
    %v2808 = vmul.f32 %v2789, %v2806
    %2810 = vrot.lane.b32.xlu0 %v2802, 28
    %v2811 = vpop.permute.xlu0 %2810
    %vm2813 = vcmask 294144
    %2814 = vst.msk [vmem:[#allocation3] sm:$0xff] %vm2813, %v2811
    %v2815 = vld [vmem:[%s1 + $0x20] sm:$0xf]
    %2817 = vrot.lane.b32.xlu0 %v2632, 32
    %v2818 = vpop.permute.xlu0 %2817
    %v2819 = vsel %vm189, %v2818, 0
    %2821 = vmatprep.subr.mxu0 0.0
    %2822 = vmatpush1.msra.mxu0 0.0
    %2823 = vmatprep.subr.mxu0 0.0
    %2824 = vmatpush1.msra.mxu0 0.0
    %2825 = vmatprep.subr.mxu0 0.0
    %2826 = vmatpush1.msra.mxu0 0.0
    %2827 = vmatprep.subr.mxu0 0.0
    %2828 = vmatpush1.msra.mxu0 0.0
    %2829 = vmatprep.subr.mxu0 0.0
    %2830 = vmatpush1.msra.mxu0 0.0
    %2831 = vmatprep.subr.mxu0 0.0
    %2832 = vmatpush1.msra.mxu0 0.0
    %2833 = vmatprep.subr.mxu0 0.0
    %2834 = vmatpush1.msra.mxu0 0.0
    %2835 = vmatprep.subr.mxu0 0.0
    %2836 = vmatpush1.msra.mxu0 0.0
    %2837 = vmatprep.subr.mxu0 0.0
    %2838 = vmatpush1.msra.mxu0 0.0
    %2839 = vmatprep.subr.mxu0 0.0
    %2840 = vmatpush1.msra.mxu0 0.0
    %2841 = vmatprep.subr.mxu0 0.0
    %2842 = vmatpush1.msra.mxu0 0.0
    %2843 = vmatprep.subr.mxu0 0.0
    %2844 = vmatpush1.msra.mxu0 0.0
    %2845 = vmatprep.subr.mxu0 0.0
    %2846 = vmatpush1.msra.mxu0 %v21
    %2847 = vmatprep.subr.mxu0 0.0
    %2848 = vmatpush1.msra.mxu0 %v20
    %2849 = vmatprep.subr.mxu0 0.0
    %2850 = vmatpush1.msra.mxu0 %v19
    %2851 = vmatprep.subr.mxu0 0.0
    %2852 = vmatpush1.msra.mxu0 %v18
    %2853 = vmatprep.subr.mxu0 0.0
    %2854 = vmatpush2.msra.mxu0 0.0
    %2855 = vmatprep.subr.mxu0 0.0
    %2856 = vmatpush2.msra.mxu0 0.0
    %2857 = vmatprep.subr.mxu0 0.0
    %2858 = vmatpush2.msra.mxu0 0.0
    %2859 = vmatprep.subr.mxu0 0.0
    %2860 = vmatpush2.msra.mxu0 0.0
    %2861 = vmatprep.subr.mxu0 0.0
    %2862 = vmatpush2.msra.mxu0 0.0
    %2863 = vmatprep.subr.mxu0 0.0
    %2864 = vmatpush2.msra.mxu0 0.0
    %2865 = vmatprep.subr.mxu0 0.0
    %2866 = vmatpush2.msra.mxu0 0.0
    %2867 = vmatprep.subr.mxu0 0.0
    %2868 = vmatpush2.msra.mxu0 0.0
    %2869 = vmatprep.subr.mxu0 0.0
    %2870 = vmatpush2.msra.mxu0 0.0
    %2871 = vmatprep.subr.mxu0 0.0
    %2872 = vmatpush2.msra.mxu0 0.0
    %2873 = vmatprep.subr.mxu0 0.0
    %2874 = vmatpush2.msra.mxu0 0.0
    %2875 = vmatprep.subr.mxu0 0.0
    %2876 = vmatpush2.msra.mxu0 0.0
    %2877 = vmatprep.subr.mxu0 0.0
    %2878 = vmatpush2.msra.mxu0 0.0
    %2879 = vmatprep.subr.mxu0 0.0
    %2880 = vmatpush2.msra.mxu0 0.0
    %2881 = vmatprep.subr.mxu0 0.0
    %2882 = vmatpush2.msra.mxu0 0.0
    %2883 = vmatprep.subr.mxu0 0.0
    %2884 = vmatpush2.msra.mxu0 0.0
    %2885 = vmatprep.mubr.f32.mxu0 0.0
    %2886 = vmatmul.mubr.f32.gmra.mxu0 %v2819
    %v2887 = vpop.f32.mrf.mxu0
    %v2888 = vadd.f32 0.0, %v2887
    %v2889 = vpop.f32.mrf.mxu0
    %2890 = vdwg.mxu0
    %2891 = vrot.lane.b32.xlu0 %v2802, 124
    %v2892 = vpop.permute.xlu0 %2891
    %v2893 = vsel %vm46, %v2892, 0
    %v2896 = vsel %vm71, %v2815, 0
    %2898 = vmatprep.subr.mxu0 0.0
    %2899 = vmatpush1.msra.mxu0 0.0
    %2900 = vmatprep.subr.mxu0 0.0
    %2901 = vmatpush1.msra.mxu0 0.0
    %2902 = vmatprep.subr.mxu0 0.0
    %2903 = vmatpush1.msra.mxu0 0.0
    %2904 = vmatprep.subr.mxu0 0.0
    %2905 = vmatpush1.msra.mxu0 0.0
    %2906 = vmatprep.subr.mxu0 0.0
    %2907 = vmatpush1.msra.mxu0 0.0
    %2908 = vmatprep.subr.mxu0 0.0
    %2909 = vmatpush1.msra.mxu0 0.0
    %2910 = vmatprep.subr.mxu0 0.0
    %2911 = vmatpush1.msra.mxu0 0.0
    %2912 = vmatprep.subr.mxu0 0.0
    %2913 = vmatpush1.msra.mxu0 0.0
    %2914 = vmatprep.subr.mxu0 0.0
    %2915 = vmatpush1.msra.mxu0 0.0
    %2916 = vmatprep.subr.mxu0 0.0
    %2917 = vmatpush1.msra.mxu0 0.0
    %2918 = vmatprep.subr.mxu0 0.0
    %2919 = vmatpush1.msra.mxu0 0.0
    %2920 = vmatprep.subr.mxu0 0.0
    %2921 = vmatpush1.msra.mxu0 0.0
    %2922 = vmatprep.subr.mxu0 0.0
    %2923 = vmatpush1.msra.mxu0 0.0
    %2924 = vmatprep.subr.mxu0 0.0
    %2925 = vmatpush1.msra.mxu0 0.0
    %2926 = vmatprep.subr.mxu0 0.0
    %2927 = vmatpush1.msra.mxu0 0.0
    %2928 = vmatprep.subr.mxu0 0.0
    %2929 = vmatpush1.msra.mxu0 %v2896
    %2930 = vmatprep.subr.mxu0 0.0
    %2931 = vmatpush2.msra.mxu0 0.0
    %2932 = vmatprep.subr.mxu0 0.0
    %2933 = vmatpush2.msra.mxu0 0.0
    %2934 = vmatprep.subr.mxu0 0.0
    %2935 = vmatpush2.msra.mxu0 0.0
    %2936 = vmatprep.subr.mxu0 0.0
    %2937 = vmatpush2.msra.mxu0 0.0
    %2938 = vmatprep.subr.mxu0 0.0
    %2939 = vmatpush2.msra.mxu0 0.0
    %2940 = vmatprep.subr.mxu0 0.0
    %2941 = vmatpush2.msra.mxu0 0.0
    %2942 = vmatprep.subr.mxu0 0.0
    %2943 = vmatpush2.msra.mxu0 0.0
    %2944 = vmatprep.subr.mxu0 0.0
    %2945 = vmatpush2.msra.mxu0 0.0
    %2946 = vmatprep.subr.mxu0 0.0
    %2947 = vmatpush2.msra.mxu0 0.0
    %2948 = vmatprep.subr.mxu0 0.0
    %2949 = vmatpush2.msra.mxu0 0.0
    %2950 = vmatprep.subr.mxu0 0.0
    %2951 = vmatpush2.msra.mxu0 0.0
    %2952 = vmatprep.subr.mxu0 0.0
    %2953 = vmatpush2.msra.mxu0 0.0
    %2954 = vmatprep.subr.mxu0 0.0
    %2955 = vmatpush2.msra.mxu0 0.0
    %2956 = vmatprep.subr.mxu0 0.0
    %2957 = vmatpush2.msra.mxu0 0.0
    %2958 = vmatprep.subr.mxu0 0.0
    %2959 = vmatpush2.msra.mxu0 0.0
    %2960 = vmatprep.subr.mxu0 0.0
    %2961 = vmatpush2.msra.mxu0 0.0
    %2962 = vmatprep.mubr.f32.mxu0 0.0
    %2963 = vmatmul.mubr.f32.gmra.mxu0 %v2893
    %v2964 = vpop.f32.mrf.mxu0
    %v2965 = vadd.f32 %v2888, %v2964
    %v2966 = vpop.f32.mrf.mxu0
    %2967 = vdwg.mxu0
    %v2968 = vadd.f32 %v2965, %v36
    %v2969 = vxor.u32 %v2968, 2147483648
    %v2970 = vmul.f32 %v2969, 1.442695
    %v2971 = vpow.pop %v2970
    %v2972 = vadd.f32 %v2971, 1.0
    %v2973 = vrcp.pop %v2972
    %v2974 = vmul.f32 1.0, %v2973
    %v2975 = vmul.f32 %v2974, 2.0
    %v2976 = vsub.f32 %v2975, 1.0
    %v2977 = vmul.f32 %v2974, %v2626
    %2979 = vrot.lane.b32.xlu0 %v2976, 64
    %v2980 = vpop.permute.xlu0 %2979
    %v2982 = vmul.f32 %v2974, %v2980
    %2984 = vrot.lane.b32.xlu0 %v2982, 32
    %v2985 = vpop.permute.xlu0 %2984
    %v2987 = vadd.f32 %v2977, %v2985
    %2989 = vrot.lane.b32.xlu0 %v2808, 116
    %v2990 = vpop.permute.xlu0 %2989
    %v2991 = vsel %vm46, %v2990, 0
    %2993 = vmatprep.subr.mxu0 0.0
    %2994 = vmatpush1.msra.mxu0 0.0
    %2995 = vmatprep.subr.mxu0 0.0
    %2996 = vmatpush1.msra.mxu0 0.0
    %2997 = vmatprep.subr.mxu0 0.0
    %2998 = vmatpush1.msra.mxu0 0.0
    %2999 = vmatprep.subr.mxu0 0.0
    %3000 = vmatpush1.msra.mxu0 0.0
    %3001 = vmatprep.subr.mxu0 0.0
    %3002 = vmatpush1.msra.mxu0 0.0
    %3003 = vmatprep.subr.mxu0 0.0
    %3004 = vmatpush1.msra.mxu0 0.0
    %3005 = vmatprep.subr.mxu0 0.0
    %3006 = vmatpush1.msra.mxu0 0.0
    %3007 = vmatprep.subr.mxu0 0.0
    %3008 = vmatpush1.msra.mxu0 0.0
    %3009 = vmatprep.subr.mxu0 0.0
    %3010 = vmatpush1.msra.mxu0 0.0
    %3011 = vmatprep.subr.mxu0 0.0
    %3012 = vmatpush1.msra.mxu0 0.0
    %3013 = vmatprep.subr.mxu0 0.0
    %3014 = vmatpush1.msra.mxu0 0.0
    %3015 = vmatprep.subr.mxu0 0.0
    %3016 = vmatpush1.msra.mxu0 0.0
    %3017 = vmatprep.subr.mxu0 0.0
    %3018 = vmatpush1.msra.mxu0 0.0
    %3019 = vmatprep.subr.mxu0 0.0
    %3020 = vmatpush1.msra.mxu0 0.0
    %3021 = vmatprep.subr.mxu0 0.0
    %3022 = vmatpush1.msra.mxu0 0.0
    %3023 = vmatprep.subr.mxu0 0.0
    %3024 = vmatpush1.msra.mxu0 %v292
    %3025 = vmatprep.subr.mxu0 0.0
    %3026 = vmatpush2.msra.mxu0 0.0
    %3027 = vmatprep.subr.mxu0 0.0
    %3028 = vmatpush2.msra.mxu0 0.0
    %3029 = vmatprep.subr.mxu0 0.0
    %3030 = vmatpush2.msra.mxu0 0.0
    %3031 = vmatprep.subr.mxu0 0.0
    %3032 = vmatpush2.msra.mxu0 0.0
    %3033 = vmatprep.subr.mxu0 0.0
    %3034 = vmatpush2.msra.mxu0 0.0
    %3035 = vmatprep.subr.mxu0 0.0
    %3036 = vmatpush2.msra.mxu0 0.0
    %3037 = vmatprep.subr.mxu0 0.0
    %3038 = vmatpush2.msra.mxu0 0.0
    %3039 = vmatprep.subr.mxu0 0.0
    %3040 = vmatpush2.msra.mxu0 0.0
    %3041 = vmatprep.subr.mxu0 0.0
    %3042 = vmatpush2.msra.mxu0 0.0
    %3043 = vmatprep.subr.mxu0 0.0
    %3044 = vmatpush2.msra.mxu0 0.0
    %3045 = vmatprep.subr.mxu0 0.0
    %3046 = vmatpush2.msra.mxu0 0.0
    %3047 = vmatprep.subr.mxu0 0.0
    %3048 = vmatpush2.msra.mxu0 0.0
    %3049 = vmatprep.subr.mxu0 0.0
    %3050 = vmatpush2.msra.mxu0 0.0
    %3051 = vmatprep.subr.mxu0 0.0
    %3052 = vmatpush2.msra.mxu0 0.0
    %3053 = vmatprep.subr.mxu0 0.0
    %3054 = vmatpush2.msra.mxu0 0.0
    %3055 = vmatprep.subr.mxu0 0.0
    %3056 = vmatpush2.msra.mxu0 0.0
    %3057 = vmatprep.mubr.f32.mxu0 0.0
    %3058 = vmatmul.mubr.f32.gmra.mxu0 %v2991
    %v3059 = vpop.f32.mrf.mxu0
    %v3060 = vadd.f32 0.0, %v3059
    %v3061 = vpop.f32.mrf.mxu0
    %3062 = vdwg.mxu0
    %3064 = vrot.lane.b32.xlu0 %v2987, 96
    %v3065 = vpop.permute.xlu0 %3064
    %v3066 = vsel %vm189, %v3065, 0
    %3068 = vmatprep.subr.mxu0 0.0
    %3069 = vmatpush1.msra.mxu0 0.0
    %3070 = vmatprep.subr.mxu0 0.0
    %3071 = vmatpush1.msra.mxu0 0.0
    %3072 = vmatprep.subr.mxu0 0.0
    %3073 = vmatpush1.msra.mxu0 0.0
    %3074 = vmatprep.subr.mxu0 0.0
    %3075 = vmatpush1.msra.mxu0 0.0
    %3076 = vmatprep.subr.mxu0 0.0
    %3077 = vmatpush1.msra.mxu0 0.0
    %3078 = vmatprep.subr.mxu0 0.0
    %3079 = vmatpush1.msra.mxu0 0.0
    %3080 = vmatprep.subr.mxu0 0.0
    %3081 = vmatpush1.msra.mxu0 0.0
    %3082 = vmatprep.subr.mxu0 0.0
    %3083 = vmatpush1.msra.mxu0 0.0
    %3084 = vmatprep.subr.mxu0 0.0
    %3085 = vmatpush1.msra.mxu0 0.0
    %3086 = vmatprep.subr.mxu0 0.0
    %3087 = vmatpush1.msra.mxu0 0.0
    %3088 = vmatprep.subr.mxu0 0.0
    %3089 = vmatpush1.msra.mxu0 0.0
    %3090 = vmatprep.subr.mxu0 0.0
    %3091 = vmatpush1.msra.mxu0 0.0
    %3092 = vmatprep.subr.mxu0 0.0
    %3093 = vmatpush1.msra.mxu0 %v25
    %3094 = vmatprep.subr.mxu0 0.0
    %3095 = vmatpush1.msra.mxu0 %v24
    %3096 = vmatprep.subr.mxu0 0.0
    %3097 = vmatpush1.msra.mxu0 %v23
    %3098 = vmatprep.subr.mxu0 0.0
    %3099 = vmatpush1.msra.mxu0 %v22
    %3100 = vmatprep.subr.mxu0 0.0
    %3101 = vmatpush2.msra.mxu0 0.0
    %3102 = vmatprep.subr.mxu0 0.0
    %3103 = vmatpush2.msra.mxu0 0.0
    %3104 = vmatprep.subr.mxu0 0.0
    %3105 = vmatpush2.msra.mxu0 0.0
    %3106 = vmatprep.subr.mxu0 0.0
    %3107 = vmatpush2.msra.mxu0 0.0
    %3108 = vmatprep.subr.mxu0 0.0
    %3109 = vmatpush2.msra.mxu0 0.0
    %3110 = vmatprep.subr.mxu0 0.0
    %3111 = vmatpush2.msra.mxu0 0.0
    %3112 = vmatprep.subr.mxu0 0.0
    %3113 = vmatpush2.msra.mxu0 0.0
    %3114 = vmatprep.subr.mxu0 0.0
    %3115 = vmatpush2.msra.mxu0 0.0
    %3116 = vmatprep.subr.mxu0 0.0
    %3117 = vmatpush2.msra.mxu0 0.0
    %3118 = vmatprep.subr.mxu0 0.0
    %3119 = vmatpush2.msra.mxu0 0.0
    %3120 = vmatprep.subr.mxu0 0.0
    %3121 = vmatpush2.msra.mxu0 0.0
    %3122 = vmatprep.subr.mxu0 0.0
    %3123 = vmatpush2.msra.mxu0 0.0
    %3124 = vmatprep.subr.mxu0 0.0
    %3125 = vmatpush2.msra.mxu0 0.0
    %3126 = vmatprep.subr.mxu0 0.0
    %3127 = vmatpush2.msra.mxu0 0.0
    %3128 = vmatprep.subr.mxu0 0.0
    %3129 = vmatpush2.msra.mxu0 0.0
    %3130 = vmatprep.subr.mxu0 0.0
    %3131 = vmatpush2.msra.mxu0 0.0
    %3132 = vmatprep.mubr.f32.mxu0 0.0
    %3133 = vmatmul.mubr.f32.gmra.mxu0 %v3066
    %v3134 = vpop.f32.mrf.mxu0
    %v3135 = vadd.f32 %v3060, %v3134
    %v3136 = vpop.f32.mrf.mxu0
    %3137 = vdwg.mxu0
    %v3138 = vadd.f32 %v3135, %v31
    %v3139 = vxor.u32 %v3138, 2147483648
    %v3140 = vmul.f32 %v3139, 1.442695
    %v3141 = vpow.pop %v3140
    %v3142 = vadd.f32 %v3141, 1.0
    %v3143 = vrcp.pop %v3142
    %v3144 = vmul.f32 1.0, %v3143
    %v3145 = vmul.f32 %v3144, 2.0
    %v3146 = vsub.f32 %v3145, 1.0
    %v3147 = vmul.f32 %v3144, %v2802
    %3149 = vrot.lane.b32.xlu0 %v3146, 120
    %v3150 = vpop.permute.xlu0 %3149
    %v3152 = vmul.f32 %v3144, %v3150
    %3154 = vrot.lane.b32.xlu0 %v3152, 4
    %v3155 = vpop.permute.xlu0 %3154
    %v3157 = vadd.f32 %v3147, %v3155
    %3159 = vrot.lane.b32.xlu0 %v3157, 32
    %v3160 = vpop.permute.xlu0 %3159
    %vm3162 = vcmask 326944
    %3163 = vst.msk [vmem:[#allocation3] sm:$0xff] %vm3162, %v3160
    // Predicated region
    $region18: #{tpu_custom_call.1} parent=1 // pred_check
      _
    $region19: #{tpu_custom_call.1} parent=1 // pred_check_branch
      %3165 = sbr.rel (0) target = $region21
    $region20: #{tpu_custom_call.1} parent=1 // pred_region
      %s3167 = ssub.s32 128, 128
      %3168 = vsyncadd [#allocation4], %s3167
      %s3170 = sshll.u32 [#allocation3], 4
      %s3171 = int_to_ptr.vmem [resolvable:$true] %s3170
      %3173 = dma.vmem_to_hbm [thread:$0]  %s3171, 128, %s4, [#allocation4]
    $region21: #{tpu_custom_call.1} parent=1 // pred_fallthru
      _
    // Predicated region
    $region22: #{tpu_custom_call.1} parent=1 // pred_check
      _
    $region23: #{tpu_custom_call.1} parent=1 // pred_check_branch
      %3175 = sbr.rel (0) target = $region25
    $region24: #{tpu_custom_call.1} parent=1 // pred_region
      %3176 = dma.done [#allocation4], 128
    $region25: #{tpu_custom_call.1} parent=1 // pred_fallthru
      _
    %3177 = vsyncpa [#allocation4], 1

</llo_original>
